<compile_context>
chip_gen: v7x
topology: tpu7x:2x2x1
jax: 0.10.0
libtpu: 0.0.40
codegen_flags: <defaults>
</compile_context>

<pallas_src>
import math
import functools

import jax
import jax.numpy as jnp
from jax import lax
from jax.experimental import pallas as pl
from jax.experimental.pallas import tpu as pltpu


# ------------------------------- configuration -------------------------------

VOCAB_SIZE = 50
MAX_SEQ_LEN = 16
HIDDEN_SIZE = 32
FF_HIDDEN_SIZE = 64

LANE = 128


def _round_up(x, m):
    return ((x + m - 1) // m) * m


D_PAD = _round_up(HIDDEN_SIZE, LANE)      # 128
F_PAD = _round_up(FF_HIDDEN_SIZE, LANE)   # 128
V_PAD = _round_up(VOCAB_SIZE, LANE)       # 128


# --------------------------- in-kernel building blocks ---------------------------

def _residual_layernorm(x, o, gamma, beta, d_true):
    """Post-norm residual LayerNorm.  Stats over the TRUE hidden width:
    padded lanes of x and o are exactly zero so sum / sum-of-squares are exact;
    padded gamma/beta are zero so padded output lanes stay exactly zero."""
    y = x + o
    inv_d = 1.0 / d_true
    mean = jnp.sum(y, axis=-1, keepdims=True) * inv_d
    var = jnp.sum(y * y, axis=-1, keepdims=True) * inv_d - mean * mean
    xn = (y - mean) * lax.rsqrt(var + 1e-5)          # PyTorch LayerNorm eps default
    return xn * gamma + beta


def _attn_block(x, kv, w_ref, pv_ref, *, scale, d_true, causal):
    """Fused: Q proj + fused K/V proj + SDPA + out proj + residual + LayerNorm.

    x:  (Sq, Dp)  f32   kv: (Skv, Dp) f32
    w_ref:  (Dp, 4*Dp) bf16  = [Wq | Wk | Wv | Wo]
    pv_ref: (8, Dp)    f32   rows = [bq, bk, bv, bo, ln_gamma, ln_beta, 0, 0]
    """
    dp = x.shape[-1]
    sq, skv = x.shape[0], kv.shape[0]

    x_bf = x.astype(jnp.bfloat16)
    kv_bf = kv.astype(jnp.bfloat16)

    # Q projection; 1/sqrt(d) folded into q before the scores matmul.
    q = jnp.dot(x_bf, w_ref[:, 0:dp],
                preferred_element_type=jnp.float32) + pv_ref[0:1, :dp]
    q = (q * scale).astype(jnp.bfloat16)

    # Fused K/V projection: one (Dp, 2*Dp) matmul.
    kvp = jnp.dot(kv_bf, w_ref[:, dp:3 * dp], preferred_element_type=jnp.float32)
    k = (kvp[:, :dp] + pv_ref[1:2, :dp]).astype(jnp.bfloat16)
    v = (kvp[:, dp:] + pv_ref[2:3, :dp]).astype(jnp.bfloat16)

    # Scores via transposed contraction (contract last dims) -> no explicit k.T.
    scores = lax.dot_general(q, k, (((1,), (1,)), ((), ())),
                             preferred_element_type=jnp.float32)

    if causal:
        # Lookahead mask generated in-kernel (masked_fill(triu(ones,1)==1, -inf)).
        row = lax.broadcasted_iota(jnp.int32, (sq, skv), 0)
        col = lax.broadcasted_iota(jnp.int32, (sq, skv), 1)
        scores = jnp.where(col > row, -1e9, scores)

    # Numerically-stable softmax; normalization folded into p (narrow lanes),
    # divide moved to EUP via approx reciprocal.
    m = jnp.max(scores, axis=-1, keepdims=True)
    p = jnp.exp(scores - m)
    denom = jnp.sum(p, axis=-1, keepdims=True)
    p = p * pl.reciprocal(denom, approx=True)

    a = jnp.dot(p.astype(jnp.bfloat16), v, preferred_element_type=jnp.float32)
    o = jnp.dot(a.astype(jnp.bfloat16), w_ref[:, 3 * dp:4 * dp],
                preferred_element_type=jnp.float32) + pv_ref[3:4, :dp]

    return _residual_layernorm(x, o, pv_ref[4:5, :dp], pv_ref[5:6, :dp], d_true)


def _ffn_block(x, w1_ref, w2_ref, pv_ref, *, d_true):
    """Fused: matmul + ReLU + matmul + residual + LayerNorm.

    w1_ref: (Dp, Fp) bf16   w2_ref: (Fp, Dp) bf16
    pv_ref: (8, max(Dp,Fp)) f32  rows = [b1, b2, ln_gamma, ln_beta, ...]
    """
    dp = x.shape[-1]
    fp = w1_ref.shape[1]

    h = jnp.dot(x.astype(jnp.bfloat16), w1_ref[...],
                preferred_element_type=jnp.float32) + pv_ref[0:1, :fp]
    h = jnp.maximum(h, 0.0)
    o = jnp.dot(h.astype(jnp.bfloat16), w2_ref[...],
                preferred_element_type=jnp.float32) + pv_ref[1:2, :dp]

    return _residual_layernorm(x, o, pv_ref[2:3, :dp], pv_ref[3:4, :dp], d_true)


# ------------------------------ fused forward kernel ------------------------------

def _fused_transformer_kernel(xe_ref, xd_ref,
                              w_esa_ref, pv_esa_ref,
                              w_eff1_ref, w_eff2_ref, pv_eff_ref,
                              w_dsa_ref, pv_dsa_ref,
                              w_dca_ref, pv_dca_ref,
                              w_dff1_ref, w_dff2_ref, pv_dff_ref,
                              w_out_ref, b_out_ref,
                              o_ref, *, d_true, scale):
    """Whole encoder + decoder + vocab projection for one batch element."""
    xe = xe_ref[0]      # (Ss, Dp) f32, padded lanes exactly 0
    xd = xd_ref[0]      # (St, Dp) f32

    # ---- encoder ----
    enc = _attn_block(xe, xe, w_esa_ref, pv_esa_ref,
                      scale=scale, d_true=d_true, causal=False)
    enc = _ffn_block(enc, w_eff1_ref, w_eff2_ref, pv_eff_ref, d_true=d_true)

    # ---- decoder ----
    dec = _attn_block(xd, xd, w_dsa_ref, pv_dsa_ref,
                      scale=scale, d_true=d_true, causal=True)
    dec = _attn_block(dec, enc, w_dca_ref, pv_dca_ref,
                      scale=scale, d_true=d_true, causal=False)
    dec = _ffn_block(dec, w_dff1_ref, w_dff2_ref, pv_dff_ref, d_true=d_true)

    # ---- lane-dense vocab projection ----
    o_ref[0] = jnp.dot(dec.astype(jnp.bfloat16), w_out_ref[...],
                       preferred_element_type=jnp.float32) + b_out_ref[...]


def transformer_fused(x_enc, x_dec, params):
    """x_enc: (B, Ss, Dp) f32, x_dec: (B, St, Dp) f32 -> (B, St, Vp) f32 logits."""
    B, Ss, Dp = x_enc.shape
    St = x_dec.shape[1]
    Fp = params["enc_ffn"]["w1"].shape[1]
    pvw = params["enc_ffn"]["pv"].shape[1]
    Vp = params["out_w"].shape[1]

    def rep2(shape):     # weight replicated across the batch grid
        return pl.BlockSpec(shape, lambda i: (0, 0))

    kernel = functools.partial(_fused_transformer_kernel,
                               d_true=float(HIDDEN_SIZE),
                               scale=1.0 / math.sqrt(HIDDEN_SIZE))

    return pl.pallas_call(
        kernel,
        out_shape=jax.ShapeDtypeStruct((B, St, Vp), jnp.float32),
        grid=(B,),
        in_specs=[
            pl.BlockSpec((1, Ss, Dp), lambda i: (i, 0, 0)),   # x_enc
            pl.BlockSpec((1, St, Dp), lambda i: (i, 0, 0)),   # x_dec
            rep2((Dp, 4 * Dp)), rep2((8, Dp)),                # enc self-attn
            rep2((Dp, Fp)), rep2((Fp, Dp)), rep2((8, pvw)),   # enc ffn
            rep2((Dp, 4 * Dp)), rep2((8, Dp)),                # dec self-attn
            rep2((Dp, 4 * Dp)), rep2((8, Dp)),                # dec cross-attn
            rep2((Dp, Fp)), rep2((Fp, Dp)), rep2((8, pvw)),   # dec ffn
            rep2((Dp, Vp)), rep2((1, Vp)),                    # out proj
        ],
        out_specs=pl.BlockSpec((1, St, Vp), lambda i: (i, 0, 0)),
        compiler_params=pltpu.CompilerParams(dimension_semantics=("parallel",)),
    )(x_enc, x_dec,
      params["enc_self_attn"]["w"], params["enc_self_attn"]["pv"],
      params["enc_ffn"]["w1"], params["enc_ffn"]["w2"], params["enc_ffn"]["pv"],
      params["dec_self_attn"]["w"], params["dec_self_attn"]["pv"],
      params["dec_cross_attn"]["w"], params["dec_cross_attn"]["pv"],
      params["dec_ffn"]["w1"], params["dec_ffn"]["w2"], params["dec_ffn"]["pv"],
      params["out_w"], params["out_b"])


# --------------------------- parameter utilities ---------------------------

def _dense_init(key, din, dout):
    w = jax.random.normal(key, (din, dout), jnp.float32) * (1.0 / math.sqrt(din))
    b = jnp.zeros((dout,), jnp.float32)
    return w, b


def _pad2(w, rows, cols, dtype=jnp.float32):
    """Zero-pad a 2D array up to (rows, cols) and cast (zeros stay exact in bf16)."""
    return jnp.pad(w, ((0, rows - w.shape[0]), (0, cols - w.shape[1]))).astype(dtype)


def _pad_row(b, cols):
    b = b.reshape(1, -1)
    return jnp.pad(b, ((0, 0), (0, cols - b.shape[1]))).astype(jnp.float32)


def _attn_block_params(key, hidden, dp):
    ks = jax.random.split(key, 4)
    wq, bq = _dense_init(ks[0], hidden, hidden)
    wk, bk = _dense_init(ks[1], hidden, hidden)
    wv, bv = _dense_init(ks[2], hidden, hidden)
    wo, bo = _dense_init(ks[3], hidden, hidden)
    # One bf16 weight slab [Wq | Wk | Wv | Wo], each zero-padded to (dp, dp).
    w = jnp.concatenate([_pad2(wq, dp, dp), _pad2(wk, dp, dp),
                         _pad2(wv, dp, dp), _pad2(wo, dp, dp)],
                        axis=1).astype(jnp.bfloat16)
    # One f32 vector slab: rows [bq, bk, bv, bo, gamma, beta, 0, 0].
    pv = jnp.zeros((8, dp), jnp.float32)
    pv = pv.at[0, :hidden].set(bq)
    pv = pv.at[1, :hidden].set(bk)
    pv = pv.at[2, :hidden].set(bv)
    pv = pv.at[3, :hidden].set(bo)
    pv = pv.at[4, :hidden].set(1.0)          # LayerNorm gamma (padded lanes 0)
    # row 5 (beta) stays 0
    return {"w": w, "pv": pv}


def _ffn_block_params(key, hidden, ff_hidden, dp, fp):
    ks = jax.random.split(key, 2)
    w1, b1 = _dense_init(ks[0], hidden, ff_hidden)
    w2, b2 = _dense_init(ks[1], ff_hidden, hidden)
    width = max(dp, fp)
    pv = jnp.zeros((8, width), jnp.float32)
    pv = pv.at[0, :ff_hidden].set(b1)
    pv = pv.at[1, :hidden].set(b2)
    pv = pv.at[2, :hidden].set(1.0)          # LayerNorm gamma
    # row 3 (beta) stays 0
    return {"w1": _pad2(w1, dp, fp, jnp.bfloat16),
            "w2": _pad2(w2, fp, dp, jnp.bfloat16),
            "pv": pv}


def init_params(key):
    ks = jax.random.split(key, 10)
    enc_tok = jax.random.normal(ks[0], (VOCAB_SIZE, HIDDEN_SIZE), jnp.float32) * 0.02
    enc_pos = jax.random.normal(ks[1], (MAX_SEQ_LEN, HIDDEN_SIZE), jnp.float32) * 0.02
    dec_tok = jax.random.normal(ks[2], (VOCAB_SIZE, HIDDEN_SIZE), jnp.float32) * 0.02
    dec_pos = jax.random.normal(ks[3], (MAX_SEQ_LEN, HIDDEN_SIZE), jnp.float32) * 0.02
    out_w, out_b = _dense_init(ks[9], HIDDEN_SIZE, VOCAB_SIZE)
    return {
        "enc_tok_emb": _pad2(enc_tok, VOCAB_SIZE, D_PAD),
        "enc_pos_emb": _pad2(enc_pos, MAX_SEQ_LEN, D_PAD),
        "dec_tok_emb": _pad2(dec_tok, VOCAB_SIZE, D_PAD),
        "dec_pos_emb": _pad2(dec_pos, MAX_SEQ_LEN, D_PAD),
        "enc_self_attn": _attn_block_params(ks[4], HIDDEN_SIZE, D_PAD),
        "enc_ffn": _ffn_block_params(ks[5], HIDDEN_SIZE, FF_HIDDEN_SIZE, D_PAD, F_PAD),
        "dec_self_attn": _attn_block_params(ks[6], HIDDEN_SIZE, D_PAD),
        "dec_cross_attn": _attn_block_params(ks[7], HIDDEN_SIZE, D_PAD),
        "dec_ffn": _ffn_block_params(ks[8], HIDDEN_SIZE, FF_HIDDEN_SIZE, D_PAD, F_PAD),
        "out_w": _pad2(out_w, D_PAD, V_PAD, jnp.bfloat16),
        "out_b": _pad_row(out_b, V_PAD),
    }


# ------------------------------ model forward ------------------------------

@jax.jit
def transformer_forward(params, src, tgt):
    Ss = src.shape[1]
    St = tgt.shape[1]
    # TODO(synk): embedding gather done in plain JAX (jnp.take); a Pallas
    # scalar-prefetch gather kernel would be needed for a fully in-kernel path.
    x_enc = (jnp.take(params["enc_tok_emb"], src, axis=0)
             + params["enc_pos_emb"][:Ss][None, :, :])
    x_dec = (jnp.take(params["dec_tok_emb"], tgt, axis=0)
             + params["dec_pos_emb"][:St][None, :, :])
    # The lookahead (causal) mask from create_lookahead_mask is applied
    # in-kernel via broadcasted_iota (col > row -> -1e9).
    logits = transformer_fused(x_enc, x_dec, params)
    return logits[..., :VOCAB_SIZE]


# ----------------------------------- main -----------------------------------

if __name__ == "__main__":
    batch = 2
    src_len = 8
    tgt_len = 8

    key = jax.random.PRNGKey(0)
    k_param, k_src, k_tgt = jax.random.split(key, 3)

    params = init_params(k_param)
    src = jax.random.randint(k_src, (batch, src_len), 0, VOCAB_SIZE, dtype=jnp.int32)
    tgt = jax.random.randint(k_tgt, (batch, tgt_len), 0, VOCAB_SIZE, dtype=jnp.int32)

    out = transformer_forward(params, src, tgt)
    out = jax.block_until_ready(out)

    assert out.shape == (batch, tgt_len, VOCAB_SIZE), out.shape
    assert bool(jnp.all(jnp.isfinite(out)))
    print("KERNEL_OK")
</pallas_src>

<mosaic_0001>
module attributes {stable_mosaic.version = 11 : i64} {
  func.func @_fused_transformer_kernel(%arg0: i32, %arg1: memref<1x8x128xf32, #tpu.memory_space<vmem>>, %arg2: memref<1x8x128xf32, #tpu.memory_space<vmem>>, %arg3: memref<128x512xbf16, #tpu.memory_space<vmem>>, %arg4: memref<8x128xf32, #tpu.memory_space<vmem>>, %arg5: memref<128x128xbf16, #tpu.memory_space<vmem>>, %arg6: memref<128x128xbf16, #tpu.memory_space<vmem>>, %arg7: memref<8x128xf32, #tpu.memory_space<vmem>>, %arg8: memref<128x512xbf16, #tpu.memory_space<vmem>>, %arg9: memref<8x128xf32, #tpu.memory_space<vmem>>, %arg10: memref<128x512xbf16, #tpu.memory_space<vmem>>, %arg11: memref<8x128xf32, #tpu.memory_space<vmem>>, %arg12: memref<128x128xbf16, #tpu.memory_space<vmem>>, %arg13: memref<128x128xbf16, #tpu.memory_space<vmem>>, %arg14: memref<8x128xf32, #tpu.memory_space<vmem>>, %arg15: memref<128x128xbf16, #tpu.memory_space<vmem>>, %arg16: memref<1x128xf32, #tpu.memory_space<vmem>>, %arg17: memref<1x8x128xf32, #tpu.memory_space<vmem>>) attributes {dimension_semantics = [#tpu.dimension_semantics<parallel>], iteration_bounds = array<i64: 2>, scalar_prefetch = 0 : i64, scratch_operands = 0 : i64, tpu.core_type = #tpu.core_type<tc>, window_params = [{transform_indices = @transform_0, window_bounds = array<i64: 1, 8, 128>}, {transform_indices = @transform_1, window_bounds = array<i64: 1, 8, 128>}, {pipeline_mode = #tpu.pipeline_mode<synchronous>, transform_indices = @transform_2, window_bounds = array<i64: 128, 512>}, {pipeline_mode = #tpu.pipeline_mode<synchronous>, transform_indices = @transform_3, window_bounds = array<i64: 8, 128>}, {pipeline_mode = #tpu.pipeline_mode<synchronous>, transform_indices = @transform_4, window_bounds = array<i64: 128, 128>}, {pipeline_mode = #tpu.pipeline_mode<synchronous>, transform_indices = @transform_5, window_bounds = array<i64: 128, 128>}, {pipeline_mode = #tpu.pipeline_mode<synchronous>, transform_indices = @transform_6, window_bounds = array<i64: 8, 128>}, {pipeline_mode = #tpu.pipeline_mode<synchronous>, transform_indices = @transform_7, window_bounds = array<i64: 128, 512>}, {pipeline_mode = #tpu.pipeline_mode<synchronous>, transform_indices = @transform_8, window_bounds = array<i64: 8, 128>}, {pipeline_mode = #tpu.pipeline_mode<synchronous>, transform_indices = @transform_9, window_bounds = array<i64: 128, 512>}, {pipeline_mode = #tpu.pipeline_mode<synchronous>, transform_indices = @transform_10, window_bounds = array<i64: 8, 128>}, {pipeline_mode = #tpu.pipeline_mode<synchronous>, transform_indices = @transform_11, window_bounds = array<i64: 128, 128>}, {pipeline_mode = #tpu.pipeline_mode<synchronous>, transform_indices = @transform_12, window_bounds = array<i64: 128, 128>}, {pipeline_mode = #tpu.pipeline_mode<synchronous>, transform_indices = @transform_13, window_bounds = array<i64: 8, 128>}, {pipeline_mode = #tpu.pipeline_mode<synchronous>, transform_indices = @transform_14, window_bounds = array<i64: 128, 128>}, {pipeline_mode = #tpu.pipeline_mode<synchronous>, transform_indices = @transform_15, window_bounds = array<i64: 1, 128>}, {transform_indices = @transform_16, window_bounds = array<i64: 1, 8, 128>}]} {
    %c0 = arith.constant 0 : index
    %c0_0 = arith.constant 0 : index
    %c0_1 = arith.constant 0 : index
    %0 = vector.load %arg1[%c0, %c0_0, %c0_1] : memref<1x8x128xf32, #tpu.memory_space<vmem>>, vector<1x8x128xf32>
    %1 = vector.shape_cast %0 : vector<1x8x128xf32> to vector<8x128xf32>
    %c0_2 = arith.constant 0 : index
    %c0_3 = arith.constant 0 : index
    %c0_4 = arith.constant 0 : index
    %2 = vector.load %arg2[%c0_2, %c0_3, %c0_4] : memref<1x8x128xf32, #tpu.memory_space<vmem>>, vector<1x8x128xf32>
    %3 = vector.shape_cast %2 : vector<1x8x128xf32> to vector<8x128xf32>
    %4 = arith.truncf %1 : vector<8x128xf32> to vector<8x128xbf16>
    %5 = arith.truncf %1 : vector<8x128xf32> to vector<8x128xbf16>
    %c0_5 = arith.constant 0 : index
    %c0_6 = arith.constant 0 : index
    %6 = vector.load %arg3[%c0_5, %c0_6] : memref<128x512xbf16, #tpu.memory_space<vmem>>, vector<128x128xbf16>
    %cst = arith.constant dense<0.000000e+00> : vector<8x128xf32>
    %7 = tpu.matmul %4, %6, %cst {dimension_numbers = #tpu.dot_dimension_numbers<[1], [0], [0], [1], [0, 0, 1, 1], [], []>} : vector<8x128xbf16>, vector<128x128xbf16>, vector<8x128xf32> -> vector<8x128xf32>
    %c0_7 = arith.constant 0 : index
    %c0_8 = arith.constant 0 : index
    %8 = vector.load %arg4[%c0_7, %c0_8] : memref<8x128xf32, #tpu.memory_space<vmem>>, vector<1x128xf32>
    %9 = vector.broadcast %8 : vector<1x128xf32> to vector<8x128xf32>
    %10 = arith.addf %7, %9 : vector<8x128xf32>
    %cst_9 = arith.constant 0.176776692 : f32
    %11 = vector.broadcast %cst_9 : f32 to vector<8x128xf32>
    %12 = arith.mulf %10, %11 : vector<8x128xf32>
    %13 = arith.truncf %12 : vector<8x128xf32> to vector<8x128xbf16>
    %c0_10 = arith.constant 0 : index
    %c128 = arith.constant 128 : index
    %14 = vector.load %arg3[%c0_10, %c128] : memref<128x512xbf16, #tpu.memory_space<vmem>>, vector<128x256xbf16>
    %cst_11 = arith.constant dense<0.000000e+00> : vector<8x256xf32>
    %15 = tpu.matmul %5, %14, %cst_11 {dimension_numbers = #tpu.dot_dimension_numbers<[1], [0], [0], [1], [0, 0, 1, 1], [], []>} : vector<8x128xbf16>, vector<128x256xbf16>, vector<8x256xf32> -> vector<8x256xf32>
    %16 = vector.extract_strided_slice %15 {offsets = [0, 0], sizes = [8, 128], strides = [1, 1]} : vector<8x256xf32> to vector<8x128xf32>
    %c1 = arith.constant 1 : index
    %c0_12 = arith.constant 0 : index
    %17 = vector.load %arg4[%c1, %c0_12] : memref<8x128xf32, #tpu.memory_space<vmem>>, vector<1x128xf32>
    %18 = vector.broadcast %17 : vector<1x128xf32> to vector<8x128xf32>
    %19 = arith.addf %16, %18 : vector<8x128xf32>
    %20 = arith.truncf %19 : vector<8x128xf32> to vector<8x128xbf16>
    %21 = vector.extract_strided_slice %15 {offsets = [0, 128], sizes = [8, 128], strides = [1, 1]} : vector<8x256xf32> to vector<8x128xf32>
    %c2 = arith.constant 2 : index
    %c0_13 = arith.constant 0 : index
    %22 = vector.load %arg4[%c2, %c0_13] : memref<8x128xf32, #tpu.memory_space<vmem>>, vector<1x128xf32>
    %23 = vector.broadcast %22 : vector<1x128xf32> to vector<8x128xf32>
    %24 = arith.addf %21, %23 : vector<8x128xf32>
    %25 = arith.truncf %24 : vector<8x128xf32> to vector<8x128xbf16>
    %cst_14 = arith.constant dense<0.000000e+00> : vector<8x8xf32>
    %26 = tpu.matmul %13, %20, %cst_14 {dimension_numbers = #tpu.dot_dimension_numbers<[1], [1], [0], [0], [0, 0, 1, 0], [], []>} : vector<8x128xbf16>, vector<8x128xbf16>, vector<8x8xf32> -> vector<8x8xf32>
    %cst_15 = arith.constant dense<0xFF800000> : vector<8xf32>
    %27 = vector.multi_reduction <maximumf>, %26, %cst_15 [1] : vector<8x8xf32> to vector<8xf32>
    %28 = vector.shape_cast %27 : vector<8xf32> to vector<8x1xf32>
    %29 = vector.broadcast %28 : vector<8x1xf32> to vector<8x8xf32>
    %30 = arith.subf %26, %29 : vector<8x8xf32>
    %31 = math.exp %30 : vector<8x8xf32>
    %cst_16 = arith.constant dense<0.000000e+00> : vector<8xf32>
    %32 = vector.multi_reduction <add>, %31, %cst_16 [1] : vector<8x8xf32> to vector<8xf32>
    %33 = vector.shape_cast %32 : vector<8xf32> to vector<8x1xf32>
    %34 = tpu.reciprocal %33 {approx = true} : vector<8x1xf32> -> vector<8x1xf32>
    %35 = vector.broadcast %34 : vector<8x1xf32> to vector<8x8xf32>
    %36 = arith.mulf %31, %35 : vector<8x8xf32>
    %37 = arith.truncf %36 : vector<8x8xf32> to vector<8x8xbf16>
    %cst_17 = arith.constant dense<0.000000e+00> : vector<8x128xf32>
    %38 = tpu.matmul %37, %25, %cst_17 {dimension_numbers = #tpu.dot_dimension_numbers<[1], [0], [0], [1], [0, 0, 1, 1], [], []>} : vector<8x8xbf16>, vector<8x128xbf16>, vector<8x128xf32> -> vector<8x128xf32>
    %39 = arith.truncf %38 : vector<8x128xf32> to vector<8x128xbf16>
    %c0_18 = arith.constant 0 : index
    %c384 = arith.constant 384 : index
    %40 = vector.load %arg3[%c0_18, %c384] : memref<128x512xbf16, #tpu.memory_space<vmem>>, vector<128x128xbf16>
    %cst_19 = arith.constant dense<0.000000e+00> : vector<8x128xf32>
    %41 = tpu.matmul %39, %40, %cst_19 {dimension_numbers = #tpu.dot_dimension_numbers<[1], [0], [0], [1], [0, 0, 1, 1], [], []>} : vector<8x128xbf16>, vector<128x128xbf16>, vector<8x128xf32> -> vector<8x128xf32>
    %c3 = arith.constant 3 : index
    %c0_20 = arith.constant 0 : index
    %42 = vector.load %arg4[%c3, %c0_20] : memref<8x128xf32, #tpu.memory_space<vmem>>, vector<1x128xf32>
    %43 = vector.broadcast %42 : vector<1x128xf32> to vector<8x128xf32>
    %44 = arith.addf %41, %43 : vector<8x128xf32>
    %c4 = arith.constant 4 : index
    %c0_21 = arith.constant 0 : index
    %45 = vector.load %arg4[%c4, %c0_21] : memref<8x128xf32, #tpu.memory_space<vmem>>, vector<1x128xf32>
    %c5 = arith.constant 5 : index
    %c0_22 = arith.constant 0 : index
    %46 = vector.load %arg4[%c5, %c0_22] : memref<8x128xf32, #tpu.memory_space<vmem>>, vector<1x128xf32>
    %47 = arith.addf %1, %44 : vector<8x128xf32>
    %cst_23 = arith.constant dense<0.000000e+00> : vector<8xf32>
    %48 = vector.multi_reduction <add>, %47, %cst_23 [1] : vector<8x128xf32> to vector<8xf32>
    %49 = vector.shape_cast %48 : vector<8xf32> to vector<8x1xf32>
    %cst_24 = arith.constant 3.125000e-02 : f32
    %50 = vector.broadcast %cst_24 : f32 to vector<8x1xf32>
    %51 = arith.mulf %49, %50 : vector<8x1xf32>
    %52 = arith.mulf %47, %47 : vector<8x128xf32>
    %cst_25 = arith.constant dense<0.000000e+00> : vector<8xf32>
    %53 = vector.multi_reduction <add>, %52, %cst_25 [1] : vector<8x128xf32> to vector<8xf32>
    %54 = vector.shape_cast %53 : vector<8xf32> to vector<8x1xf32>
    %cst_26 = arith.constant 3.125000e-02 : f32
    %55 = vector.broadcast %cst_26 : f32 to vector<8x1xf32>
    %56 = arith.mulf %54, %55 : vector<8x1xf32>
    %57 = arith.mulf %51, %51 : vector<8x1xf32>
    %58 = arith.subf %56, %57 : vector<8x1xf32>
    %59 = vector.broadcast %51 : vector<8x1xf32> to vector<8x128xf32>
    %60 = arith.subf %47, %59 : vector<8x128xf32>
    %cst_27 = arith.constant 9.99999974E-6 : f32
    %61 = vector.broadcast %cst_27 : f32 to vector<8x1xf32>
    %62 = arith.addf %58, %61 : vector<8x1xf32>
    %63 = math.rsqrt %62 : vector<8x1xf32>
    %64 = vector.broadcast %63 : vector<8x1xf32> to vector<8x128xf32>
    %65 = arith.mulf %60, %64 : vector<8x128xf32>
    %66 = vector.broadcast %45 : vector<1x128xf32> to vector<8x128xf32>
    %67 = arith.mulf %65, %66 : vector<8x128xf32>
    %68 = vector.broadcast %46 : vector<1x128xf32> to vector<8x128xf32>
    %69 = arith.addf %67, %68 : vector<8x128xf32>
    %70 = arith.truncf %69 : vector<8x128xf32> to vector<8x128xbf16>
    %c0_28 = arith.constant 0 : index
    %c0_29 = arith.constant 0 : index
    %71 = vector.load %arg5[%c0_28, %c0_29] : memref<128x128xbf16, #tpu.memory_space<vmem>>, vector<128x128xbf16>
    %cst_30 = arith.constant dense<0.000000e+00> : vector<8x128xf32>
    %72 = tpu.matmul %70, %71, %cst_30 {dimension_numbers = #tpu.dot_dimension_numbers<[1], [0], [0], [1], [0, 0, 1, 1], [], []>} : vector<8x128xbf16>, vector<128x128xbf16>, vector<8x128xf32> -> vector<8x128xf32>
    %c0_31 = arith.constant 0 : index
    %c0_32 = arith.constant 0 : index
    %73 = vector.load %arg7[%c0_31, %c0_32] : memref<8x128xf32, #tpu.memory_space<vmem>>, vector<1x128xf32>
    %74 = vector.broadcast %73 : vector<1x128xf32> to vector<8x128xf32>
    %75 = arith.addf %72, %74 : vector<8x128xf32>
    %cst_33 = arith.constant 0.000000e+00 : f32
    %76 = vector.broadcast %cst_33 : f32 to vector<8x128xf32>
    %77 = arith.maximumf %75, %76 : vector<8x128xf32>
    %78 = arith.truncf %77 : vector<8x128xf32> to vector<8x128xbf16>
    %c0_34 = arith.constant 0 : index
    %c0_35 = arith.constant 0 : index
    %79 = vector.load %arg6[%c0_34, %c0_35] : memref<128x128xbf16, #tpu.memory_space<vmem>>, vector<128x128xbf16>
    %cst_36 = arith.constant dense<0.000000e+00> : vector<8x128xf32>
    %80 = tpu.matmul %78, %79, %cst_36 {dimension_numbers = #tpu.dot_dimension_numbers<[1], [0], [0], [1], [0, 0, 1, 1], [], []>} : vector<8x128xbf16>, vector<128x128xbf16>, vector<8x128xf32> -> vector<8x128xf32>
    %c1_37 = arith.constant 1 : index
    %c0_38 = arith.constant 0 : index
    %81 = vector.load %arg7[%c1_37, %c0_38] : memref<8x128xf32, #tpu.memory_space<vmem>>, vector<1x128xf32>
    %82 = vector.broadcast %81 : vector<1x128xf32> to vector<8x128xf32>
    %83 = arith.addf %80, %82 : vector<8x128xf32>
    %c2_39 = arith.constant 2 : index
    %c0_40 = arith.constant 0 : index
    %84 = vector.load %arg7[%c2_39, %c0_40] : memref<8x128xf32, #tpu.memory_space<vmem>>, vector<1x128xf32>
    %c3_41 = arith.constant 3 : index
    %c0_42 = arith.constant 0 : index
    %85 = vector.load %arg7[%c3_41, %c0_42] : memref<8x128xf32, #tpu.memory_space<vmem>>, vector<1x128xf32>
    %86 = arith.addf %69, %83 : vector<8x128xf32>
    %cst_43 = arith.constant dense<0.000000e+00> : vector<8xf32>
    %87 = vector.multi_reduction <add>, %86, %cst_43 [1] : vector<8x128xf32> to vector<8xf32>
    %88 = vector.shape_cast %87 : vector<8xf32> to vector<8x1xf32>
    %cst_44 = arith.constant 3.125000e-02 : f32
    %89 = vector.broadcast %cst_44 : f32 to vector<8x1xf32>
    %90 = arith.mulf %88, %89 : vector<8x1xf32>
    %91 = arith.mulf %86, %86 : vector<8x128xf32>
    %cst_45 = arith.constant dense<0.000000e+00> : vector<8xf32>
    %92 = vector.multi_reduction <add>, %91, %cst_45 [1] : vector<8x128xf32> to vector<8xf32>
    %93 = vector.shape_cast %92 : vector<8xf32> to vector<8x1xf32>
    %cst_46 = arith.constant 3.125000e-02 : f32
    %94 = vector.broadcast %cst_46 : f32 to vector<8x1xf32>
    %95 = arith.mulf %93, %94 : vector<8x1xf32>
    %96 = arith.mulf %90, %90 : vector<8x1xf32>
    %97 = arith.subf %95, %96 : vector<8x1xf32>
    %98 = vector.broadcast %90 : vector<8x1xf32> to vector<8x128xf32>
    %99 = arith.subf %86, %98 : vector<8x128xf32>
    %cst_47 = arith.constant 9.99999974E-6 : f32
    %100 = vector.broadcast %cst_47 : f32 to vector<8x1xf32>
    %101 = arith.addf %97, %100 : vector<8x1xf32>
    %102 = math.rsqrt %101 : vector<8x1xf32>
    %103 = vector.broadcast %102 : vector<8x1xf32> to vector<8x128xf32>
    %104 = arith.mulf %99, %103 : vector<8x128xf32>
    %105 = vector.broadcast %84 : vector<1x128xf32> to vector<8x128xf32>
    %106 = arith.mulf %104, %105 : vector<8x128xf32>
    %107 = vector.broadcast %85 : vector<1x128xf32> to vector<8x128xf32>
    %108 = arith.addf %106, %107 : vector<8x128xf32>
    %109 = arith.truncf %3 : vector<8x128xf32> to vector<8x128xbf16>
    %110 = arith.truncf %3 : vector<8x128xf32> to vector<8x128xbf16>
    %c0_48 = arith.constant 0 : index
    %c0_49 = arith.constant 0 : index
    %111 = vector.load %arg8[%c0_48, %c0_49] : memref<128x512xbf16, #tpu.memory_space<vmem>>, vector<128x128xbf16>
    %cst_50 = arith.constant dense<0.000000e+00> : vector<8x128xf32>
    %112 = tpu.matmul %109, %111, %cst_50 {dimension_numbers = #tpu.dot_dimension_numbers<[1], [0], [0], [1], [0, 0, 1, 1], [], []>} : vector<8x128xbf16>, vector<128x128xbf16>, vector<8x128xf32> -> vector<8x128xf32>
    %c0_51 = arith.constant 0 : index
    %c0_52 = arith.constant 0 : index
    %113 = vector.load %arg9[%c0_51, %c0_52] : memref<8x128xf32, #tpu.memory_space<vmem>>, vector<1x128xf32>
    %114 = vector.broadcast %113 : vector<1x128xf32> to vector<8x128xf32>
    %115 = arith.addf %112, %114 : vector<8x128xf32>
    %cst_53 = arith.constant 0.176776692 : f32
    %116 = vector.broadcast %cst_53 : f32 to vector<8x128xf32>
    %117 = arith.mulf %115, %116 : vector<8x128xf32>
    %118 = arith.truncf %117 : vector<8x128xf32> to vector<8x128xbf16>
    %c0_54 = arith.constant 0 : index
    %c128_55 = arith.constant 128 : index
    %119 = vector.load %arg8[%c0_54, %c128_55] : memref<128x512xbf16, #tpu.memory_space<vmem>>, vector<128x256xbf16>
    %cst_56 = arith.constant dense<0.000000e+00> : vector<8x256xf32>
    %120 = tpu.matmul %110, %119, %cst_56 {dimension_numbers = #tpu.dot_dimension_numbers<[1], [0], [0], [1], [0, 0, 1, 1], [], []>} : vector<8x128xbf16>, vector<128x256xbf16>, vector<8x256xf32> -> vector<8x256xf32>
    %121 = vector.extract_strided_slice %120 {offsets = [0, 0], sizes = [8, 128], strides = [1, 1]} : vector<8x256xf32> to vector<8x128xf32>
    %c1_57 = arith.constant 1 : index
    %c0_58 = arith.constant 0 : index
    %122 = vector.load %arg9[%c1_57, %c0_58] : memref<8x128xf32, #tpu.memory_space<vmem>>, vector<1x128xf32>
    %123 = vector.broadcast %122 : vector<1x128xf32> to vector<8x128xf32>
    %124 = arith.addf %121, %123 : vector<8x128xf32>
    %125 = arith.truncf %124 : vector<8x128xf32> to vector<8x128xbf16>
    %126 = vector.extract_strided_slice %120 {offsets = [0, 128], sizes = [8, 128], strides = [1, 1]} : vector<8x256xf32> to vector<8x128xf32>
    %c2_59 = arith.constant 2 : index
    %c0_60 = arith.constant 0 : index
    %127 = vector.load %arg9[%c2_59, %c0_60] : memref<8x128xf32, #tpu.memory_space<vmem>>, vector<1x128xf32>
    %128 = vector.broadcast %127 : vector<1x128xf32> to vector<8x128xf32>
    %129 = arith.addf %126, %128 : vector<8x128xf32>
    %130 = arith.truncf %129 : vector<8x128xf32> to vector<8x128xbf16>
    %cst_61 = arith.constant dense<0.000000e+00> : vector<8x8xf32>
    %131 = tpu.matmul %118, %125, %cst_61 {dimension_numbers = #tpu.dot_dimension_numbers<[1], [1], [0], [0], [0, 0, 1, 0], [], []>} : vector<8x128xbf16>, vector<8x128xbf16>, vector<8x8xf32> -> vector<8x8xf32>
    %132 = tpu.iota {dimensions = array<i32: 0>} : vector<8x8xi32>
    %133 = tpu.iota {dimensions = array<i32: 1>} : vector<8x8xi32>
    %134 = arith.cmpi sgt, %133, %132 : vector<8x8xi32>
    %cst_62 = arith.constant -1.000000e+09 : f32
    %135 = vector.broadcast %cst_62 : f32 to vector<8x8xf32>
    %136 = arith.select %134, %135, %131 : vector<8x8xi1>, vector<8x8xf32>
    %cst_63 = arith.constant dense<0xFF800000> : vector<8xf32>
    %137 = vector.multi_reduction <maximumf>, %136, %cst_63 [1] : vector<8x8xf32> to vector<8xf32>
    %138 = vector.shape_cast %137 : vector<8xf32> to vector<8x1xf32>
    %139 = vector.broadcast %138 : vector<8x1xf32> to vector<8x8xf32>
    %140 = arith.subf %136, %139 : vector<8x8xf32>
    %141 = math.exp %140 : vector<8x8xf32>
    %cst_64 = arith.constant dense<0.000000e+00> : vector<8xf32>
    %142 = vector.multi_reduction <add>, %141, %cst_64 [1] : vector<8x8xf32> to vector<8xf32>
    %143 = vector.shape_cast %142 : vector<8xf32> to vector<8x1xf32>
    %144 = tpu.reciprocal %143 {approx = true} : vector<8x1xf32> -> vector<8x1xf32>
    %145 = vector.broadcast %144 : vector<8x1xf32> to vector<8x8xf32>
    %146 = arith.mulf %141, %145 : vector<8x8xf32>
    %147 = arith.truncf %146 : vector<8x8xf32> to vector<8x8xbf16>
    %cst_65 = arith.constant dense<0.000000e+00> : vector<8x128xf32>
    %148 = tpu.matmul %147, %130, %cst_65 {dimension_numbers = #tpu.dot_dimension_numbers<[1], [0], [0], [1], [0, 0, 1, 1], [], []>} : vector<8x8xbf16>, vector<8x128xbf16>, vector<8x128xf32> -> vector<8x128xf32>
    %149 = arith.truncf %148 : vector<8x128xf32> to vector<8x128xbf16>
    %c0_66 = arith.constant 0 : index
    %c384_67 = arith.constant 384 : index
    %150 = vector.load %arg8[%c0_66, %c384_67] : memref<128x512xbf16, #tpu.memory_space<vmem>>, vector<128x128xbf16>
    %cst_68 = arith.constant dense<0.000000e+00> : vector<8x128xf32>
    %151 = tpu.matmul %149, %150, %cst_68 {dimension_numbers = #tpu.dot_dimension_numbers<[1], [0], [0], [1], [0, 0, 1, 1], [], []>} : vector<8x128xbf16>, vector<128x128xbf16>, vector<8x128xf32> -> vector<8x128xf32>
    %c3_69 = arith.constant 3 : index
    %c0_70 = arith.constant 0 : index
    %152 = vector.load %arg9[%c3_69, %c0_70] : memref<8x128xf32, #tpu.memory_space<vmem>>, vector<1x128xf32>
    %153 = vector.broadcast %152 : vector<1x128xf32> to vector<8x128xf32>
    %154 = arith.addf %151, %153 : vector<8x128xf32>
    %c4_71 = arith.constant 4 : index
    %c0_72 = arith.constant 0 : index
    %155 = vector.load %arg9[%c4_71, %c0_72] : memref<8x128xf32, #tpu.memory_space<vmem>>, vector<1x128xf32>
    %c5_73 = arith.constant 5 : index
    %c0_74 = arith.constant 0 : index
    %156 = vector.load %arg9[%c5_73, %c0_74] : memref<8x128xf32, #tpu.memory_space<vmem>>, vector<1x128xf32>
    %157 = arith.addf %3, %154 : vector<8x128xf32>
    %cst_75 = arith.constant dense<0.000000e+00> : vector<8xf32>
    %158 = vector.multi_reduction <add>, %157, %cst_75 [1] : vector<8x128xf32> to vector<8xf32>
    %159 = vector.shape_cast %158 : vector<8xf32> to vector<8x1xf32>
    %cst_76 = arith.constant 3.125000e-02 : f32
    %160 = vector.broadcast %cst_76 : f32 to vector<8x1xf32>
    %161 = arith.mulf %159, %160 : vector<8x1xf32>
    %162 = arith.mulf %157, %157 : vector<8x128xf32>
    %cst_77 = arith.constant dense<0.000000e+00> : vector<8xf32>
    %163 = vector.multi_reduction <add>, %162, %cst_77 [1] : vector<8x128xf32> to vector<8xf32>
    %164 = vector.shape_cast %163 : vector<8xf32> to vector<8x1xf32>
    %cst_78 = arith.constant 3.125000e-02 : f32
    %165 = vector.broadcast %cst_78 : f32 to vector<8x1xf32>
    %166 = arith.mulf %164, %165 : vector<8x1xf32>
    %167 = arith.mulf %161, %161 : vector<8x1xf32>
    %168 = arith.subf %166, %167 : vector<8x1xf32>
    %169 = vector.broadcast %161 : vector<8x1xf32> to vector<8x128xf32>
    %170 = arith.subf %157, %169 : vector<8x128xf32>
    %cst_79 = arith.constant 9.99999974E-6 : f32
    %171 = vector.broadcast %cst_79 : f32 to vector<8x1xf32>
    %172 = arith.addf %168, %171 : vector<8x1xf32>
    %173 = math.rsqrt %172 : vector<8x1xf32>
    %174 = vector.broadcast %173 : vector<8x1xf32> to vector<8x128xf32>
    %175 = arith.mulf %170, %174 : vector<8x128xf32>
    %176 = vector.broadcast %155 : vector<1x128xf32> to vector<8x128xf32>
    %177 = arith.mulf %175, %176 : vector<8x128xf32>
    %178 = vector.broadcast %156 : vector<1x128xf32> to vector<8x128xf32>
    %179 = arith.addf %177, %178 : vector<8x128xf32>
    %180 = arith.truncf %179 : vector<8x128xf32> to vector<8x128xbf16>
    %181 = arith.truncf %108 : vector<8x128xf32> to vector<8x128xbf16>
    %c0_80 = arith.constant 0 : index
    %c0_81 = arith.constant 0 : index
    %182 = vector.load %arg10[%c0_80, %c0_81] : memref<128x512xbf16, #tpu.memory_space<vmem>>, vector<128x128xbf16>
    %cst_82 = arith.constant dense<0.000000e+00> : vector<8x128xf32>
    %183 = tpu.matmul %180, %182, %cst_82 {dimension_numbers = #tpu.dot_dimension_numbers<[1], [0], [0], [1], [0, 0, 1, 1], [], []>} : vector<8x128xbf16>, vector<128x128xbf16>, vector<8x128xf32> -> vector<8x128xf32>
    %c0_83 = arith.constant 0 : index
    %c0_84 = arith.constant 0 : index
    %184 = vector.load %arg11[%c0_83, %c0_84] : memref<8x128xf32, #tpu.memory_space<vmem>>, vector<1x128xf32>
    %185 = vector.broadcast %184 : vector<1x128xf32> to vector<8x128xf32>
    %186 = arith.addf %183, %185 : vector<8x128xf32>
    %cst_85 = arith.constant 0.176776692 : f32
    %187 = vector.broadcast %cst_85 : f32 to vector<8x128xf32>
    %188 = arith.mulf %186, %187 : vector<8x128xf32>
    %189 = arith.truncf %188 : vector<8x128xf32> to vector<8x128xbf16>
    %c0_86 = arith.constant 0 : index
    %c128_87 = arith.constant 128 : index
    %190 = vector.load %arg10[%c0_86, %c128_87] : memref<128x512xbf16, #tpu.memory_space<vmem>>, vector<128x256xbf16>
    %cst_88 = arith.constant dense<0.000000e+00> : vector<8x256xf32>
    %191 = tpu.matmul %181, %190, %cst_88 {dimension_numbers = #tpu.dot_dimension_numbers<[1], [0], [0], [1], [0, 0, 1, 1], [], []>} : vector<8x128xbf16>, vector<128x256xbf16>, vector<8x256xf32> -> vector<8x256xf32>
    %192 = vector.extract_strided_slice %191 {offsets = [0, 0], sizes = [8, 128], strides = [1, 1]} : vector<8x256xf32> to vector<8x128xf32>
    %c1_89 = arith.constant 1 : index
    %c0_90 = arith.constant 0 : index
    %193 = vector.load %arg11[%c1_89, %c0_90] : memref<8x128xf32, #tpu.memory_space<vmem>>, vector<1x128xf32>
    %194 = vector.broadcast %193 : vector<1x128xf32> to vector<8x128xf32>
    %195 = arith.addf %192, %194 : vector<8x128xf32>
    %196 = arith.truncf %195 : vector<8x128xf32> to vector<8x128xbf16>
    %197 = vector.extract_strided_slice %191 {offsets = [0, 128], sizes = [8, 128], strides = [1, 1]} : vector<8x256xf32> to vector<8x128xf32>
    %c2_91 = arith.constant 2 : index
    %c0_92 = arith.constant 0 : index
    %198 = vector.load %arg11[%c2_91, %c0_92] : memref<8x128xf32, #tpu.memory_space<vmem>>, vector<1x128xf32>
    %199 = vector.broadcast %198 : vector<1x128xf32> to vector<8x128xf32>
    %200 = arith.addf %197, %199 : vector<8x128xf32>
    %201 = arith.truncf %200 : vector<8x128xf32> to vector<8x128xbf16>
    %cst_93 = arith.constant dense<0.000000e+00> : vector<8x8xf32>
    %202 = tpu.matmul %189, %196, %cst_93 {dimension_numbers = #tpu.dot_dimension_numbers<[1], [1], [0], [0], [0, 0, 1, 0], [], []>} : vector<8x128xbf16>, vector<8x128xbf16>, vector<8x8xf32> -> vector<8x8xf32>
    %cst_94 = arith.constant dense<0xFF800000> : vector<8xf32>
    %203 = vector.multi_reduction <maximumf>, %202, %cst_94 [1] : vector<8x8xf32> to vector<8xf32>
    %204 = vector.shape_cast %203 : vector<8xf32> to vector<8x1xf32>
    %205 = vector.broadcast %204 : vector<8x1xf32> to vector<8x8xf32>
    %206 = arith.subf %202, %205 : vector<8x8xf32>
    %207 = math.exp %206 : vector<8x8xf32>
    %cst_95 = arith.constant dense<0.000000e+00> : vector<8xf32>
    %208 = vector.multi_reduction <add>, %207, %cst_95 [1] : vector<8x8xf32> to vector<8xf32>
    %209 = vector.shape_cast %208 : vector<8xf32> to vector<8x1xf32>
    %210 = tpu.reciprocal %209 {approx = true} : vector<8x1xf32> -> vector<8x1xf32>
    %211 = vector.broadcast %210 : vector<8x1xf32> to vector<8x8xf32>
    %212 = arith.mulf %207, %211 : vector<8x8xf32>
    %213 = arith.truncf %212 : vector<8x8xf32> to vector<8x8xbf16>
    %cst_96 = arith.constant dense<0.000000e+00> : vector<8x128xf32>
    %214 = tpu.matmul %213, %201, %cst_96 {dimension_numbers = #tpu.dot_dimension_numbers<[1], [0], [0], [1], [0, 0, 1, 1], [], []>} : vector<8x8xbf16>, vector<8x128xbf16>, vector<8x128xf32> -> vector<8x128xf32>
    %215 = arith.truncf %214 : vector<8x128xf32> to vector<8x128xbf16>
    %c0_97 = arith.constant 0 : index
    %c384_98 = arith.constant 384 : index
    %216 = vector.load %arg10[%c0_97, %c384_98] : memref<128x512xbf16, #tpu.memory_space<vmem>>, vector<128x128xbf16>
    %cst_99 = arith.constant dense<0.000000e+00> : vector<8x128xf32>
    %217 = tpu.matmul %215, %216, %cst_99 {dimension_numbers = #tpu.dot_dimension_numbers<[1], [0], [0], [1], [0, 0, 1, 1], [], []>} : vector<8x128xbf16>, vector<128x128xbf16>, vector<8x128xf32> -> vector<8x128xf32>
    %c3_100 = arith.constant 3 : index
    %c0_101 = arith.constant 0 : index
    %218 = vector.load %arg11[%c3_100, %c0_101] : memref<8x128xf32, #tpu.memory_space<vmem>>, vector<1x128xf32>
    %219 = vector.broadcast %218 : vector<1x128xf32> to vector<8x128xf32>
    %220 = arith.addf %217, %219 : vector<8x128xf32>
    %c4_102 = arith.constant 4 : index
    %c0_103 = arith.constant 0 : index
    %221 = vector.load %arg11[%c4_102, %c0_103] : memref<8x128xf32, #tpu.memory_space<vmem>>, vector<1x128xf32>
    %c5_104 = arith.constant 5 : index
    %c0_105 = arith.constant 0 : index
    %222 = vector.load %arg11[%c5_104, %c0_105] : memref<8x128xf32, #tpu.memory_space<vmem>>, vector<1x128xf32>
    %223 = arith.addf %179, %220 : vector<8x128xf32>
    %cst_106 = arith.constant dense<0.000000e+00> : vector<8xf32>
    %224 = vector.multi_reduction <add>, %223, %cst_106 [1] : vector<8x128xf32> to vector<8xf32>
    %225 = vector.shape_cast %224 : vector<8xf32> to vector<8x1xf32>
    %cst_107 = arith.constant 3.125000e-02 : f32
    %226 = vector.broadcast %cst_107 : f32 to vector<8x1xf32>
    %227 = arith.mulf %225, %226 : vector<8x1xf32>
    %228 = arith.mulf %223, %223 : vector<8x128xf32>
    %cst_108 = arith.constant dense<0.000000e+00> : vector<8xf32>
    %229 = vector.multi_reduction <add>, %228, %cst_108 [1] : vector<8x128xf32> to vector<8xf32>
    %230 = vector.shape_cast %229 : vector<8xf32> to vector<8x1xf32>
    %cst_109 = arith.constant 3.125000e-02 : f32
    %231 = vector.broadcast %cst_109 : f32 to vector<8x1xf32>
    %232 = arith.mulf %230, %231 : vector<8x1xf32>
    %233 = arith.mulf %227, %227 : vector<8x1xf32>
    %234 = arith.subf %232, %233 : vector<8x1xf32>
    %235 = vector.broadcast %227 : vector<8x1xf32> to vector<8x128xf32>
    %236 = arith.subf %223, %235 : vector<8x128xf32>
    %cst_110 = arith.constant 9.99999974E-6 : f32
    %237 = vector.broadcast %cst_110 : f32 to vector<8x1xf32>
    %238 = arith.addf %234, %237 : vector<8x1xf32>
    %239 = math.rsqrt %238 : vector<8x1xf32>
    %240 = vector.broadcast %239 : vector<8x1xf32> to vector<8x128xf32>
    %241 = arith.mulf %236, %240 : vector<8x128xf32>
    %242 = vector.broadcast %221 : vector<1x128xf32> to vector<8x128xf32>
    %243 = arith.mulf %241, %242 : vector<8x128xf32>
    %244 = vector.broadcast %222 : vector<1x128xf32> to vector<8x128xf32>
    %245 = arith.addf %243, %244 : vector<8x128xf32>
    %246 = arith.truncf %245 : vector<8x128xf32> to vector<8x128xbf16>
    %c0_111 = arith.constant 0 : index
    %c0_112 = arith.constant 0 : index
    %247 = vector.load %arg12[%c0_111, %c0_112] : memref<128x128xbf16, #tpu.memory_space<vmem>>, vector<128x128xbf16>
    %cst_113 = arith.constant dense<0.000000e+00> : vector<8x128xf32>
    %248 = tpu.matmul %246, %247, %cst_113 {dimension_numbers = #tpu.dot_dimension_numbers<[1], [0], [0], [1], [0, 0, 1, 1], [], []>} : vector<8x128xbf16>, vector<128x128xbf16>, vector<8x128xf32> -> vector<8x128xf32>
    %c0_114 = arith.constant 0 : index
    %c0_115 = arith.constant 0 : index
    %249 = vector.load %arg14[%c0_114, %c0_115] : memref<8x128xf32, #tpu.memory_space<vmem>>, vector<1x128xf32>
    %250 = vector.broadcast %249 : vector<1x128xf32> to vector<8x128xf32>
    %251 = arith.addf %248, %250 : vector<8x128xf32>
    %cst_116 = arith.constant 0.000000e+00 : f32
    %252 = vector.broadcast %cst_116 : f32 to vector<8x128xf32>
    %253 = arith.maximumf %251, %252 : vector<8x128xf32>
    %254 = arith.truncf %253 : vector<8x128xf32> to vector<8x128xbf16>
    %c0_117 = arith.constant 0 : index
    %c0_118 = arith.constant 0 : index
    %255 = vector.load %arg13[%c0_117, %c0_118] : memref<128x128xbf16, #tpu.memory_space<vmem>>, vector<128x128xbf16>
    %cst_119 = arith.constant dense<0.000000e+00> : vector<8x128xf32>
    %256 = tpu.matmul %254, %255, %cst_119 {dimension_numbers = #tpu.dot_dimension_numbers<[1], [0], [0], [1], [0, 0, 1, 1], [], []>} : vector<8x128xbf16>, vector<128x128xbf16>, vector<8x128xf32> -> vector<8x128xf32>
    %c1_120 = arith.constant 1 : index
    %c0_121 = arith.constant 0 : index
    %257 = vector.load %arg14[%c1_120, %c0_121] : memref<8x128xf32, #tpu.memory_space<vmem>>, vector<1x128xf32>
    %258 = vector.broadcast %257 : vector<1x128xf32> to vector<8x128xf32>
    %259 = arith.addf %256, %258 : vector<8x128xf32>
    %c2_122 = arith.constant 2 : index
    %c0_123 = arith.constant 0 : index
    %260 = vector.load %arg14[%c2_122, %c0_123] : memref<8x128xf32, #tpu.memory_space<vmem>>, vector<1x128xf32>
    %c3_124 = arith.constant 3 : index
    %c0_125 = arith.constant 0 : index
    %261 = vector.load %arg14[%c3_124, %c0_125] : memref<8x128xf32, #tpu.memory_space<vmem>>, vector<1x128xf32>
    %262 = arith.addf %245, %259 : vector<8x128xf32>
    %cst_126 = arith.constant dense<0.000000e+00> : vector<8xf32>
    %263 = vector.multi_reduction <add>, %262, %cst_126 [1] : vector<8x128xf32> to vector<8xf32>
    %264 = vector.shape_cast %263 : vector<8xf32> to vector<8x1xf32>
    %cst_127 = arith.constant 3.125000e-02 : f32
    %265 = vector.broadcast %cst_127 : f32 to vector<8x1xf32>
    %266 = arith.mulf %264, %265 : vector<8x1xf32>
    %267 = arith.mulf %262, %262 : vector<8x128xf32>
    %cst_128 = arith.constant dense<0.000000e+00> : vector<8xf32>
    %268 = vector.multi_reduction <add>, %267, %cst_128 [1] : vector<8x128xf32> to vector<8xf32>
    %269 = vector.shape_cast %268 : vector<8xf32> to vector<8x1xf32>
    %cst_129 = arith.constant 3.125000e-02 : f32
    %270 = vector.broadcast %cst_129 : f32 to vector<8x1xf32>
    %271 = arith.mulf %269, %270 : vector<8x1xf32>
    %272 = arith.mulf %266, %266 : vector<8x1xf32>
    %273 = arith.subf %271, %272 : vector<8x1xf32>
    %274 = vector.broadcast %266 : vector<8x1xf32> to vector<8x128xf32>
    %275 = arith.subf %262, %274 : vector<8x128xf32>
    %cst_130 = arith.constant 9.99999974E-6 : f32
    %276 = vector.broadcast %cst_130 : f32 to vector<8x1xf32>
    %277 = arith.addf %273, %276 : vector<8x1xf32>
    %278 = math.rsqrt %277 : vector<8x1xf32>
    %279 = vector.broadcast %278 : vector<8x1xf32> to vector<8x128xf32>
    %280 = arith.mulf %275, %279 : vector<8x128xf32>
    %281 = vector.broadcast %260 : vector<1x128xf32> to vector<8x128xf32>
    %282 = arith.mulf %280, %281 : vector<8x128xf32>
    %283 = vector.broadcast %261 : vector<1x128xf32> to vector<8x128xf32>
    %284 = arith.addf %282, %283 : vector<8x128xf32>
    %285 = arith.truncf %284 : vector<8x128xf32> to vector<8x128xbf16>
    %c0_131 = arith.constant 0 : index
    %c0_132 = arith.constant 0 : index
    %286 = vector.load %arg15[%c0_131, %c0_132] : memref<128x128xbf16, #tpu.memory_space<vmem>>, vector<128x128xbf16>
    %cst_133 = arith.constant dense<0.000000e+00> : vector<8x128xf32>
    %287 = tpu.matmul %285, %286, %cst_133 {dimension_numbers = #tpu.dot_dimension_numbers<[1], [0], [0], [1], [0, 0, 1, 1], [], []>} : vector<8x128xbf16>, vector<128x128xbf16>, vector<8x128xf32> -> vector<8x128xf32>
    %c0_134 = arith.constant 0 : index
    %c0_135 = arith.constant 0 : index
    %288 = vector.load %arg16[%c0_134, %c0_135] : memref<1x128xf32, #tpu.memory_space<vmem>>, vector<1x128xf32>
    %289 = vector.broadcast %288 : vector<1x128xf32> to vector<8x128xf32>
    %290 = arith.addf %287, %289 : vector<8x128xf32>
    %c0_136 = arith.constant 0 : index
    %c0_137 = arith.constant 0 : index
    %c0_138 = arith.constant 0 : index
    %291 = vector.load %arg17[%c0_136, %c0_137, %c0_138] : memref<1x8x128xf32, #tpu.memory_space<vmem>>, vector<1x8x128xf32>
    %292 = vector.shape_cast %291 : vector<1x8x128xf32> to vector<8x128xf32>
    %293 = vector.shape_cast %290 : vector<8x128xf32> to vector<1x8x128xf32>
    tpu.vector_store %arg17[%c0_136, %c0_137, %c0_138], %293 {strides = array<i32>} : memref<1x8x128xf32, #tpu.memory_space<vmem>>, vector<1x8x128xf32>,
    return
  }
  func.func @transform_0(%arg0: i32) -> (i32, i32, i32) {
    %c0_i32 = arith.constant 0 : i32
    %c0_i32_0 = arith.constant 0 : i32
    %c0_i32_1 = arith.constant 0 : i32
    return %arg0, %c0_i32, %c0_i32_0 : i32, i32, i32
  }
  func.func @transform_1(%arg0: i32) -> (i32, i32, i32) {
    %c0_i32 = arith.constant 0 : i32
    %c0_i32_0 = arith.constant 0 : i32
    %c0_i32_1 = arith.constant 0 : i32
    return %arg0, %c0_i32, %c0_i32_0 : i32, i32, i32
  }
  func.func @transform_2(%arg0: i32) -> (i32, i32) {
    %c0_i32 = arith.constant 0 : i32
    %c0_i32_0 = arith.constant 0 : i32
    %c0_i32_1 = arith.constant 0 : i32
    return %c0_i32, %c0_i32_0 : i32, i32
  }
  func.func @transform_3(%arg0: i32) -> (i32, i32) {
    %c0_i32 = arith.constant 0 : i32
    %c0_i32_0 = arith.constant 0 : i32
    %c0_i32_1 = arith.constant 0 : i32
    return %c0_i32, %c0_i32_0 : i32, i32
  }
  func.func @transform_4(%arg0: i32) -> (i32, i32) {
    %c0_i32 = arith.constant 0 : i32
    %c0_i32_0 = arith.constant 0 : i32
    %c0_i32_1 = arith.constant 0 : i32
    return %c0_i32, %c0_i32_0 : i32, i32
  }
  func.func @transform_5(%arg0: i32) -> (i32, i32) {
    %c0_i32 = arith.constant 0 : i32
    %c0_i32_0 = arith.constant 0 : i32
    %c0_i32_1 = arith.constant 0 : i32
    return %c0_i32, %c0_i32_0 : i32, i32
  }
  func.func @transform_6(%arg0: i32) -> (i32, i32) {
    %c0_i32 = arith.constant 0 : i32
    %c0_i32_0 = arith.constant 0 : i32
    %c0_i32_1 = arith.constant 0 : i32
    return %c0_i32, %c0_i32_0 : i32, i32
  }
  func.func @transform_7(%arg0: i32) -> (i32, i32) {
    %c0_i32 = arith.constant 0 : i32
    %c0_i32_0 = arith.constant 0 : i32
    %c0_i32_1 = arith.constant 0 : i32
    return %c0_i32, %c0_i32_0 : i32, i32
  }
  func.func @transform_8(%arg0: i32) -> (i32, i32) {
    %c0_i32 = arith.constant 0 : i32
    %c0_i32_0 = arith.constant 0 : i32
    %c0_i32_1 = arith.constant 0 : i32
    return %c0_i32, %c0_i32_0 : i32, i32
  }
  func.func @transform_9(%arg0: i32) -> (i32, i32) {
    %c0_i32 = arith.constant 0 : i32
    %c0_i32_0 = arith.constant 0 : i32
    %c0_i32_1 = arith.constant 0 : i32
    return %c0_i32, %c0_i32_0 : i32, i32
  }
  func.func @transform_10(%arg0: i32) -> (i32, i32) {
    %c0_i32 = arith.constant 0 : i32
    %c0_i32_0 = arith.constant 0 : i32
    %c0_i32_1 = arith.constant 0 : i32
    return %c0_i32, %c0_i32_0 : i32, i32
  }
  func.func @transform_11(%arg0: i32) -> (i32, i32) {
    %c0_i32 = arith.constant 0 : i32
    %c0_i32_0 = arith.constant 0 : i32
    %c0_i32_1 = arith.constant 0 : i32
    return %c0_i32, %c0_i32_0 : i32, i32
  }
  func.func @transform_12(%arg0: i32) -> (i32, i32) {
    %c0_i32 = arith.constant 0 : i32
    %c0_i32_0 = arith.constant 0 : i32
    %c0_i32_1 = arith.constant 0 : i32
    return %c0_i32, %c0_i32_0 : i32, i32
  }
  func.func @transform_13(%arg0: i32) -> (i32, i32) {
    %c0_i32 = arith.constant 0 : i32
    %c0_i32_0 = arith.constant 0 : i32
    %c0_i32_1 = arith.constant 0 : i32
    return %c0_i32, %c0_i32_0 : i32, i32
  }
  func.func @transform_14(%arg0: i32) -> (i32, i32) {
    %c0_i32 = arith.constant 0 : i32
    %c0_i32_0 = arith.constant 0 : i32
    %c0_i32_1 = arith.constant 0 : i32
    return %c0_i32, %c0_i32_0 : i32, i32
  }
  func.func @transform_15(%arg0: i32) -> (i32, i32) {
    %c0_i32 = arith.constant 0 : i32
    %c0_i32_0 = arith.constant 0 : i32
    %c0_i32_1 = arith.constant 0 : i32
    return %c0_i32, %c0_i32_0 : i32, i32
  }
  func.func @transform_16(%arg0: i32) -> (i32, i32, i32) {
    %c0_i32 = arith.constant 0 : i32
    %c0_i32_0 = arith.constant 0 : i32
    %c0_i32_1 = arith.constant 0 : i32
    return %arg0, %c0_i32, %c0_i32_0 : i32, i32, i32
  }
}

</mosaic_0001>

<llo_original>
// kernel: transformer_forward.1
$region0: #{transformer_forward.1}
  #allocation0 [shape = 'u32[]', space=smem, size = 0x4, offset = 0x4, fixed_abs, tag = 'smem constant byte address 0x4 - core index']
  #allocation1 [shape = 'u32[144,128]{1,0:T(1,128)}', space=vmem, size = 0x12000, scoped, tag = 'internal scratch']
  %s0 = inlined_call_operand.vmem [shape: f32[2,8,128], index: 0, kind: input, shape index: {}]
  %s1 = inlined_call_operand.vmem [shape: f32[2,8,128], index: 1, kind: input, shape index: {}]
  %s2 = inlined_call_operand.vmem [shape: bf16[128,512], index: 2, kind: input, shape index: {}]
  %s3 = inlined_call_operand.hbm [shape: f32[8,128], index: 3, kind: input, shape index: {}]
  %s4 = inlined_call_operand.vmem [shape: bf16[128,128], index: 4, kind: input, shape index: {}]
  %s5 = inlined_call_operand.vmem [shape: bf16[128,128], index: 5, kind: input, shape index: {}]
  %s6 = inlined_call_operand.hbm [shape: f32[8,128], index: 6, kind: input, shape index: {}]
  %s7 = inlined_call_operand.hbm [shape: bf16[128,512], index: 7, kind: input, shape index: {}]
  %s8 = inlined_call_operand.hbm [shape: f32[8,128], index: 8, kind: input, shape index: {}]
  %s9 = inlined_call_operand.hbm [shape: bf16[128,512], index: 9, kind: input, shape index: {}]
  %s10 = inlined_call_operand.hbm [shape: f32[8,128], index: 10, kind: input, shape index: {}]
  %s11 = inlined_call_operand.hbm [shape: bf16[128,128], index: 11, kind: input, shape index: {}]
  %s12 = inlined_call_operand.hbm [shape: bf16[128,128], index: 12, kind: input, shape index: {}]
  %s13 = inlined_call_operand.hbm [shape: f32[8,128], index: 13, kind: input, shape index: {}]
  %s14 = inlined_call_operand.vmem [shape: bf16[128,128], index: 14, kind: input, shape index: {}]
  %s15 = inlined_call_operand.vmem [shape: f32[1,128], index: 15, kind: input, shape index: {}]
  %s16 = inlined_call_operand.hbm [shape: f32[2,8,128], index: 16, kind: output, shape index: {}]
  %s17 = sld [smem:[#allocation0]]
  $region133: #{transformer_forward.1} parent=0
    _
  %s19 = ssub.s32 1, %s17
  %s20 = scalar_select 0, %s19, %s17
  $region1: #{transformer_forward.1} parent=0
    #allocation2 [shape = 'u8[4096]{0}', space=vmem, size = 0x1000, scoped, tag = 'input window, operand 3, single buffered']
    #allocation3 [shape = 's32[2]{0}', space=sflag, size = 0x8, scoped, tag = 'scoped memory for transformer_forward.1']
    #allocation4 [shape = 's32[2]{0}', space=sflag, size = 0x8, scoped, tag = 'scoped memory for transformer_forward.1']
    #allocation5 [shape = 'u8[4096]{0}', space=vmem, size = 0x1000, scoped, tag = 'input window, operand 6, single buffered']
    #allocation6 [shape = 's32[1]{0}', space=sflag, size = 0x4, scoped, tag = 'scoped memory for transformer_forward.1']
    #allocation7 [shape = 'u8[131072]{0}', space=vmem, size = 0x20000, scoped, tag = 'input window, operand 7, single buffered']
    #allocation8 [shape = 'u8[4096]{0}', space=vmem, size = 0x1000, scoped, tag = 'input window, operand 8, single buffered']
    #allocation9 [shape = 's32[1]{0}', space=sflag, size = 0x4, scoped, tag = 'scoped memory for transformer_forward.1']
    #allocation10 [shape = 'u8[131072]{0}', space=vmem, size = 0x20000, scoped, tag = 'input window, operand 9, single buffered']
    #allocation11 [shape = 'u8[4096]{0}', space=vmem, size = 0x1000, scoped, tag = 'input window, operand 10, single buffered']
    #allocation12 [shape = 's32[1]{0}', space=sflag, size = 0x4, scoped, tag = 'scoped memory for transformer_forward.1']
    #allocation13 [shape = 'u8[32768]{0}', space=vmem, size = 0x8000, scoped, tag = 'input window, operand 11, single buffered']
    #allocation14 [shape = 'u8[32768]{0}', space=vmem, size = 0x8000, scoped, tag = 'input window, operand 12, single buffered']
    #allocation15 [shape = 's32[1]{0}', space=sflag, size = 0x4, scoped, tag = 'scoped memory for transformer_forward.1']
    #allocation16 [shape = 'u8[4096]{0}', space=vmem, size = 0x1000, scoped, tag = 'input window, operand 13, single buffered']
    #allocation17 [shape = 'u8[8192]{0}', space=vmem, size = 0x2000, scoped, tag = 'output window, operand 0']
    %21 = vsyncpa [#allocation3], 0
    %22 = vsyncpa [#allocation6], 0
    %23 = vsyncpa [#allocation9], 0
    %24 = vsyncpa [#allocation12], 0
    %25 = vsyncpa [#allocation15], 0
    %26 = vsyncpa [#allocation4], 0
    %s27 = scalar_lea.sflag [#allocation4], 1
    %28 = vsyncpa %s27, 0
    loop: start=0, step=1, limit=4
    $region2: #{transformer_forward.1} parent=1 // loop_pre_header
      _
    $region3: #{transformer_forward.1} parent=1 // loop_header
      %s30 = sphi 0, %s34
      %p31 = scmp.ge.s32.totalorder %s30, 4
      %s40 = sphi 0, %s42
      %s43 = sphi 0, %s40
      %s44 = sphi 0, %s43
      %s60 = sphi 0, %s44
      %s66 = sphi 0, %s68
      %s69 = sphi 0, %s66
      %s70 = sphi 0, %s69
      %s86 = sphi 0, %s70
      %s90 = sphi 0, %s90
      %s92 = sphi 0, %s90
      %s93 = sphi 0, %s92
      %s107 = sphi 0, %s93
      %s111 = sphi 0, %s111
      %s113 = sphi 0, %s111
      %s114 = sphi 0, %s113
      %s128 = sphi 0, %s114
      %s132 = sphi 0, %s132
      %s134 = sphi 0, %s132
      %s135 = sphi 0, %s134
      %s149 = sphi 0, %s135
      %s153 = sphi 0, %s153
      %s155 = sphi 0, %s153
      %s156 = sphi 0, %s155
      %s170 = sphi 0, %s156
      %s174 = sphi 0, %s174
      %s176 = sphi 0, %s174
      %s177 = sphi 0, %s176
      %s191 = sphi 0, %s177
      %s195 = sphi 0, %s195
      %s197 = sphi 0, %s195
      %s198 = sphi 0, %s197
      %s212 = sphi 0, %s198
      %s216 = sphi 0, %s216
      %s218 = sphi 0, %s216
      %s219 = sphi 0, %s218
      %s233 = sphi 0, %s219
      %s237 = sphi 0, %s237
      %s239 = sphi 0, %s237
      %s240 = sphi 0, %s239
      %s254 = sphi 0, %s240
      %s258 = sphi 0, %s258
      %s260 = sphi 0, %s258
      %s261 = sphi 0, %s260
      %s275 = sphi 0, %s261
      %s279 = sphi 0, %s279
      %s281 = sphi 0, %s279
      %s282 = sphi 0, %s281
      %s296 = sphi 0, %s282
      %s300 = sphi 0, %s300
      %s302 = sphi 0, %s300
      %s303 = sphi 0, %s302
      %s317 = sphi 0, %s303
      %s321 = sphi 0, %s321
      %s323 = sphi 0, %s321
      %s324 = sphi 0, %s323
      %s338 = sphi 0, %s324
      %s342 = sphi 0, %s342
      %s344 = sphi 0, %s342
      %s345 = sphi 0, %s344
      %s359 = sphi 0, %s345
      %s363 = sphi 0, %s363
      %s365 = sphi 0, %s363
      %s366 = sphi 0, %s365
      %s380 = sphi 0, %s366
      %s386 = sphi 0, %s388
      %s389 = sphi 0, %s386
      %s390 = sphi 0, %s389
      %s406 = sphi 0, %s390
    $region4: #{transformer_forward.1} parent=1 // loop_header_branch
      %33 = sbr.rel (%p31) target = $region8
    $region5: #{transformer_forward.1} parent=1 // loop_body
      %s35 = ssub.s32 %s30, 1
      %s36 = ssub.s32 %s30, 2
      %s37 = sadd.s32 %s30, 1
      %s38 = ssub.s32 %s30, %s37
      %p39 = scmp.eq.s32.totalorder %s38, 0
      %s41 = sadd.s32 %s40, 1
      %s42 = scalar_select %p39, %s40, %s41
      %p45 = pneg %p39
      %p46 = scmp.eq.s32.totalorder %s30, 1
      %p47 = por %p45, %p46
      %p48 = scmp.ne.s32.totalorder %s40, %s43
      %p49 = scmp.eq.s32.totalorder %s30, 0
      %p50 = por %p48, %p49
      %p51 = scmp.ne.s32.totalorder %s40, %s43
      %p52 = scmp.eq.s32.totalorder %s35, 1
      %p53 = por %p51, %p52
      %p54 = scmp.ne.s32.totalorder %s43, %s44
      %p55 = scmp.eq.s32.totalorder %s35, 0
      %p56 = por %p54, %p55
      %p57 = scmp.ne.s32.totalorder %s43, %s44
      %p58 = scmp.eq.s32.totalorder %s36, 1
      %p59 = por %p57, %p58
      %p61 = scmp.ne.s32.totalorder %s44, %s60
      %p62 = scmp.eq.s32.totalorder %s36, 0
      %p63 = por %p61, %p62
      %s64 = ssub.s32 %s30, %s37
      %p65 = scmp.eq.s32.totalorder %s64, 0
      %s67 = sadd.s32 %s66, 1
      %s68 = scalar_select %p65, %s66, %s67
      %p71 = pneg %p65
      %p72 = scmp.eq.s32.totalorder %s30, 1
      %p73 = por %p71, %p72
      %p74 = scmp.ne.s32.totalorder %s66, %s69
      %p75 = scmp.eq.s32.totalorder %s30, 0
      %p76 = por %p74, %p75
      %p77 = scmp.ne.s32.totalorder %s66, %s69
      %p78 = scmp.eq.s32.totalorder %s35, 1
      %p79 = por %p77, %p78
      %p80 = scmp.ne.s32.totalorder %s69, %s70
      %p81 = scmp.eq.s32.totalorder %s35, 0
      %p82 = por %p80, %p81
      %p83 = scmp.ne.s32.totalorder %s69, %s70
      %p84 = scmp.eq.s32.totalorder %s36, 1
      %p85 = por %p83, %p84
      %p87 = scmp.ne.s32.totalorder %s70, %s86
      %p88 = scmp.eq.s32.totalorder %s36, 0
      %p89 = por %p87, %p88
      %s91 = sadd.s32 %s90, 1
      %p94 = scmp.eq.s32.totalorder %s30, 1
      %p95 = scmp.ne.s32.totalorder %s90, %s92
      %p96 = scmp.eq.s32.totalorder %s30, 0
      %p97 = por %p95, %p96
      %p98 = scmp.ne.s32.totalorder %s90, %s92
      %p99 = scmp.eq.s32.totalorder %s35, 1
      %p100 = por %p98, %p99
      %p101 = scmp.ne.s32.totalorder %s92, %s93
      %p102 = scmp.eq.s32.totalorder %s35, 0
      %p103 = por %p101, %p102
      %p104 = scmp.ne.s32.totalorder %s92, %s93
      %p105 = scmp.eq.s32.totalorder %s36, 1
      %p106 = por %p104, %p105
      %p108 = scmp.ne.s32.totalorder %s93, %s107
      %p109 = scmp.eq.s32.totalorder %s36, 0
      %p110 = por %p108, %p109
      %s112 = sadd.s32 %s111, 1
      %p115 = scmp.eq.s32.totalorder %s30, 1
      %p116 = scmp.ne.s32.totalorder %s111, %s113
      %p117 = scmp.eq.s32.totalorder %s30, 0
      %p118 = por %p116, %p117
      %p119 = scmp.ne.s32.totalorder %s111, %s113
      %p120 = scmp.eq.s32.totalorder %s35, 1
      %p121 = por %p119, %p120
      %p122 = scmp.ne.s32.totalorder %s113, %s114
      %p123 = scmp.eq.s32.totalorder %s35, 0
      %p124 = por %p122, %p123
      %p125 = scmp.ne.s32.totalorder %s113, %s114
      %p126 = scmp.eq.s32.totalorder %s36, 1
      %p127 = por %p125, %p126
      %p129 = scmp.ne.s32.totalorder %s114, %s128
      %p130 = scmp.eq.s32.totalorder %s36, 0
      %p131 = por %p129, %p130
      %s133 = sadd.s32 %s132, 1
      %p136 = scmp.eq.s32.totalorder %s30, 1
      %p137 = scmp.ne.s32.totalorder %s132, %s134
      %p138 = scmp.eq.s32.totalorder %s30, 0
      %p139 = por %p137, %p138
      %p140 = scmp.ne.s32.totalorder %s132, %s134
      %p141 = scmp.eq.s32.totalorder %s35, 1
      %p142 = por %p140, %p141
      %p143 = scmp.ne.s32.totalorder %s134, %s135
      %p144 = scmp.eq.s32.totalorder %s35, 0
      %p145 = por %p143, %p144
      %p146 = scmp.ne.s32.totalorder %s134, %s135
      %p147 = scmp.eq.s32.totalorder %s36, 1
      %p148 = por %p146, %p147
      %p150 = scmp.ne.s32.totalorder %s135, %s149
      %p151 = scmp.eq.s32.totalorder %s36, 0
      %p152 = por %p150, %p151
      %s154 = sadd.s32 %s153, 1
      %p157 = scmp.eq.s32.totalorder %s30, 1
      %p158 = scmp.ne.s32.totalorder %s153, %s155
      %p159 = scmp.eq.s32.totalorder %s30, 0
      %p160 = por %p158, %p159
      %p161 = scmp.ne.s32.totalorder %s153, %s155
      %p162 = scmp.eq.s32.totalorder %s35, 1
      %p163 = por %p161, %p162
      %p164 = scmp.ne.s32.totalorder %s155, %s156
      %p165 = scmp.eq.s32.totalorder %s35, 0
      %p166 = por %p164, %p165
      %p167 = scmp.ne.s32.totalorder %s155, %s156
      %p168 = scmp.eq.s32.totalorder %s36, 1
      %p169 = por %p167, %p168
      %p171 = scmp.ne.s32.totalorder %s156, %s170
      %p172 = scmp.eq.s32.totalorder %s36, 0
      %p173 = por %p171, %p172
      %s175 = sadd.s32 %s174, 1
      %p178 = scmp.eq.s32.totalorder %s30, 1
      %p179 = scmp.ne.s32.totalorder %s174, %s176
      %p180 = scmp.eq.s32.totalorder %s30, 0
      %p181 = por %p179, %p180
      %p182 = scmp.ne.s32.totalorder %s174, %s176
      %p183 = scmp.eq.s32.totalorder %s35, 1
      %p184 = por %p182, %p183
      %p185 = scmp.ne.s32.totalorder %s176, %s177
      %p186 = scmp.eq.s32.totalorder %s35, 0
      %p187 = por %p185, %p186
      %p188 = scmp.ne.s32.totalorder %s176, %s177
      %p189 = scmp.eq.s32.totalorder %s36, 1
      %p190 = por %p188, %p189
      %p192 = scmp.ne.s32.totalorder %s177, %s191
      %p193 = scmp.eq.s32.totalorder %s36, 0
      %p194 = por %p192, %p193
      %s196 = sadd.s32 %s195, 1
      %p199 = scmp.eq.s32.totalorder %s30, 1
      %p200 = scmp.ne.s32.totalorder %s195, %s197
      %p201 = scmp.eq.s32.totalorder %s30, 0
      %p202 = por %p200, %p201
      %p203 = scmp.ne.s32.totalorder %s195, %s197
      %p204 = scmp.eq.s32.totalorder %s35, 1
      %p205 = por %p203, %p204
      %p206 = scmp.ne.s32.totalorder %s197, %s198
      %p207 = scmp.eq.s32.totalorder %s35, 0
      %p208 = por %p206, %p207
      %p209 = scmp.ne.s32.totalorder %s197, %s198
      %p210 = scmp.eq.s32.totalorder %s36, 1
      %p211 = por %p209, %p210
      %p213 = scmp.ne.s32.totalorder %s198, %s212
      %p214 = scmp.eq.s32.totalorder %s36, 0
      %p215 = por %p213, %p214
      %s217 = sadd.s32 %s216, 1
      %p220 = scmp.eq.s32.totalorder %s30, 1
      %p221 = scmp.ne.s32.totalorder %s216, %s218
      %p222 = scmp.eq.s32.totalorder %s30, 0
      %p223 = por %p221, %p222
      %p224 = scmp.ne.s32.totalorder %s216, %s218
      %p225 = scmp.eq.s32.totalorder %s35, 1
      %p226 = por %p224, %p225
      %p227 = scmp.ne.s32.totalorder %s218, %s219
      %p228 = scmp.eq.s32.totalorder %s35, 0
      %p229 = por %p227, %p228
      %p230 = scmp.ne.s32.totalorder %s218, %s219
      %p231 = scmp.eq.s32.totalorder %s36, 1
      %p232 = por %p230, %p231
      %p234 = scmp.ne.s32.totalorder %s219, %s233
      %p235 = scmp.eq.s32.totalorder %s36, 0
      %p236 = por %p234, %p235
      %s238 = sadd.s32 %s237, 1
      %p241 = scmp.eq.s32.totalorder %s30, 1
      %p242 = scmp.ne.s32.totalorder %s237, %s239
      %p243 = scmp.eq.s32.totalorder %s30, 0
      %p244 = por %p242, %p243
      %p245 = scmp.ne.s32.totalorder %s237, %s239
      %p246 = scmp.eq.s32.totalorder %s35, 1
      %p247 = por %p245, %p246
      %p248 = scmp.ne.s32.totalorder %s239, %s240
      %p249 = scmp.eq.s32.totalorder %s35, 0
      %p250 = por %p248, %p249
      %p251 = scmp.ne.s32.totalorder %s239, %s240
      %p252 = scmp.eq.s32.totalorder %s36, 1
      %p253 = por %p251, %p252
      %p255 = scmp.ne.s32.totalorder %s240, %s254
      %p256 = scmp.eq.s32.totalorder %s36, 0
      %p257 = por %p255, %p256
      %s259 = sadd.s32 %s258, 1
      %p262 = scmp.eq.s32.totalorder %s30, 1
      %p263 = scmp.ne.s32.totalorder %s258, %s260
      %p264 = scmp.eq.s32.totalorder %s30, 0
      %p265 = por %p263, %p264
      %p266 = scmp.ne.s32.totalorder %s258, %s260
      %p267 = scmp.eq.s32.totalorder %s35, 1
      %p268 = por %p266, %p267
      %p269 = scmp.ne.s32.totalorder %s260, %s261
      %p270 = scmp.eq.s32.totalorder %s35, 0
      %p271 = por %p269, %p270
      %p272 = scmp.ne.s32.totalorder %s260, %s261
      %p273 = scmp.eq.s32.totalorder %s36, 1
      %p274 = por %p272, %p273
      %p276 = scmp.ne.s32.totalorder %s261, %s275
      %p277 = scmp.eq.s32.totalorder %s36, 0
      %p278 = por %p276, %p277
      %s280 = sadd.s32 %s279, 1
      %p283 = scmp.eq.s32.totalorder %s30, 1
      %p284 = scmp.ne.s32.totalorder %s279, %s281
      %p285 = scmp.eq.s32.totalorder %s30, 0
      %p286 = por %p284, %p285
      %p287 = scmp.ne.s32.totalorder %s279, %s281
      %p288 = scmp.eq.s32.totalorder %s35, 1
      %p289 = por %p287, %p288
      %p290 = scmp.ne.s32.totalorder %s281, %s282
      %p291 = scmp.eq.s32.totalorder %s35, 0
      %p292 = por %p290, %p291
      %p293 = scmp.ne.s32.totalorder %s281, %s282
      %p294 = scmp.eq.s32.totalorder %s36, 1
      %p295 = por %p293, %p294
      %p297 = scmp.ne.s32.totalorder %s282, %s296
      %p298 = scmp.eq.s32.totalorder %s36, 0
      %p299 = por %p297, %p298
      %s301 = sadd.s32 %s300, 1
      %p304 = scmp.eq.s32.totalorder %s30, 1
      %p305 = scmp.ne.s32.totalorder %s300, %s302
      %p306 = scmp.eq.s32.totalorder %s30, 0
      %p307 = por %p305, %p306
      %p308 = scmp.ne.s32.totalorder %s300, %s302
      %p309 = scmp.eq.s32.totalorder %s35, 1
      %p310 = por %p308, %p309
      %p311 = scmp.ne.s32.totalorder %s302, %s303
      %p312 = scmp.eq.s32.totalorder %s35, 0
      %p313 = por %p311, %p312
      %p314 = scmp.ne.s32.totalorder %s302, %s303
      %p315 = scmp.eq.s32.totalorder %s36, 1
      %p316 = por %p314, %p315
      %p318 = scmp.ne.s32.totalorder %s303, %s317
      %p319 = scmp.eq.s32.totalorder %s36, 0
      %p320 = por %p318, %p319
      %s322 = sadd.s32 %s321, 1
      %p325 = scmp.eq.s32.totalorder %s30, 1
      %p326 = scmp.ne.s32.totalorder %s321, %s323
      %p327 = scmp.eq.s32.totalorder %s30, 0
      %p328 = por %p326, %p327
      %p329 = scmp.ne.s32.totalorder %s321, %s323
      %p330 = scmp.eq.s32.totalorder %s35, 1
      %p331 = por %p329, %p330
      %p332 = scmp.ne.s32.totalorder %s323, %s324
      %p333 = scmp.eq.s32.totalorder %s35, 0
      %p334 = por %p332, %p333
      %p335 = scmp.ne.s32.totalorder %s323, %s324
      %p336 = scmp.eq.s32.totalorder %s36, 1
      %p337 = por %p335, %p336
      %p339 = scmp.ne.s32.totalorder %s324, %s338
      %p340 = scmp.eq.s32.totalorder %s36, 0
      %p341 = por %p339, %p340
      %s343 = sadd.s32 %s342, 1
      %p346 = scmp.eq.s32.totalorder %s30, 1
      %p347 = scmp.ne.s32.totalorder %s342, %s344
      %p348 = scmp.eq.s32.totalorder %s30, 0
      %p349 = por %p347, %p348
      %p350 = scmp.ne.s32.totalorder %s342, %s344
      %p351 = scmp.eq.s32.totalorder %s35, 1
      %p352 = por %p350, %p351
      %p353 = scmp.ne.s32.totalorder %s344, %s345
      %p354 = scmp.eq.s32.totalorder %s35, 0
      %p355 = por %p353, %p354
      %p356 = scmp.ne.s32.totalorder %s344, %s345
      %p357 = scmp.eq.s32.totalorder %s36, 1
      %p358 = por %p356, %p357
      %p360 = scmp.ne.s32.totalorder %s345, %s359
      %p361 = scmp.eq.s32.totalorder %s36, 0
      %p362 = por %p360, %p361
      %s364 = sadd.s32 %s363, 1
      %p367 = scmp.eq.s32.totalorder %s30, 1
      %p368 = scmp.ne.s32.totalorder %s363, %s365
      %p369 = scmp.eq.s32.totalorder %s30, 0
      %p370 = por %p368, %p369
      %p371 = scmp.ne.s32.totalorder %s363, %s365
      %p372 = scmp.eq.s32.totalorder %s35, 1
      %p373 = por %p371, %p372
      %p374 = scmp.ne.s32.totalorder %s365, %s366
      %p375 = scmp.eq.s32.totalorder %s35, 0
      %p376 = por %p374, %p375
      %p377 = scmp.ne.s32.totalorder %s365, %s366
      %p378 = scmp.eq.s32.totalorder %s36, 1
      %p379 = por %p377, %p378
      %p381 = scmp.ne.s32.totalorder %s366, %s380
      %p382 = scmp.eq.s32.totalorder %s36, 0
      %p383 = por %p381, %p382
      %s384 = ssub.s32 %s30, %s37
      %p385 = scmp.eq.s32.totalorder %s384, 0
      %s387 = sadd.s32 %s386, 1
      %s388 = scalar_select %p385, %s386, %s387
      %p391 = pneg %p385
      %p392 = scmp.eq.s32.totalorder %s30, 1
      %p393 = por %p391, %p392
      %p394 = scmp.ne.s32.totalorder %s386, %s389
      %p395 = scmp.eq.s32.totalorder %s30, 0
      %p396 = por %p394, %p395
      %p397 = scmp.ne.s32.totalorder %s386, %s389
      %p398 = scmp.eq.s32.totalorder %s35, 1
      %p399 = por %p397, %p398
      %p400 = scmp.ne.s32.totalorder %s389, %s390
      %p401 = scmp.eq.s32.totalorder %s35, 0
      %p402 = por %p400, %p401
      %p403 = scmp.ne.s32.totalorder %s389, %s390
      %p404 = scmp.eq.s32.totalorder %s36, 1
      %p405 = por %p403, %p404
      %p407 = scmp.ne.s32.totalorder %s390, %s406
      %p408 = scmp.eq.s32.totalorder %s36, 0
      %p409 = por %p407, %p408
      %p410 = scmp.le.s32.totalorder 1, %s30
      %p411 = scmp.lt.s32.totalorder %s30, 3
      %p412 = pnand %p410, %p411
      %p413 = pneg %p412
      // Predicated region
      $region9: #{transformer_forward.1} parent=5 // pred_check
        _
      $region10: #{transformer_forward.1} parent=5 // pred_check_branch
        %415 = sbr.rel (%p412) target = $region12
      $region11: #{transformer_forward.1} parent=5 // pred_region
        %s416 = ssub.s32 %s30, 1
        // Predicated region
        $region13: #{transformer_forward.1} parent=11 // pred_check
          %p417 = pneg %p103
        $region14: #{transformer_forward.1} parent=11 // pred_check_branch
          %419 = sbr.rel (%p417) target = $region16
        $region15: #{transformer_forward.1} parent=11 // pred_region
          _
        $region16: #{transformer_forward.1} parent=11 // pred_fallthru
          _
        // Predicated region
        $region17: #{transformer_forward.1} parent=11 // pred_check
          %p420 = pneg %p124
        $region18: #{transformer_forward.1} parent=11 // pred_check_branch
          %422 = sbr.rel (%p420) target = $region20
        $region19: #{transformer_forward.1} parent=11 // pred_region
          %s424 = ssub.s32 128, 128
          %425 = vsyncadd [#allocation3], %s424
          %s427 = sshll.u32 [#allocation2], 4
          %s428 = int_to_ptr.vmem [resolvable:$true] %s427
          %430 = dma.hbm_to_vmem [thread:$0]  %s3, 128, %s428, [#allocation3]
        $region20: #{transformer_forward.1} parent=11 // pred_fallthru
          _
        // Predicated region
        $region21: #{transformer_forward.1} parent=11 // pred_check
          %p431 = pneg %p145
        $region22: #{transformer_forward.1} parent=11 // pred_check_branch
          %433 = sbr.rel (%p431) target = $region24
        $region23: #{transformer_forward.1} parent=11 // pred_region
          _
        $region24: #{transformer_forward.1} parent=11 // pred_fallthru
          _
        // Predicated region
        $region25: #{transformer_forward.1} parent=11 // pred_check
          %p434 = pneg %p166
        $region26: #{transformer_forward.1} parent=11 // pred_check_branch
          %436 = sbr.rel (%p434) target = $region28
        $region27: #{transformer_forward.1} parent=11 // pred_region
          _
        $region28: #{transformer_forward.1} parent=11 // pred_fallthru
          _
        // Predicated region
        $region29: #{transformer_forward.1} parent=11 // pred_check
          %p437 = pneg %p187
        $region30: #{transformer_forward.1} parent=11 // pred_check_branch
          %439 = sbr.rel (%p437) target = $region32
        $region31: #{transformer_forward.1} parent=11 // pred_region
          %s441 = ssub.s32 128, 128
          %442 = vsyncadd [#allocation6], %s441
          %s444 = sshll.u32 [#allocation5], 4
          %s445 = int_to_ptr.vmem [resolvable:$true] %s444
          %447 = dma.hbm_to_vmem [thread:$0]  %s6, 128, %s445, [#allocation6]
        $region32: #{transformer_forward.1} parent=11 // pred_fallthru
          _
        // Predicated region
        $region33: #{transformer_forward.1} parent=11 // pred_check
          %p448 = pneg %p208
        $region34: #{transformer_forward.1} parent=11 // pred_check_branch
          %450 = sbr.rel (%p448) target = $region36
        $region35: #{transformer_forward.1} parent=11 // pred_region
          %s452 = ssub.s32 4096, 4096
          %453 = vsyncadd [#allocation6], %s452
          %s454 = sshll.u32 [#allocation7], 4
          %s455 = int_to_ptr.vmem [resolvable:$true] %s454
          %460 = dma.hbm_to_vmem [thread:$0]  %s7, 4096, %s455, [#allocation6], 256, 256, 16
        $region36: #{transformer_forward.1} parent=11 // pred_fallthru
          _
        // Predicated region
        $region37: #{transformer_forward.1} parent=11 // pred_check
          %p461 = pneg %p229
        $region38: #{transformer_forward.1} parent=11 // pred_check_branch
          %463 = sbr.rel (%p461) target = $region40
        $region39: #{transformer_forward.1} parent=11 // pred_region
          %s465 = ssub.s32 128, 128
          %466 = vsyncadd [#allocation9], %s465
          %s468 = sshll.u32 [#allocation8], 4
          %s469 = int_to_ptr.vmem [resolvable:$true] %s468
          %471 = dma.hbm_to_vmem [thread:$0]  %s8, 128, %s469, [#allocation9]
        $region40: #{transformer_forward.1} parent=11 // pred_fallthru
          _
        // Predicated region
        $region41: #{transformer_forward.1} parent=11 // pred_check
          %p472 = pneg %p250
        $region42: #{transformer_forward.1} parent=11 // pred_check_branch
          %474 = sbr.rel (%p472) target = $region44
        $region43: #{transformer_forward.1} parent=11 // pred_region
          %s476 = ssub.s32 4096, 4096
          %477 = vsyncadd [#allocation9], %s476
          %s478 = sshll.u32 [#allocation10], 4
          %s479 = int_to_ptr.vmem [resolvable:$true] %s478
          %484 = dma.hbm_to_vmem [thread:$0]  %s9, 4096, %s479, [#allocation9], 256, 256, 16
        $region44: #{transformer_forward.1} parent=11 // pred_fallthru
          _
        // Predicated region
        $region45: #{transformer_forward.1} parent=11 // pred_check
          %p485 = pneg %p271
        $region46: #{transformer_forward.1} parent=11 // pred_check_branch
          %487 = sbr.rel (%p485) target = $region48
        $region47: #{transformer_forward.1} parent=11 // pred_region
          %s489 = ssub.s32 128, 128
          %490 = vsyncadd [#allocation12], %s489
          %s492 = sshll.u32 [#allocation11], 4
          %s493 = int_to_ptr.vmem [resolvable:$true] %s492
          %495 = dma.hbm_to_vmem [thread:$0]  %s10, 128, %s493, [#allocation12]
        $region48: #{transformer_forward.1} parent=11 // pred_fallthru
          _
        // Predicated region
        $region49: #{transformer_forward.1} parent=11 // pred_check
          %p496 = pneg %p292
        $region50: #{transformer_forward.1} parent=11 // pred_check_branch
          %498 = sbr.rel (%p496) target = $region52
        $region51: #{transformer_forward.1} parent=11 // pred_region
          %s500 = ssub.s32 1024, 1024
          %501 = vsyncadd [#allocation12], %s500
          %s502 = sshll.u32 [#allocation13], 4
          %s503 = int_to_ptr.vmem [resolvable:$true] %s502
          %508 = dma.hbm_to_vmem [thread:$0]  %s11, 1024, %s503, [#allocation12], 64, 64, 4
        $region52: #{transformer_forward.1} parent=11 // pred_fallthru
          _
        // Predicated region
        $region53: #{transformer_forward.1} parent=11 // pred_check
          %p509 = pneg %p313
        $region54: #{transformer_forward.1} parent=11 // pred_check_branch
          %511 = sbr.rel (%p509) target = $region56
        $region55: #{transformer_forward.1} parent=11 // pred_region
          %s513 = ssub.s32 1024, 1024
          %514 = vsyncadd [#allocation15], %s513
          %s515 = sshll.u32 [#allocation14], 4
          %s516 = int_to_ptr.vmem [resolvable:$true] %s515
          %521 = dma.hbm_to_vmem [thread:$0]  %s12, 1024, %s516, [#allocation15], 64, 64, 4
        $region56: #{transformer_forward.1} parent=11 // pred_fallthru
          _
        // Predicated region
        $region57: #{transformer_forward.1} parent=11 // pred_check
          %p522 = pneg %p334
        $region58: #{transformer_forward.1} parent=11 // pred_check_branch
          %524 = sbr.rel (%p522) target = $region60
        $region59: #{transformer_forward.1} parent=11 // pred_region
          %s526 = ssub.s32 128, 128
          %527 = vsyncadd [#allocation15], %s526
          %s529 = sshll.u32 [#allocation16], 4
          %s530 = int_to_ptr.vmem [resolvable:$true] %s529
          %532 = dma.hbm_to_vmem [thread:$0]  %s13, 128, %s530, [#allocation15]
        $region60: #{transformer_forward.1} parent=11 // pred_fallthru
          _
        // Predicated region
        $region61: #{transformer_forward.1} parent=11 // pred_check
          %p533 = pneg %p355
        $region62: #{transformer_forward.1} parent=11 // pred_check_branch
          %535 = sbr.rel (%p533) target = $region64
        $region63: #{transformer_forward.1} parent=11 // pred_region
          _
        $region64: #{transformer_forward.1} parent=11 // pred_fallthru
          _
        // Predicated region
        $region65: #{transformer_forward.1} parent=11 // pred_check
          %p536 = pneg %p376
        $region66: #{transformer_forward.1} parent=11 // pred_check_branch
          %538 = sbr.rel (%p536) target = $region68
        $region67: #{transformer_forward.1} parent=11 // pred_region
          _
        $region68: #{transformer_forward.1} parent=11 // pred_fallthru
          _
      $region12: #{transformer_forward.1} parent=5 // pred_fallthru
        _
      %p539 = scmp.lt.s32.totalorder %s30, 2
      // Predicated region
      $region69: #{transformer_forward.1} parent=5 // pred_check
        %p540 = pneg %p539
      $region70: #{transformer_forward.1} parent=5 // pred_check_branch
        %542 = sbr.rel (%p540) target = $region72
      $region71: #{transformer_forward.1} parent=5 // pred_region
        // Predicated region
        $region73: #{transformer_forward.1} parent=71 // pred_check
          %p543 = pneg %p50
        $region74: #{transformer_forward.1} parent=71 // pred_check_branch
          %545 = sbr.rel (%p543) target = $region76
        $region75: #{transformer_forward.1} parent=71 // pred_region
          %p546 = scmp.lt.s32.totalorder %s30, 1
          %s547 = scalar_select %p546, %s30, 1
          %s548 = smul.addr %s547, 8
          %s549 = scalar_lea.vmem %s0, %s548
        $region76: #{transformer_forward.1} parent=71 // pred_fallthru
          _
        // Predicated region
        $region77: #{transformer_forward.1} parent=71 // pred_check
          %p550 = pneg %p76
        $region78: #{transformer_forward.1} parent=71 // pred_check_branch
          %552 = sbr.rel (%p550) target = $region80
        $region79: #{transformer_forward.1} parent=71 // pred_region
          %p553 = scmp.lt.s32.totalorder %s30, 1
          %s554 = scalar_select %p553, %s30, 1
          %s555 = smul.addr %s554, 8
          %s556 = scalar_lea.vmem %s1, %s555
        $region80: #{transformer_forward.1} parent=71 // pred_fallthru
          _
      $region72: #{transformer_forward.1} parent=5 // pred_fallthru
        _
      %p557 = scmp.le.s32.totalorder 1, %s30
      %p558 = scmp.lt.s32.totalorder %s30, 3
      %p559 = pnand %p557, %p558
      %p560 = pneg %p559
      // Predicated region
      $region81: #{transformer_forward.1} parent=5 // pred_check
        _
      $region82: #{transformer_forward.1} parent=5 // pred_check_branch
        %562 = sbr.rel (%p559) target = $region84
      $region83: #{transformer_forward.1} parent=5 // pred_region
        %s563 = ssub.s32 %s30, 1
        // Predicated region
        $region85: #{transformer_forward.1} parent=83 // pred_check
          %p564 = pneg %p124
        $region86: #{transformer_forward.1} parent=83 // pred_check_branch
          %566 = sbr.rel (%p564) target = $region88
        $region87: #{transformer_forward.1} parent=83 // pred_region
          %567 = dma.done [#allocation3], 128
        $region88: #{transformer_forward.1} parent=83 // pred_fallthru
          _
        // Predicated region
        $region89: #{transformer_forward.1} parent=83 // pred_check
          %p568 = pneg %p187
        $region90: #{transformer_forward.1} parent=83 // pred_check_branch
          %570 = sbr.rel (%p568) target = $region92
        $region91: #{transformer_forward.1} parent=83 // pred_region
          %571 = dma.done [#allocation6], 128
        $region92: #{transformer_forward.1} parent=83 // pred_fallthru
          _
        // Predicated region
        $region93: #{transformer_forward.1} parent=83 // pred_check
          %p572 = pneg %p208
        $region94: #{transformer_forward.1} parent=83 // pred_check_branch
          %574 = sbr.rel (%p572) target = $region96
        $region95: #{transformer_forward.1} parent=83 // pred_region
          %575 = dma.done [#allocation6], 4096
        $region96: #{transformer_forward.1} parent=83 // pred_fallthru
          _
        // Predicated region
        $region97: #{transformer_forward.1} parent=83 // pred_check
          %p576 = pneg %p229
        $region98: #{transformer_forward.1} parent=83 // pred_check_branch
          %578 = sbr.rel (%p576) target = $region100
        $region99: #{transformer_forward.1} parent=83 // pred_region
          %579 = dma.done [#allocation9], 128
        $region100: #{transformer_forward.1} parent=83 // pred_fallthru
          _
        // Predicated region
        $region101: #{transformer_forward.1} parent=83 // pred_check
          %p580 = pneg %p250
        $region102: #{transformer_forward.1} parent=83 // pred_check_branch
          %582 = sbr.rel (%p580) target = $region104
        $region103: #{transformer_forward.1} parent=83 // pred_region
          %583 = dma.done [#allocation9], 4096
        $region104: #{transformer_forward.1} parent=83 // pred_fallthru
          _
        // Predicated region
        $region105: #{transformer_forward.1} parent=83 // pred_check
          %p584 = pneg %p271
        $region106: #{transformer_forward.1} parent=83 // pred_check_branch
          %586 = sbr.rel (%p584) target = $region108
        $region107: #{transformer_forward.1} parent=83 // pred_region
          %587 = dma.done [#allocation12], 128
        $region108: #{transformer_forward.1} parent=83 // pred_fallthru
          _
        // Predicated region
        $region109: #{transformer_forward.1} parent=83 // pred_check
          %p588 = pneg %p292
        $region110: #{transformer_forward.1} parent=83 // pred_check_branch
          %590 = sbr.rel (%p588) target = $region112
        $region111: #{transformer_forward.1} parent=83 // pred_region
          %591 = dma.done [#allocation12], 1024
        $region112: #{transformer_forward.1} parent=83 // pred_fallthru
          _
        // Predicated region
        $region113: #{transformer_forward.1} parent=83 // pred_check
          %p592 = pneg %p313
        $region114: #{transformer_forward.1} parent=83 // pred_check_branch
          %594 = sbr.rel (%p592) target = $region116
        $region115: #{transformer_forward.1} parent=83 // pred_region
          %595 = dma.done [#allocation15], 1024
        $region116: #{transformer_forward.1} parent=83 // pred_fallthru
          _
        // Predicated region
        $region117: #{transformer_forward.1} parent=83 // pred_check
          %p596 = pneg %p334
        $region118: #{transformer_forward.1} parent=83 // pred_check_branch
          %598 = sbr.rel (%p596) target = $region120
        $region119: #{transformer_forward.1} parent=83 // pred_region
          %599 = dma.done [#allocation15], 128
        $region120: #{transformer_forward.1} parent=83 // pred_fallthru
          _
        %p600 = scmp.lt.s32.totalorder %s35, 1
        %s601 = scalar_select %p600, %s35, 1
        %s602 = smul.addr %s601, 8
        %s603 = scalar_lea.vmem %s0, %s602
        %p604 = pneg %p56
        %p605 = pneg %p53
        %p606 = scmp.lt.s32.totalorder %s35, 1
        %s607 = scalar_select %p606, %s35, 1
        %s608 = smul.addr %s607, 8
        %s609 = scalar_lea.vmem %s1, %s608
        %p610 = pneg %p82
        %p611 = pneg %p79
        %p612 = pneg %p103
        %p613 = pneg %p100
        %p614 = pneg %p124
        %p615 = pneg %p121
        %p616 = pneg %p145
        %p617 = pneg %p142
        %p618 = pneg %p166
        %p619 = pneg %p163
        %p620 = pneg %p187
        %p621 = pneg %p184
        %p622 = pneg %p208
        %p623 = pneg %p205
        %p624 = pneg %p229
        %p625 = pneg %p226
        %p626 = pneg %p250
        %p627 = pneg %p247
        %p628 = pneg %p271
        %p629 = pneg %p268
        %p630 = pneg %p292
        %p631 = pneg %p289
        %p632 = pneg %p313
        %p633 = pneg %p310
        %p634 = pneg %p334
        %p635 = pneg %p331
        %p636 = pneg %p355
        %p637 = pneg %p352
        %p638 = pneg %p376
        %p639 = pneg %p373
        %p640 = pneg %p402
        %p641 = pneg %p399
        %s642 = sand.u32 %s389, 1
        %s643 = scalar_lea.sflag [#allocation4], %s642
        %s644 = sand.u32 %s389, 1
        %s645 = smul.addr %s644, 8
        %s646 = scalar_lea.vmem [#allocation17], %s645
        %p647 = scmp.lt.s32.totalorder %s35, 1
        %s648 = scalar_select %p647, %s35, 1
        %s649 = smul.addr %s648, 8
        %s650 = scalar_lea.vmem %s0, %s649
        %p651 = scmp.lt.s32.totalorder %s35, 1
        %s652 = scalar_select %p651, %s35, 1
        %s653 = smul.addr %s652, 8
        %s654 = scalar_lea.vmem %s1, %s653
        %v656 = vld [vmem:[%s650] sm:$0xff]
        %v657 = vld [vmem:[%s654] sm:$0xff]
        %v658 = vpack.c.bf16 %v656, %v656
        %v659 = vld [vmem:[%s2] sm:$0xf]
        %v660 = vld [vmem:[%s2 + $0x10] sm:$0xf]
        %v661 = vld [vmem:[%s2 + $0x20] sm:$0xf]
        %v662 = vld [vmem:[%s2 + $0x30] sm:$0xf]
        %v663 = vld [vmem:[%s2 + $0x40] sm:$0xf]
        %v664 = vld [vmem:[%s2 + $0x50] sm:$0xf]
        %v665 = vld [vmem:[%s2 + $0x60] sm:$0xf]
        %v666 = vld [vmem:[%s2 + $0x70] sm:$0xf]
        %v667 = vld [vmem:[%s2 + $0x80] sm:$0xf]
        %v668 = vld [vmem:[%s2 + $0x90] sm:$0xf]
        %v669 = vld [vmem:[%s2 + $0xa0] sm:$0xf]
        %v670 = vld [vmem:[%s2 + $0xb0] sm:$0xf]
        %v671 = vld [vmem:[%s2 + $0xc0] sm:$0xf]
        %v672 = vld [vmem:[%s2 + $0xd0] sm:$0xf]
        %v673 = vld [vmem:[%s2 + $0xe0] sm:$0xf]
        %v674 = vld [vmem:[%s2 + $0xf0] sm:$0xf]
        %v675 = vld [vmem:[#allocation2] sm:$0x1]
        %v676 = vlaneseq
        %v677 = vshrl.u32 %v676, 7
        %v678 = vsub.s32 0, %v677
        %v679 = vrot.slane %v675, %v678
        %v696 = vunpack.c.l.b16 %v659
        %v697 = vunpack.c.l.b16 %v660
        %v698 = vunpack.c.l.b16 %v661
        %v699 = vunpack.c.l.b16 %v662
        %v700 = vunpack.c.l.b16 %v663
        %v701 = vunpack.c.l.b16 %v664
        %v702 = vunpack.c.l.b16 %v665
        %v703 = vunpack.c.l.b16 %v666
        %v704 = vunpack.c.l.b16 %v667
        %v705 = vunpack.c.l.b16 %v668
        %v706 = vunpack.c.l.b16 %v669
        %v707 = vunpack.c.l.b16 %v670
        %v708 = vunpack.c.l.b16 %v671
        %v709 = vunpack.c.l.b16 %v672
        %v710 = vunpack.c.l.b16 %v673
        %v711 = vunpack.c.l.b16 %v674
        %v712 = vpack.c.b16 %v697, %v696
        %v713 = vpack.c.b16 %v699, %v698
        %v714 = vpack.c.b16 %v701, %v700
        %v715 = vpack.c.b16 %v703, %v702
        %v716 = vpack.c.b16 %v705, %v704
        %v717 = vpack.c.b16 %v707, %v706
        %v718 = vpack.c.b16 %v709, %v708
        %v719 = vpack.c.b16 %v711, %v710
        %728 = vmatprep.subr.bf16.mxu0 0
        %729 = vmatpush1.bf16.msra.mxu0 %v712
        %730 = vmatprep.subr.bf16.mxu0 0
        %731 = vmatpush1.bf16.msra.mxu0 %v713
        %732 = vmatprep.subr.bf16.mxu0 0
        %733 = vmatpush1.bf16.msra.mxu0 %v714
        %734 = vmatprep.subr.bf16.mxu0 0
        %735 = vmatpush1.bf16.msra.mxu0 %v715
        %736 = vmatprep.subr.bf16.mxu0 0
        %737 = vmatpush1.bf16.msra.mxu0 %v716
        %738 = vmatprep.subr.bf16.mxu0 0
        %739 = vmatpush1.bf16.msra.mxu0 %v717
        %740 = vmatprep.subr.bf16.mxu0 0
        %741 = vmatpush1.bf16.msra.mxu0 %v718
        %742 = vmatprep.subr.bf16.mxu0 0
        %743 = vmatpush1.bf16.msra.mxu0 %v719
        %744 = vmatprep.subr.bf16.mxu0 0
        %745 = vmatpush1.bf16.msra.mxu0 0
        %746 = vmatprep.subr.bf16.mxu0 0
        %747 = vmatpush1.bf16.msra.mxu0 0
        %748 = vmatprep.subr.bf16.mxu0 0
        %749 = vmatpush1.bf16.msra.mxu0 0
        %750 = vmatprep.subr.bf16.mxu0 0
        %751 = vmatpush1.bf16.msra.mxu0 0
        %752 = vmatprep.subr.bf16.mxu0 0
        %753 = vmatpush1.bf16.msra.mxu0 0
        %754 = vmatprep.subr.bf16.mxu0 0
        %755 = vmatpush1.bf16.msra.mxu0 0
        %756 = vmatprep.subr.bf16.mxu0 0
        %757 = vmatpush1.bf16.msra.mxu0 0
        %758 = vmatprep.subr.bf16.mxu0 0
        %759 = vmatpush1.bf16.msra.mxu0 0
        %760 = vmatprep.mubr.bf16.mxu0 0
        %761 = vmatmul.mubr.bf16.gmra.mrb[0].mxu0 %v658
        %v762 = vpop.f32.mrb[0].mxu0
        %v763 = vadd.f32 %v679, %v762
        %v764 = vpop.f32.mrb[0].mxu0
        %v765 = vpop.f32.mrb[0].mxu0
        %v766 = vpop.f32.mrb[0].mxu0
        %767 = vdwg.mxu0
        %v768 = vmul.f32 %v763, 0.17677669
        %v769 = vpack.c.bf16 %v768, %v768
        %v770 = vld [vmem:[%s2 + $0x4] sm:$0xff]
        %v771 = vld [vmem:[%s2 + $0x14] sm:$0xff]
        %v772 = vld [vmem:[%s2 + $0x24] sm:$0xff]
        %v773 = vld [vmem:[%s2 + $0x34] sm:$0xff]
        %v774 = vld [vmem:[%s2 + $0x44] sm:$0xff]
        %v775 = vld [vmem:[%s2 + $0x54] sm:$0xff]
        %v776 = vld [vmem:[%s2 + $0x64] sm:$0xff]
        %v777 = vld [vmem:[%s2 + $0x74] sm:$0xff]
        %v778 = vld [vmem:[%s2 + $0x84] sm:$0xff]
        %v779 = vld [vmem:[%s2 + $0x94] sm:$0xff]
        %v780 = vld [vmem:[%s2 + $0xa4] sm:$0xff]
        %v781 = vld [vmem:[%s2 + $0xb4] sm:$0xff]
        %v782 = vld [vmem:[%s2 + $0xc4] sm:$0xff]
        %v783 = vld [vmem:[%s2 + $0xd4] sm:$0xff]
        %v784 = vld [vmem:[%s2 + $0xe4] sm:$0xff]
        %v785 = vld [vmem:[%s2 + $0xf4] sm:$0xff]
        %v802 = vunpack.c.l.b16 %v770
        %v803 = vunpack.c.h.b16 %v770
        %v804 = vunpack.c.l.b16 %v771
        %v805 = vunpack.c.h.b16 %v771
        %v806 = vunpack.c.l.b16 %v772
        %v807 = vunpack.c.h.b16 %v772
        %v808 = vunpack.c.l.b16 %v773
        %v809 = vunpack.c.h.b16 %v773
        %v810 = vunpack.c.l.b16 %v774
        %v811 = vunpack.c.h.b16 %v774
        %v812 = vunpack.c.l.b16 %v775
        %v813 = vunpack.c.h.b16 %v775
        %v814 = vunpack.c.l.b16 %v776
        %v815 = vunpack.c.h.b16 %v776
        %v816 = vunpack.c.l.b16 %v777
        %v817 = vunpack.c.h.b16 %v777
        %v818 = vunpack.c.l.b16 %v778
        %v819 = vunpack.c.h.b16 %v778
        %v820 = vunpack.c.l.b16 %v779
        %v821 = vunpack.c.h.b16 %v779
        %v822 = vunpack.c.l.b16 %v780
        %v823 = vunpack.c.h.b16 %v780
        %v824 = vunpack.c.l.b16 %v781
        %v825 = vunpack.c.h.b16 %v781
        %v826 = vunpack.c.l.b16 %v782
        %v827 = vunpack.c.h.b16 %v782
        %v828 = vunpack.c.l.b16 %v783
        %v829 = vunpack.c.h.b16 %v783
        %v830 = vunpack.c.l.b16 %v784
        %v831 = vunpack.c.h.b16 %v784
        %v832 = vunpack.c.l.b16 %v785
        %v833 = vunpack.c.h.b16 %v785
        %v834 = vpack.c.b16 %v804, %v802
        %v835 = vpack.c.b16 %v805, %v803
        %v836 = vpack.c.b16 %v808, %v806
        %v837 = vpack.c.b16 %v809, %v807
        %v838 = vpack.c.b16 %v812, %v810
        %v839 = vpack.c.b16 %v813, %v811
        %v840 = vpack.c.b16 %v816, %v814
        %v841 = vpack.c.b16 %v817, %v815
        %v842 = vpack.c.b16 %v820, %v818
        %v843 = vpack.c.b16 %v821, %v819
        %v844 = vpack.c.b16 %v824, %v822
        %v845 = vpack.c.b16 %v825, %v823
        %v846 = vpack.c.b16 %v828, %v826
        %v847 = vpack.c.b16 %v829, %v827
        %v848 = vpack.c.b16 %v832, %v830
        %v849 = vpack.c.b16 %v833, %v831
        %866 = vmatprep.subr.bf16.mxu0 %v835
        %867 = vmatpush1.bf16.msra.mxu0 %v834
        %868 = vmatprep.subr.bf16.mxu0 %v837
        %869 = vmatpush1.bf16.msra.mxu0 %v836
        %870 = vmatprep.subr.bf16.mxu0 %v839
        %871 = vmatpush1.bf16.msra.mxu0 %v838
        %872 = vmatprep.subr.bf16.mxu0 %v841
        %873 = vmatpush1.bf16.msra.mxu0 %v840
        %874 = vmatprep.subr.bf16.mxu0 %v843
        %875 = vmatpush1.bf16.msra.mxu0 %v842
        %876 = vmatprep.subr.bf16.mxu0 %v845
        %877 = vmatpush1.bf16.msra.mxu0 %v844
        %878 = vmatprep.subr.bf16.mxu0 %v847
        %879 = vmatpush1.bf16.msra.mxu0 %v846
        %880 = vmatprep.subr.bf16.mxu0 %v849
        %881 = vmatpush1.bf16.msra.mxu0 %v848
        %882 = vmatprep.subr.bf16.mxu0 0
        %883 = vmatpush1.bf16.msra.mxu0 0
        %884 = vmatprep.subr.bf16.mxu0 0
        %885 = vmatpush1.bf16.msra.mxu0 0
        %886 = vmatprep.subr.bf16.mxu0 0
        %887 = vmatpush1.bf16.msra.mxu0 0
        %888 = vmatprep.subr.bf16.mxu0 0
        %889 = vmatpush1.bf16.msra.mxu0 0
        %890 = vmatprep.subr.bf16.mxu0 0
        %891 = vmatpush1.bf16.msra.mxu0 0
        %892 = vmatprep.subr.bf16.mxu0 0
        %893 = vmatpush1.bf16.msra.mxu0 0
        %894 = vmatprep.subr.bf16.mxu0 0
        %895 = vmatpush1.bf16.msra.mxu0 0
        %896 = vmatprep.subr.bf16.mxu0 0
        %897 = vmatpush1.bf16.msra.mxu0 0
        %898 = vmatprep.mubr.bf16.mxu0 0
        %899 = vmatmul.mubr.bf16.gmra.mrb[0].mxu0 %v658
        %v900 = vpop.f32.mrb[0].mxu0
        %v901 = vadd.f32 0.0, %v900
        %v902 = vpop.f32.mrb[0].mxu0
        %v903 = vadd.f32 0.0, %v902
        %v904 = vpop.f32.mrb[0].mxu0
        %v905 = vpop.f32.mrb[0].mxu0
        %906 = vdwg.mxu0
        %v907 = vld [vmem:[#allocation2 + $0x1] sm:$0x1]
        %v908 = vlaneseq
        %v909 = vshrl.u32 %v908, 7
        %v910 = vsub.s32 0, %v909
        %v911 = vrot.slane %v907, %v910
        %v912 = vadd.f32 %v901, %v911
        %v913 = vpack.c.bf16 %v912, %v912
        %v914 = vld [vmem:[#allocation2 + $0x2] sm:$0x1]
        %v915 = vlaneseq
        %v916 = vshrl.u32 %v915, 7
        %v917 = vsub.s32 0, %v916
        %v918 = vrot.slane %v914, %v917
        %v919 = vadd.f32 %v903, %v918
        %v920 = vpack.c.bf16 %v919, %v919
        %921 = vmatprep.subr.bf16.mxu0 0
        %922 = vmatpush1.bf16.xpose.msra.mxu0 %v913
        %923 = vmatprep.subr.bf16.mxu0 0
        %924 = vmatpush1.bf16.xpose.msra.mxu0 0
        %925 = vmatprep.subr.bf16.mxu0 0
        %926 = vmatpush1.bf16.xpose.msra.mxu0 0
        %927 = vmatprep.subr.bf16.mxu0 0
        %928 = vmatpush1.bf16.xpose.msra.mxu0 0
        %929 = vmatprep.subr.bf16.mxu0 0
        %930 = vmatpush1.bf16.xpose.msra.mxu0 0
        %931 = vmatprep.subr.bf16.mxu0 0
        %932 = vmatpush1.bf16.xpose.msra.mxu0 0
        %933 = vmatprep.subr.bf16.mxu0 0
        %934 = vmatpush1.bf16.xpose.msra.mxu0 0
        %935 = vmatprep.subr.bf16.mxu0 0
        %936 = vmatpush1.bf16.xpose.msra.mxu0 0
        %937 = vmatprep.subr.bf16.mxu0 0
        %938 = vmatpush1.bf16.xpose.msra.mxu0 0
        %939 = vmatprep.subr.bf16.mxu0 0
        %940 = vmatpush1.bf16.xpose.msra.mxu0 0
        %941 = vmatprep.subr.bf16.mxu0 0
        %942 = vmatpush1.bf16.xpose.msra.mxu0 0
        %943 = vmatprep.subr.bf16.mxu0 0
        %944 = vmatpush1.bf16.xpose.msra.mxu0 0
        %945 = vmatprep.subr.bf16.mxu0 0
        %946 = vmatpush1.bf16.xpose.msra.mxu0 0
        %947 = vmatprep.subr.bf16.mxu0 0
        %948 = vmatpush1.bf16.xpose.msra.mxu0 0
        %949 = vmatprep.subr.bf16.mxu0 0
        %950 = vmatpush1.bf16.xpose.msra.mxu0 0
        %951 = vmatprep.subr.bf16.mxu0 0
        %952 = vmatpush1.bf16.xpose.msra.mxu0 0
        %953 = vmatprep.mubr.bf16.mxu0 0
        %954 = vmatmul.mubr.bf16.gmra.mrb[0].mxu0 %v769
        %v955 = vpop.f32.mrb[0].mxu0
        %v956 = vadd.f32 0.0, %v955
        %v957 = vpop.f32.mrb[0].mxu0
        %v958 = vpop.f32.mrb[0].mxu0
        %v959 = vpop.f32.mrb[0].mxu0
        %960 = vdwg.mxu0
        %vm961 = vcmask 64512
        %v962 = vsel %vm961, %v956, -inf
        %963 = vmax.xlane.f32.xlu0 %v962
        %v964 = vpop.xlane.xlu0 %963
        %v965 = vsub.f32 %v956, %v964
        %v966 = vmul.f32 %v965, 1.442695
        %v967 = vpow.pop %v966
        %v968 = vsel %vm961, %v967, 0.0
        %969 = vadd.xlane.f32.xlu0 %v968
        %v970 = vpop.xlane.xlu0 %969
        %v971 = vrcp.pop %v970
        %v972 = vmul.f32 %v967, %v971
        %v973 = vpack.c.bf16 %v972, %v972
        %v975 = vsel %vm961, %v973, 0
        %vm977 = vcmask 1043456
        %v979 = vsel %vm977, %v920, 0
        %981 = vmatprep.subr.bf16.mxu0 0
        %982 = vmatpush1.bf16.msra.mxu0 %v979
        %983 = vmatprep.subr.bf16.mxu0 0
        %984 = vmatpush1.bf16.msra.mxu0 0
        %985 = vmatprep.subr.bf16.mxu0 0
        %986 = vmatpush1.bf16.msra.mxu0 0
        %987 = vmatprep.subr.bf16.mxu0 0
        %988 = vmatpush1.bf16.msra.mxu0 0
        %989 = vmatprep.subr.bf16.mxu0 0
        %990 = vmatpush1.bf16.msra.mxu0 0
        %991 = vmatprep.subr.bf16.mxu0 0
        %992 = vmatpush1.bf16.msra.mxu0 0
        %993 = vmatprep.subr.bf16.mxu0 0
        %994 = vmatpush1.bf16.msra.mxu0 0
        %995 = vmatprep.subr.bf16.mxu0 0
        %996 = vmatpush1.bf16.msra.mxu0 0
        %997 = vmatprep.subr.bf16.mxu0 0
        %998 = vmatpush1.bf16.msra.mxu0 0
        %999 = vmatprep.subr.bf16.mxu0 0
        %1000 = vmatpush1.bf16.msra.mxu0 0
        %1001 = vmatprep.subr.bf16.mxu0 0
        %1002 = vmatpush1.bf16.msra.mxu0 0
        %1003 = vmatprep.subr.bf16.mxu0 0
        %1004 = vmatpush1.bf16.msra.mxu0 0
        %1005 = vmatprep.subr.bf16.mxu0 0
        %1006 = vmatpush1.bf16.msra.mxu0 0
        %1007 = vmatprep.subr.bf16.mxu0 0
        %1008 = vmatpush1.bf16.msra.mxu0 0
        %1009 = vmatprep.subr.bf16.mxu0 0
        %1010 = vmatpush1.bf16.msra.mxu0 0
        %1011 = vmatprep.subr.bf16.mxu0 0
        %1012 = vmatpush1.bf16.msra.mxu0 0
        %1013 = vmatprep.mubr.bf16.mxu0 0
        %1014 = vmatmul.mubr.bf16.gmra.mrb[0].mxu0 %v975
        %v1015 = vpop.f32.mrb[0].mxu0
        %v1016 = vadd.f32 0.0, %v1015
        %v1017 = vpop.f32.mrb[0].mxu0
        %v1018 = vpop.f32.mrb[0].mxu0
        %v1019 = vpop.f32.mrb[0].mxu0
        %1020 = vdwg.mxu0
        %v1021 = vpack.c.bf16 %v1016, %v1016
        %v1022 = vld [vmem:[%s2 + $0xc] sm:$0xf]
        %v1023 = vld [vmem:[%s2 + $0x1c] sm:$0xf]
        %v1024 = vld [vmem:[%s2 + $0x2c] sm:$0xf]
        %v1025 = vld [vmem:[%s2 + $0x3c] sm:$0xf]
        %v1026 = vld [vmem:[%s2 + $0x4c] sm:$0xf]
        %v1027 = vld [vmem:[%s2 + $0x5c] sm:$0xf]
        %v1028 = vld [vmem:[%s2 + $0x6c] sm:$0xf]
        %v1029 = vld [vmem:[%s2 + $0x7c] sm:$0xf]
        %v1030 = vld [vmem:[%s2 + $0x8c] sm:$0xf]
        %v1031 = vld [vmem:[%s2 + $0x9c] sm:$0xf]
        %v1032 = vld [vmem:[%s2 + $0xac] sm:$0xf]
        %v1033 = vld [vmem:[%s2 + $0xbc] sm:$0xf]
        %v1034 = vld [vmem:[%s2 + $0xcc] sm:$0xf]
        %v1035 = vld [vmem:[%s2 + $0xdc] sm:$0xf]
        %v1036 = vld [vmem:[%s2 + $0xec] sm:$0xf]
        %v1037 = vld [vmem:[%s2 + $0xfc] sm:$0xf]
        %v1038 = vld [vmem:[#allocation2 + $0x3] sm:$0x1]
        %v1039 = vlaneseq
        %v1040 = vshrl.u32 %v1039, 7
        %v1041 = vsub.s32 0, %v1040
        %v1042 = vrot.slane %v1038, %v1041
        %v1059 = vunpack.c.l.b16 %v1022
        %v1060 = vunpack.c.l.b16 %v1023
        %v1061 = vunpack.c.l.b16 %v1024
        %v1062 = vunpack.c.l.b16 %v1025
        %v1063 = vunpack.c.l.b16 %v1026
        %v1064 = vunpack.c.l.b16 %v1027
        %v1065 = vunpack.c.l.b16 %v1028
        %v1066 = vunpack.c.l.b16 %v1029
        %v1067 = vunpack.c.l.b16 %v1030
        %v1068 = vunpack.c.l.b16 %v1031
        %v1069 = vunpack.c.l.b16 %v1032
        %v1070 = vunpack.c.l.b16 %v1033
        %v1071 = vunpack.c.l.b16 %v1034
        %v1072 = vunpack.c.l.b16 %v1035
        %v1073 = vunpack.c.l.b16 %v1036
        %v1074 = vunpack.c.l.b16 %v1037
        %v1075 = vpack.c.b16 %v1060, %v1059
        %v1076 = vpack.c.b16 %v1062, %v1061
        %v1077 = vpack.c.b16 %v1064, %v1063
        %v1078 = vpack.c.b16 %v1066, %v1065
        %v1079 = vpack.c.b16 %v1068, %v1067
        %v1080 = vpack.c.b16 %v1070, %v1069
        %v1081 = vpack.c.b16 %v1072, %v1071
        %v1082 = vpack.c.b16 %v1074, %v1073
        %1091 = vmatprep.subr.bf16.mxu0 0
        %1092 = vmatpush1.bf16.msra.mxu0 %v1075
        %1093 = vmatprep.subr.bf16.mxu0 0
        %1094 = vmatpush1.bf16.msra.mxu0 %v1076
        %1095 = vmatprep.subr.bf16.mxu0 0
        %1096 = vmatpush1.bf16.msra.mxu0 %v1077
        %1097 = vmatprep.subr.bf16.mxu0 0
        %1098 = vmatpush1.bf16.msra.mxu0 %v1078
        %1099 = vmatprep.subr.bf16.mxu0 0
        %1100 = vmatpush1.bf16.msra.mxu0 %v1079
        %1101 = vmatprep.subr.bf16.mxu0 0
        %1102 = vmatpush1.bf16.msra.mxu0 %v1080
        %1103 = vmatprep.subr.bf16.mxu0 0
        %1104 = vmatpush1.bf16.msra.mxu0 %v1081
        %1105 = vmatprep.subr.bf16.mxu0 0
        %1106 = vmatpush1.bf16.msra.mxu0 %v1082
        %1107 = vmatprep.subr.bf16.mxu0 0
        %1108 = vmatpush1.bf16.msra.mxu0 0
        %1109 = vmatprep.subr.bf16.mxu0 0
        %1110 = vmatpush1.bf16.msra.mxu0 0
        %1111 = vmatprep.subr.bf16.mxu0 0
        %1112 = vmatpush1.bf16.msra.mxu0 0
        %1113 = vmatprep.subr.bf16.mxu0 0
        %1114 = vmatpush1.bf16.msra.mxu0 0
        %1115 = vmatprep.subr.bf16.mxu0 0
        %1116 = vmatpush1.bf16.msra.mxu0 0
        %1117 = vmatprep.subr.bf16.mxu0 0
        %1118 = vmatpush1.bf16.msra.mxu0 0
        %1119 = vmatprep.subr.bf16.mxu0 0
        %1120 = vmatpush1.bf16.msra.mxu0 0
        %1121 = vmatprep.subr.bf16.mxu0 0
        %1122 = vmatpush1.bf16.msra.mxu0 0
        %1123 = vmatprep.mubr.bf16.mxu0 0
        %1124 = vmatmul.mubr.bf16.gmra.mrb[0].mxu0 %v1021
        %v1125 = vpop.f32.mrb[0].mxu0
        %v1126 = vadd.f32 %v1042, %v1125
        %v1127 = vpop.f32.mrb[0].mxu0
        %v1128 = vpop.f32.mrb[0].mxu0
        %v1129 = vpop.f32.mrb[0].mxu0
        %1130 = vdwg.mxu0
        %v1131 = vld [vmem:[#allocation2 + $0x4] sm:$0x1]
        %v1132 = vld [vmem:[#allocation2 + $0x5] sm:$0x1]
        %v1133 = vadd.f32 %v656, %v1126
        %1134 = vadd.xlane.f32.xlu0 %v1133
        %v1135 = vpop.xlane.xlu0 %1134
        %v1136 = vmul.f32 %v1135, 0.03125
        %v1137 = vmul.f32 %v1133, %v1133
        %1138 = vadd.xlane.f32.xlu0 %v1137
        %v1139 = vpop.xlane.xlu0 %1138
        %v1140 = vmul.f32 %v1139, 0.03125
        %v1141 = vmul.f32 %v1136, %v1136
        %v1142 = vsub.f32 %v1140, %v1141
        %v1143 = vsub.f32 %v1133, %v1136
        %v1144 = vadd.f32 %v1142, 1e-05
        %v1145 = vrsqrt.pop %v1144
        %v1146 = vmul.f32 %v1143, %v1145
        %v1147 = vlaneseq
        %v1148 = vshrl.u32 %v1147, 7
        %v1149 = vsub.s32 0, %v1148
        %v1150 = vrot.slane %v1131, %v1149
        %v1151 = vmul.f32 %v1146, %v1150
        %v1152 = vlaneseq
        %v1153 = vshrl.u32 %v1152, 7
        %v1154 = vsub.s32 0, %v1153
        %v1155 = vrot.slane %v1132, %v1154
        %v1156 = vadd.f32 %v1151, %v1155
        %v1157 = vpack.c.bf16 %v1156, %v1156
        %v1158 = vld [vmem:[%s4] sm:$0xf]
        %v1159 = vld [vmem:[%s4 + $0x4] sm:$0xf]
        %v1160 = vld [vmem:[%s4 + $0x8] sm:$0xf]
        %v1161 = vld [vmem:[%s4 + $0xc] sm:$0xf]
        %v1162 = vld [vmem:[%s4 + $0x10] sm:$0xf]
        %v1163 = vld [vmem:[%s4 + $0x14] sm:$0xf]
        %v1164 = vld [vmem:[%s4 + $0x18] sm:$0xf]
        %v1165 = vld [vmem:[%s4 + $0x1c] sm:$0xf]
        %v1166 = vld [vmem:[%s4 + $0x20] sm:$0xf]
        %v1167 = vld [vmem:[%s4 + $0x24] sm:$0xf]
        %v1168 = vld [vmem:[%s4 + $0x28] sm:$0xf]
        %v1169 = vld [vmem:[%s4 + $0x2c] sm:$0xf]
        %v1170 = vld [vmem:[%s4 + $0x30] sm:$0xf]
        %v1171 = vld [vmem:[%s4 + $0x34] sm:$0xf]
        %v1172 = vld [vmem:[%s4 + $0x38] sm:$0xf]
        %v1173 = vld [vmem:[%s4 + $0x3c] sm:$0xf]
        %v1174 = vld [vmem:[#allocation5] sm:$0x1]
        %v1175 = vlaneseq
        %v1176 = vshrl.u32 %v1175, 7
        %v1177 = vsub.s32 0, %v1176
        %v1178 = vrot.slane %v1174, %v1177
        %v1195 = vunpack.c.l.b16 %v1158
        %v1196 = vunpack.c.l.b16 %v1159
        %v1197 = vunpack.c.l.b16 %v1160
        %v1198 = vunpack.c.l.b16 %v1161
        %v1199 = vunpack.c.l.b16 %v1162
        %v1200 = vunpack.c.l.b16 %v1163
        %v1201 = vunpack.c.l.b16 %v1164
        %v1202 = vunpack.c.l.b16 %v1165
        %v1203 = vunpack.c.l.b16 %v1166
        %v1204 = vunpack.c.l.b16 %v1167
        %v1205 = vunpack.c.l.b16 %v1168
        %v1206 = vunpack.c.l.b16 %v1169
        %v1207 = vunpack.c.l.b16 %v1170
        %v1208 = vunpack.c.l.b16 %v1171
        %v1209 = vunpack.c.l.b16 %v1172
        %v1210 = vunpack.c.l.b16 %v1173
        %v1211 = vpack.c.b16 %v1196, %v1195
        %v1212 = vpack.c.b16 %v1198, %v1197
        %v1213 = vpack.c.b16 %v1200, %v1199
        %v1214 = vpack.c.b16 %v1202, %v1201
        %v1215 = vpack.c.b16 %v1204, %v1203
        %v1216 = vpack.c.b16 %v1206, %v1205
        %v1217 = vpack.c.b16 %v1208, %v1207
        %v1218 = vpack.c.b16 %v1210, %v1209
        %1227 = vmatprep.subr.bf16.mxu0 0
        %1228 = vmatpush1.bf16.msra.mxu0 %v1211
        %1229 = vmatprep.subr.bf16.mxu0 0
        %1230 = vmatpush1.bf16.msra.mxu0 %v1212
        %1231 = vmatprep.subr.bf16.mxu0 0
        %1232 = vmatpush1.bf16.msra.mxu0 %v1213
        %1233 = vmatprep.subr.bf16.mxu0 0
        %1234 = vmatpush1.bf16.msra.mxu0 %v1214
        %1235 = vmatprep.subr.bf16.mxu0 0
        %1236 = vmatpush1.bf16.msra.mxu0 %v1215
        %1237 = vmatprep.subr.bf16.mxu0 0
        %1238 = vmatpush1.bf16.msra.mxu0 %v1216
        %1239 = vmatprep.subr.bf16.mxu0 0
        %1240 = vmatpush1.bf16.msra.mxu0 %v1217
        %1241 = vmatprep.subr.bf16.mxu0 0
        %1242 = vmatpush1.bf16.msra.mxu0 %v1218
        %1243 = vmatprep.subr.bf16.mxu0 0
        %1244 = vmatpush1.bf16.msra.mxu0 0
        %1245 = vmatprep.subr.bf16.mxu0 0
        %1246 = vmatpush1.bf16.msra.mxu0 0
        %1247 = vmatprep.subr.bf16.mxu0 0
        %1248 = vmatpush1.bf16.msra.mxu0 0
        %1249 = vmatprep.subr.bf16.mxu0 0
        %1250 = vmatpush1.bf16.msra.mxu0 0
        %1251 = vmatprep.subr.bf16.mxu0 0
        %1252 = vmatpush1.bf16.msra.mxu0 0
        %1253 = vmatprep.subr.bf16.mxu0 0
        %1254 = vmatpush1.bf16.msra.mxu0 0
        %1255 = vmatprep.subr.bf16.mxu0 0
        %1256 = vmatpush1.bf16.msra.mxu0 0
        %1257 = vmatprep.subr.bf16.mxu0 0
        %1258 = vmatpush1.bf16.msra.mxu0 0
        %1259 = vmatprep.mubr.bf16.mxu0 0
        %1260 = vmatmul.mubr.bf16.gmra.mrb[0].mxu0 %v1157
        %v1261 = vpop.f32.mrb[0].mxu0
        %v1262 = vadd.f32 %v1178, %v1261
        %v1263 = vpop.f32.mrb[0].mxu0
        %v1264 = vpop.f32.mrb[0].mxu0
        %v1265 = vpop.f32.mrb[0].mxu0
        %1266 = vdwg.mxu0
        %v1267 = vmax.f32 %v1262, 0.0
        %v1268 = vpack.c.bf16 %v1267, %v1267
        %v1269 = vld [vmem:[%s5] sm:$0xf]
        %v1270 = vld [vmem:[%s5 + $0x4] sm:$0xf]
        %v1271 = vld [vmem:[%s5 + $0x8] sm:$0xf]
        %v1272 = vld [vmem:[%s5 + $0xc] sm:$0xf]
        %v1273 = vld [vmem:[%s5 + $0x10] sm:$0xf]
        %v1274 = vld [vmem:[%s5 + $0x14] sm:$0xf]
        %v1275 = vld [vmem:[%s5 + $0x18] sm:$0xf]
        %v1276 = vld [vmem:[%s5 + $0x1c] sm:$0xf]
        %v1277 = vld [vmem:[%s5 + $0x20] sm:$0xf]
        %v1278 = vld [vmem:[%s5 + $0x24] sm:$0xf]
        %v1279 = vld [vmem:[%s5 + $0x28] sm:$0xf]
        %v1280 = vld [vmem:[%s5 + $0x2c] sm:$0xf]
        %v1281 = vld [vmem:[%s5 + $0x30] sm:$0xf]
        %v1282 = vld [vmem:[%s5 + $0x34] sm:$0xf]
        %v1283 = vld [vmem:[%s5 + $0x38] sm:$0xf]
        %v1284 = vld [vmem:[%s5 + $0x3c] sm:$0xf]
        %v1285 = vld [vmem:[#allocation5 + $0x1] sm:$0x1]
        %v1286 = vlaneseq
        %v1287 = vshrl.u32 %v1286, 7
        %v1288 = vsub.s32 0, %v1287
        %v1289 = vrot.slane %v1285, %v1288
        %v1306 = vunpack.c.l.b16 %v1269
        %v1307 = vunpack.c.l.b16 %v1270
        %v1308 = vunpack.c.l.b16 %v1271
        %v1309 = vunpack.c.l.b16 %v1272
        %v1310 = vunpack.c.l.b16 %v1273
        %v1311 = vunpack.c.l.b16 %v1274
        %v1312 = vunpack.c.l.b16 %v1275
        %v1313 = vunpack.c.l.b16 %v1276
        %v1314 = vunpack.c.l.b16 %v1277
        %v1315 = vunpack.c.l.b16 %v1278
        %v1316 = vunpack.c.l.b16 %v1279
        %v1317 = vunpack.c.l.b16 %v1280
        %v1318 = vunpack.c.l.b16 %v1281
        %v1319 = vunpack.c.l.b16 %v1282
        %v1320 = vunpack.c.l.b16 %v1283
        %v1321 = vunpack.c.l.b16 %v1284
        %v1322 = vpack.c.b16 %v1307, %v1306
        %v1323 = vpack.c.b16 %v1309, %v1308
        %v1324 = vpack.c.b16 %v1311, %v1310
        %v1325 = vpack.c.b16 %v1313, %v1312
        %v1326 = vpack.c.b16 %v1315, %v1314
        %v1327 = vpack.c.b16 %v1317, %v1316
        %v1328 = vpack.c.b16 %v1319, %v1318
        %v1329 = vpack.c.b16 %v1321, %v1320
        %1338 = vmatprep.subr.bf16.mxu0 0
        %1339 = vmatpush1.bf16.msra.mxu0 %v1322
        %1340 = vmatprep.subr.bf16.mxu0 0
        %1341 = vmatpush1.bf16.msra.mxu0 %v1323
        %1342 = vmatprep.subr.bf16.mxu0 0
        %1343 = vmatpush1.bf16.msra.mxu0 %v1324
        %1344 = vmatprep.subr.bf16.mxu0 0
        %1345 = vmatpush1.bf16.msra.mxu0 %v1325
        %1346 = vmatprep.subr.bf16.mxu0 0
        %1347 = vmatpush1.bf16.msra.mxu0 %v1326
        %1348 = vmatprep.subr.bf16.mxu0 0
        %1349 = vmatpush1.bf16.msra.mxu0 %v1327
        %1350 = vmatprep.subr.bf16.mxu0 0
        %1351 = vmatpush1.bf16.msra.mxu0 %v1328
        %1352 = vmatprep.subr.bf16.mxu0 0
        %1353 = vmatpush1.bf16.msra.mxu0 %v1329
        %1354 = vmatprep.subr.bf16.mxu0 0
        %1355 = vmatpush1.bf16.msra.mxu0 0
        %1356 = vmatprep.subr.bf16.mxu0 0
        %1357 = vmatpush1.bf16.msra.mxu0 0
        %1358 = vmatprep.subr.bf16.mxu0 0
        %1359 = vmatpush1.bf16.msra.mxu0 0
        %1360 = vmatprep.subr.bf16.mxu0 0
        %1361 = vmatpush1.bf16.msra.mxu0 0
        %1362 = vmatprep.subr.bf16.mxu0 0
        %1363 = vmatpush1.bf16.msra.mxu0 0
        %1364 = vmatprep.subr.bf16.mxu0 0
        %1365 = vmatpush1.bf16.msra.mxu0 0
        %1366 = vmatprep.subr.bf16.mxu0 0
        %1367 = vmatpush1.bf16.msra.mxu0 0
        %1368 = vmatprep.subr.bf16.mxu0 0
        %1369 = vmatpush1.bf16.msra.mxu0 0
        %1370 = vmatprep.mubr.bf16.mxu0 0
        %1371 = vmatmul.mubr.bf16.gmra.mrb[0].mxu0 %v1268
        %v1372 = vpop.f32.mrb[0].mxu0
        %v1373 = vadd.f32 %v1289, %v1372
        %v1374 = vpop.f32.mrb[0].mxu0
        %v1375 = vpop.f32.mrb[0].mxu0
        %v1376 = vpop.f32.mrb[0].mxu0
        %1377 = vdwg.mxu0
        %v1378 = vld [vmem:[#allocation5 + $0x2] sm:$0x1]
        %v1379 = vld [vmem:[#allocation5 + $0x3] sm:$0x1]
        %v1380 = vadd.f32 %v1156, %v1373
        %1381 = vadd.xlane.f32.xlu0 %v1380
        %v1382 = vpop.xlane.xlu0 %1381
        %v1383 = vmul.f32 %v1382, 0.03125
        %v1384 = vmul.f32 %v1380, %v1380
        %1385 = vadd.xlane.f32.xlu0 %v1384
        %v1386 = vpop.xlane.xlu0 %1385
        %v1387 = vmul.f32 %v1386, 0.03125
        %v1388 = vmul.f32 %v1383, %v1383
        %v1389 = vsub.f32 %v1387, %v1388
        %v1390 = vsub.f32 %v1380, %v1383
        %v1391 = vadd.f32 %v1389, 1e-05
        %v1392 = vrsqrt.pop %v1391
        %v1393 = vmul.f32 %v1390, %v1392
        %v1394 = vlaneseq
        %v1395 = vshrl.u32 %v1394, 7
        %v1396 = vsub.s32 0, %v1395
        %v1397 = vrot.slane %v1378, %v1396
        %v1398 = vmul.f32 %v1393, %v1397
        %v1399 = vlaneseq
        %v1400 = vshrl.u32 %v1399, 7
        %v1401 = vsub.s32 0, %v1400
        %v1402 = vrot.slane %v1379, %v1401
        %v1403 = vadd.f32 %v1398, %v1402
        %v1404 = vpack.c.bf16 %v657, %v657
        %v1405 = vld [vmem:[#allocation7] sm:$0xf]
        %v1406 = vld [vmem:[#allocation7 + $0x10] sm:$0xf]
        %v1407 = vld [vmem:[#allocation7 + $0x20] sm:$0xf]
        %v1408 = vld [vmem:[#allocation7 + $0x30] sm:$0xf]
        %v1409 = vld [vmem:[#allocation7 + $0x40] sm:$0xf]
        %v1410 = vld [vmem:[#allocation7 + $0x50] sm:$0xf]
        %v1411 = vld [vmem:[#allocation7 + $0x60] sm:$0xf]
        %v1412 = vld [vmem:[#allocation7 + $0x70] sm:$0xf]
        %v1413 = vld [vmem:[#allocation7 + $0x80] sm:$0xf]
        %v1414 = vld [vmem:[#allocation7 + $0x90] sm:$0xf]
        %v1415 = vld [vmem:[#allocation7 + $0xa0] sm:$0xf]
        %v1416 = vld [vmem:[#allocation7 + $0xb0] sm:$0xf]
        %v1417 = vld [vmem:[#allocation7 + $0xc0] sm:$0xf]
        %v1418 = vld [vmem:[#allocation7 + $0xd0] sm:$0xf]
        %v1419 = vld [vmem:[#allocation7 + $0xe0] sm:$0xf]
        %v1420 = vld [vmem:[#allocation7 + $0xf0] sm:$0xf]
        %v1421 = vld [vmem:[#allocation8] sm:$0x1]
        %v1422 = vlaneseq
        %v1423 = vshrl.u32 %v1422, 7
        %v1424 = vsub.s32 0, %v1423
        %v1425 = vrot.slane %v1421, %v1424
        %v1442 = vunpack.c.l.b16 %v1405
        %v1443 = vunpack.c.l.b16 %v1406
        %v1444 = vunpack.c.l.b16 %v1407
        %v1445 = vunpack.c.l.b16 %v1408
        %v1446 = vunpack.c.l.b16 %v1409
        %v1447 = vunpack.c.l.b16 %v1410
        %v1448 = vunpack.c.l.b16 %v1411
        %v1449 = vunpack.c.l.b16 %v1412
        %v1450 = vunpack.c.l.b16 %v1413
        %v1451 = vunpack.c.l.b16 %v1414
        %v1452 = vunpack.c.l.b16 %v1415
        %v1453 = vunpack.c.l.b16 %v1416
        %v1454 = vunpack.c.l.b16 %v1417
        %v1455 = vunpack.c.l.b16 %v1418
        %v1456 = vunpack.c.l.b16 %v1419
        %v1457 = vunpack.c.l.b16 %v1420
        %v1458 = vpack.c.b16 %v1443, %v1442
        %v1459 = vpack.c.b16 %v1445, %v1444
        %v1460 = vpack.c.b16 %v1447, %v1446
        %v1461 = vpack.c.b16 %v1449, %v1448
        %v1462 = vpack.c.b16 %v1451, %v1450
        %v1463 = vpack.c.b16 %v1453, %v1452
        %v1464 = vpack.c.b16 %v1455, %v1454
        %v1465 = vpack.c.b16 %v1457, %v1456
        %1474 = vmatprep.subr.bf16.mxu0 0
        %1475 = vmatpush1.bf16.msra.mxu0 %v1458
        %1476 = vmatprep.subr.bf16.mxu0 0
        %1477 = vmatpush1.bf16.msra.mxu0 %v1459
        %1478 = vmatprep.subr.bf16.mxu0 0
        %1479 = vmatpush1.bf16.msra.mxu0 %v1460
        %1480 = vmatprep.subr.bf16.mxu0 0
        %1481 = vmatpush1.bf16.msra.mxu0 %v1461
        %1482 = vmatprep.subr.bf16.mxu0 0
        %1483 = vmatpush1.bf16.msra.mxu0 %v1462
        %1484 = vmatprep.subr.bf16.mxu0 0
        %1485 = vmatpush1.bf16.msra.mxu0 %v1463
        %1486 = vmatprep.subr.bf16.mxu0 0
        %1487 = vmatpush1.bf16.msra.mxu0 %v1464
        %1488 = vmatprep.subr.bf16.mxu0 0
        %1489 = vmatpush1.bf16.msra.mxu0 %v1465
        %1490 = vmatprep.subr.bf16.mxu0 0
        %1491 = vmatpush1.bf16.msra.mxu0 0
        %1492 = vmatprep.subr.bf16.mxu0 0
        %1493 = vmatpush1.bf16.msra.mxu0 0
        %1494 = vmatprep.subr.bf16.mxu0 0
        %1495 = vmatpush1.bf16.msra.mxu0 0
        %1496 = vmatprep.subr.bf16.mxu0 0
        %1497 = vmatpush1.bf16.msra.mxu0 0
        %1498 = vmatprep.subr.bf16.mxu0 0
        %1499 = vmatpush1.bf16.msra.mxu0 0
        %1500 = vmatprep.subr.bf16.mxu0 0
        %1501 = vmatpush1.bf16.msra.mxu0 0
        %1502 = vmatprep.subr.bf16.mxu0 0
        %1503 = vmatpush1.bf16.msra.mxu0 0
        %1504 = vmatprep.subr.bf16.mxu0 0
        %1505 = vmatpush1.bf16.msra.mxu0 0
        %1506 = vmatprep.mubr.bf16.mxu0 0
        %1507 = vmatmul.mubr.bf16.gmra.mrb[0].mxu0 %v1404
        %v1508 = vpop.f32.mrb[0].mxu0
        %v1509 = vadd.f32 %v1425, %v1508
        %v1510 = vpop.f32.mrb[0].mxu0
        %v1511 = vpop.f32.mrb[0].mxu0
        %v1512 = vpop.f32.mrb[0].mxu0
        %1513 = vdwg.mxu0
        %v1514 = vmul.f32 %v1509, 0.17677669
        %v1515 = vpack.c.bf16 %v1514, %v1514
        %v1516 = vld [vmem:[#allocation7 + $0x4] sm:$0xff]
        %v1517 = vld [vmem:[#allocation7 + $0x14] sm:$0xff]
        %v1518 = vld [vmem:[#allocation7 + $0x24] sm:$0xff]
        %v1519 = vld [vmem:[#allocation7 + $0x34] sm:$0xff]
        %v1520 = vld [vmem:[#allocation7 + $0x44] sm:$0xff]
        %v1521 = vld [vmem:[#allocation7 + $0x54] sm:$0xff]
        %v1522 = vld [vmem:[#allocation7 + $0x64] sm:$0xff]
        %v1523 = vld [vmem:[#allocation7 + $0x74] sm:$0xff]
        %v1524 = vld [vmem:[#allocation7 + $0x84] sm:$0xff]
        %v1525 = vld [vmem:[#allocation7 + $0x94] sm:$0xff]
        %v1526 = vld [vmem:[#allocation7 + $0xa4] sm:$0xff]
        %v1527 = vld [vmem:[#allocation7 + $0xb4] sm:$0xff]
        %v1528 = vld [vmem:[#allocation7 + $0xc4] sm:$0xff]
        %v1529 = vld [vmem:[#allocation7 + $0xd4] sm:$0xff]
        %v1530 = vld [vmem:[#allocation7 + $0xe4] sm:$0xff]
        %v1531 = vld [vmem:[#allocation7 + $0xf4] sm:$0xff]
        %v1548 = vunpack.c.l.b16 %v1516
        %v1549 = vunpack.c.h.b16 %v1516
        %v1550 = vunpack.c.l.b16 %v1517
        %v1551 = vunpack.c.h.b16 %v1517
        %v1552 = vunpack.c.l.b16 %v1518
        %v1553 = vunpack.c.h.b16 %v1518
        %v1554 = vunpack.c.l.b16 %v1519
        %v1555 = vunpack.c.h.b16 %v1519
        %v1556 = vunpack.c.l.b16 %v1520
        %v1557 = vunpack.c.h.b16 %v1520
        %v1558 = vunpack.c.l.b16 %v1521
        %v1559 = vunpack.c.h.b16 %v1521
        %v1560 = vunpack.c.l.b16 %v1522
        %v1561 = vunpack.c.h.b16 %v1522
        %v1562 = vunpack.c.l.b16 %v1523
        %v1563 = vunpack.c.h.b16 %v1523
        %v1564 = vunpack.c.l.b16 %v1524
        %v1565 = vunpack.c.h.b16 %v1524
        %v1566 = vunpack.c.l.b16 %v1525
        %v1567 = vunpack.c.h.b16 %v1525
        %v1568 = vunpack.c.l.b16 %v1526
        %v1569 = vunpack.c.h.b16 %v1526
        %v1570 = vunpack.c.l.b16 %v1527
        %v1571 = vunpack.c.h.b16 %v1527
        %v1572 = vunpack.c.l.b16 %v1528
        %v1573 = vunpack.c.h.b16 %v1528
        %v1574 = vunpack.c.l.b16 %v1529
        %v1575 = vunpack.c.h.b16 %v1529
        %v1576 = vunpack.c.l.b16 %v1530
        %v1577 = vunpack.c.h.b16 %v1530
        %v1578 = vunpack.c.l.b16 %v1531
        %v1579 = vunpack.c.h.b16 %v1531
        %v1580 = vpack.c.b16 %v1550, %v1548
        %v1581 = vpack.c.b16 %v1551, %v1549
        %v1582 = vpack.c.b16 %v1554, %v1552
        %v1583 = vpack.c.b16 %v1555, %v1553
        %v1584 = vpack.c.b16 %v1558, %v1556
        %v1585 = vpack.c.b16 %v1559, %v1557
        %v1586 = vpack.c.b16 %v1562, %v1560
        %v1587 = vpack.c.b16 %v1563, %v1561
        %v1588 = vpack.c.b16 %v1566, %v1564
        %v1589 = vpack.c.b16 %v1567, %v1565
        %v1590 = vpack.c.b16 %v1570, %v1568
        %v1591 = vpack.c.b16 %v1571, %v1569
        %v1592 = vpack.c.b16 %v1574, %v1572
        %v1593 = vpack.c.b16 %v1575, %v1573
        %v1594 = vpack.c.b16 %v1578, %v1576
        %v1595 = vpack.c.b16 %v1579, %v1577
        %1612 = vmatprep.subr.bf16.mxu0 %v1581
        %1613 = vmatpush1.bf16.msra.mxu0 %v1580
        %1614 = vmatprep.subr.bf16.mxu0 %v1583
        %1615 = vmatpush1.bf16.msra.mxu0 %v1582
        %1616 = vmatprep.subr.bf16.mxu0 %v1585
        %1617 = vmatpush1.bf16.msra.mxu0 %v1584
        %1618 = vmatprep.subr.bf16.mxu0 %v1587
        %1619 = vmatpush1.bf16.msra.mxu0 %v1586
        %1620 = vmatprep.subr.bf16.mxu0 %v1589
        %1621 = vmatpush1.bf16.msra.mxu0 %v1588
        %1622 = vmatprep.subr.bf16.mxu0 %v1591
        %1623 = vmatpush1.bf16.msra.mxu0 %v1590
        %1624 = vmatprep.subr.bf16.mxu0 %v1593
        %1625 = vmatpush1.bf16.msra.mxu0 %v1592
        %1626 = vmatprep.subr.bf16.mxu0 %v1595
        %1627 = vmatpush1.bf16.msra.mxu0 %v1594
        %1628 = vmatprep.subr.bf16.mxu0 0
        %1629 = vmatpush1.bf16.msra.mxu0 0
        %1630 = vmatprep.subr.bf16.mxu0 0
        %1631 = vmatpush1.bf16.msra.mxu0 0
        %1632 = vmatprep.subr.bf16.mxu0 0
        %1633 = vmatpush1.bf16.msra.mxu0 0
        %1634 = vmatprep.subr.bf16.mxu0 0
        %1635 = vmatpush1.bf16.msra.mxu0 0
        %1636 = vmatprep.subr.bf16.mxu0 0
        %1637 = vmatpush1.bf16.msra.mxu0 0
        %1638 = vmatprep.subr.bf16.mxu0 0
        %1639 = vmatpush1.bf16.msra.mxu0 0
        %1640 = vmatprep.subr.bf16.mxu0 0
        %1641 = vmatpush1.bf16.msra.mxu0 0
        %1642 = vmatprep.subr.bf16.mxu0 0
        %1643 = vmatpush1.bf16.msra.mxu0 0
        %1644 = vmatprep.mubr.bf16.mxu0 0
        %1645 = vmatmul.mubr.bf16.gmra.mrb[0].mxu0 %v1404
        %v1646 = vpop.f32.mrb[0].mxu0
        %v1647 = vadd.f32 0.0, %v1646
        %v1648 = vpop.f32.mrb[0].mxu0
        %v1649 = vadd.f32 0.0, %v1648
        %v1650 = vpop.f32.mrb[0].mxu0
        %v1651 = vpop.f32.mrb[0].mxu0
        %1652 = vdwg.mxu0
        %v1653 = vld [vmem:[#allocation8 + $0x1] sm:$0x1]
        %v1654 = vlaneseq
        %v1655 = vshrl.u32 %v1654, 7
        %v1656 = vsub.s32 0, %v1655
        %v1657 = vrot.slane %v1653, %v1656
        %v1658 = vadd.f32 %v1647, %v1657
        %v1659 = vpack.c.bf16 %v1658, %v1658
        %v1660 = vld [vmem:[#allocation8 + $0x2] sm:$0x1]
        %v1661 = vlaneseq
        %v1662 = vshrl.u32 %v1661, 7
        %v1663 = vsub.s32 0, %v1662
        %v1664 = vrot.slane %v1660, %v1663
        %v1665 = vadd.f32 %v1649, %v1664
        %v1666 = vpack.c.bf16 %v1665, %v1665
        %1667 = vmatprep.subr.bf16.mxu0 0
        %1668 = vmatpush1.bf16.xpose.msra.mxu0 %v1659
        %1669 = vmatprep.subr.bf16.mxu0 0
        %1670 = vmatpush1.bf16.xpose.msra.mxu0 0
        %1671 = vmatprep.subr.bf16.mxu0 0
        %1672 = vmatpush1.bf16.xpose.msra.mxu0 0
        %1673 = vmatprep.subr.bf16.mxu0 0
        %1674 = vmatpush1.bf16.xpose.msra.mxu0 0
        %1675 = vmatprep.subr.bf16.mxu0 0
        %1676 = vmatpush1.bf16.xpose.msra.mxu0 0
        %1677 = vmatprep.subr.bf16.mxu0 0
        %1678 = vmatpush1.bf16.xpose.msra.mxu0 0
        %1679 = vmatprep.subr.bf16.mxu0 0
        %1680 = vmatpush1.bf16.xpose.msra.mxu0 0
        %1681 = vmatprep.subr.bf16.mxu0 0
        %1682 = vmatpush1.bf16.xpose.msra.mxu0 0
        %1683 = vmatprep.subr.bf16.mxu0 0
        %1684 = vmatpush1.bf16.xpose.msra.mxu0 0
        %1685 = vmatprep.subr.bf16.mxu0 0
        %1686 = vmatpush1.bf16.xpose.msra.mxu0 0
        %1687 = vmatprep.subr.bf16.mxu0 0
        %1688 = vmatpush1.bf16.xpose.msra.mxu0 0
        %1689 = vmatprep.subr.bf16.mxu0 0
        %1690 = vmatpush1.bf16.xpose.msra.mxu0 0
        %1691 = vmatprep.subr.bf16.mxu0 0
        %1692 = vmatpush1.bf16.xpose.msra.mxu0 0
        %1693 = vmatprep.subr.bf16.mxu0 0
        %1694 = vmatpush1.bf16.xpose.msra.mxu0 0
        %1695 = vmatprep.subr.bf16.mxu0 0
        %1696 = vmatpush1.bf16.xpose.msra.mxu0 0
        %1697 = vmatprep.subr.bf16.mxu0 0
        %1698 = vmatpush1.bf16.xpose.msra.mxu0 0
        %1699 = vmatprep.mubr.bf16.mxu0 0
        %1700 = vmatmul.mubr.bf16.gmra.mrb[0].mxu0 %v1515
        %v1701 = vpop.f32.mrb[0].mxu0
        %v1702 = vadd.f32 0.0, %v1701
        %v1703 = vpop.f32.mrb[0].mxu0
        %v1704 = vpop.f32.mrb[0].mxu0
        %v1705 = vpop.f32.mrb[0].mxu0
        %1706 = vdwg.mxu0
        %v1707 = vlaneseq
        %v1708 = vshrl.u32 %v1707, 7
        %v1709 = vlaneseq
        %v1710 = vand.u32 %v1709, 127
        %vm1711 = vcmp.gt.s32.totalorder %v1710, %v1708
        %v1712 = vsel %vm1711, -1e+09, %v1702
        %v1713 = vsel %vm961, %v1712, -inf
        %1714 = vmax.xlane.f32.xlu0 %v1713
        %v1715 = vpop.xlane.xlu0 %1714
        %v1716 = vsub.f32 %v1712, %v1715
        %v1717 = vmul.f32 %v1716, 1.442695
        %v1718 = vpow.pop %v1717
        %v1719 = vsel %vm961, %v1718, 0.0
        %1720 = vadd.xlane.f32.xlu0 %v1719
        %v1721 = vpop.xlane.xlu0 %1720
        %v1722 = vrcp.pop %v1721
        %v1723 = vmul.f32 %v1718, %v1722
        %v1724 = vpack.c.bf16 %v1723, %v1723
        %v1726 = vsel %vm961, %v1724, 0
        %v1729 = vsel %vm977, %v1666, 0
        %1731 = vmatprep.subr.bf16.mxu0 0
        %1732 = vmatpush1.bf16.msra.mxu0 %v1729
        %1733 = vmatprep.subr.bf16.mxu0 0
        %1734 = vmatpush1.bf16.msra.mxu0 0
        %1735 = vmatprep.subr.bf16.mxu0 0
        %1736 = vmatpush1.bf16.msra.mxu0 0
        %1737 = vmatprep.subr.bf16.mxu0 0
        %1738 = vmatpush1.bf16.msra.mxu0 0
        %1739 = vmatprep.subr.bf16.mxu0 0
        %1740 = vmatpush1.bf16.msra.mxu0 0
        %1741 = vmatprep.subr.bf16.mxu0 0
        %1742 = vmatpush1.bf16.msra.mxu0 0
        %1743 = vmatprep.subr.bf16.mxu0 0
        %1744 = vmatpush1.bf16.msra.mxu0 0
        %1745 = vmatprep.subr.bf16.mxu0 0
        %1746 = vmatpush1.bf16.msra.mxu0 0
        %1747 = vmatprep.subr.bf16.mxu0 0
        %1748 = vmatpush1.bf16.msra.mxu0 0
        %1749 = vmatprep.subr.bf16.mxu0 0
        %1750 = vmatpush1.bf16.msra.mxu0 0
        %1751 = vmatprep.subr.bf16.mxu0 0
        %1752 = vmatpush1.bf16.msra.mxu0 0
        %1753 = vmatprep.subr.bf16.mxu0 0
        %1754 = vmatpush1.bf16.msra.mxu0 0
        %1755 = vmatprep.subr.bf16.mxu0 0
        %1756 = vmatpush1.bf16.msra.mxu0 0
        %1757 = vmatprep.subr.bf16.mxu0 0
        %1758 = vmatpush1.bf16.msra.mxu0 0
        %1759 = vmatprep.subr.bf16.mxu0 0
        %1760 = vmatpush1.bf16.msra.mxu0 0
        %1761 = vmatprep.subr.bf16.mxu0 0
        %1762 = vmatpush1.bf16.msra.mxu0 0
        %1763 = vmatprep.mubr.bf16.mxu0 0
        %1764 = vmatmul.mubr.bf16.gmra.mrb[0].mxu0 %v1726
        %v1765 = vpop.f32.mrb[0].mxu0
        %v1766 = vadd.f32 0.0, %v1765
        %v1767 = vpop.f32.mrb[0].mxu0
        %v1768 = vpop.f32.mrb[0].mxu0
        %v1769 = vpop.f32.mrb[0].mxu0
        %1770 = vdwg.mxu0
        %v1771 = vpack.c.bf16 %v1766, %v1766
        %v1772 = vld [vmem:[#allocation7 + $0xc] sm:$0xf]
        %v1773 = vld [vmem:[#allocation7 + $0x1c] sm:$0xf]
        %v1774 = vld [vmem:[#allocation7 + $0x2c] sm:$0xf]
        %v1775 = vld [vmem:[#allocation7 + $0x3c] sm:$0xf]
        %v1776 = vld [vmem:[#allocation7 + $0x4c] sm:$0xf]
        %v1777 = vld [vmem:[#allocation7 + $0x5c] sm:$0xf]
        %v1778 = vld [vmem:[#allocation7 + $0x6c] sm:$0xf]
        %v1779 = vld [vmem:[#allocation7 + $0x7c] sm:$0xf]
        %v1780 = vld [vmem:[#allocation7 + $0x8c] sm:$0xf]
        %v1781 = vld [vmem:[#allocation7 + $0x9c] sm:$0xf]
        %v1782 = vld [vmem:[#allocation7 + $0xac] sm:$0xf]
        %v1783 = vld [vmem:[#allocation7 + $0xbc] sm:$0xf]
        %v1784 = vld [vmem:[#allocation7 + $0xcc] sm:$0xf]
        %v1785 = vld [vmem:[#allocation7 + $0xdc] sm:$0xf]
        %v1786 = vld [vmem:[#allocation7 + $0xec] sm:$0xf]
        %v1787 = vld [vmem:[#allocation7 + $0xfc] sm:$0xf]
        %v1788 = vld [vmem:[#allocation8 + $0x3] sm:$0x1]
        %v1789 = vlaneseq
        %v1790 = vshrl.u32 %v1789, 7
        %v1791 = vsub.s32 0, %v1790
        %v1792 = vrot.slane %v1788, %v1791
        %v1809 = vunpack.c.l.b16 %v1772
        %v1810 = vunpack.c.l.b16 %v1773
        %v1811 = vunpack.c.l.b16 %v1774
        %v1812 = vunpack.c.l.b16 %v1775
        %v1813 = vunpack.c.l.b16 %v1776
        %v1814 = vunpack.c.l.b16 %v1777
        %v1815 = vunpack.c.l.b16 %v1778
        %v1816 = vunpack.c.l.b16 %v1779
        %v1817 = vunpack.c.l.b16 %v1780
        %v1818 = vunpack.c.l.b16 %v1781
        %v1819 = vunpack.c.l.b16 %v1782
        %v1820 = vunpack.c.l.b16 %v1783
        %v1821 = vunpack.c.l.b16 %v1784
        %v1822 = vunpack.c.l.b16 %v1785
        %v1823 = vunpack.c.l.b16 %v1786
        %v1824 = vunpack.c.l.b16 %v1787
        %v1825 = vpack.c.b16 %v1810, %v1809
        %v1826 = vpack.c.b16 %v1812, %v1811
        %v1827 = vpack.c.b16 %v1814, %v1813
        %v1828 = vpack.c.b16 %v1816, %v1815
        %v1829 = vpack.c.b16 %v1818, %v1817
        %v1830 = vpack.c.b16 %v1820, %v1819
        %v1831 = vpack.c.b16 %v1822, %v1821
        %v1832 = vpack.c.b16 %v1824, %v1823
        %1841 = vmatprep.subr.bf16.mxu0 0
        %1842 = vmatpush1.bf16.msra.mxu0 %v1825
        %1843 = vmatprep.subr.bf16.mxu0 0
        %1844 = vmatpush1.bf16.msra.mxu0 %v1826
        %1845 = vmatprep.subr.bf16.mxu0 0
        %1846 = vmatpush1.bf16.msra.mxu0 %v1827
        %1847 = vmatprep.subr.bf16.mxu0 0
        %1848 = vmatpush1.bf16.msra.mxu0 %v1828
        %1849 = vmatprep.subr.bf16.mxu0 0
        %1850 = vmatpush1.bf16.msra.mxu0 %v1829
        %1851 = vmatprep.subr.bf16.mxu0 0
        %1852 = vmatpush1.bf16.msra.mxu0 %v1830
        %1853 = vmatprep.subr.bf16.mxu0 0
        %1854 = vmatpush1.bf16.msra.mxu0 %v1831
        %1855 = vmatprep.subr.bf16.mxu0 0
        %1856 = vmatpush1.bf16.msra.mxu0 %v1832
        %1857 = vmatprep.subr.bf16.mxu0 0
        %1858 = vmatpush1.bf16.msra.mxu0 0
        %1859 = vmatprep.subr.bf16.mxu0 0
        %1860 = vmatpush1.bf16.msra.mxu0 0
        %1861 = vmatprep.subr.bf16.mxu0 0
        %1862 = vmatpush1.bf16.msra.mxu0 0
        %1863 = vmatprep.subr.bf16.mxu0 0
        %1864 = vmatpush1.bf16.msra.mxu0 0
        %1865 = vmatprep.subr.bf16.mxu0 0
        %1866 = vmatpush1.bf16.msra.mxu0 0
        %1867 = vmatprep.subr.bf16.mxu0 0
        %1868 = vmatpush1.bf16.msra.mxu0 0
        %1869 = vmatprep.subr.bf16.mxu0 0
        %1870 = vmatpush1.bf16.msra.mxu0 0
        %1871 = vmatprep.subr.bf16.mxu0 0
        %1872 = vmatpush1.bf16.msra.mxu0 0
        %1873 = vmatprep.mubr.bf16.mxu0 0
        %1874 = vmatmul.mubr.bf16.gmra.mrb[0].mxu0 %v1771
        %v1875 = vpop.f32.mrb[0].mxu0
        %v1876 = vadd.f32 %v1792, %v1875
        %v1877 = vpop.f32.mrb[0].mxu0
        %v1878 = vpop.f32.mrb[0].mxu0
        %v1879 = vpop.f32.mrb[0].mxu0
        %1880 = vdwg.mxu0
        %v1881 = vld [vmem:[#allocation8 + $0x4] sm:$0x1]
        %v1882 = vld [vmem:[#allocation8 + $0x5] sm:$0x1]
        %v1883 = vadd.f32 %v657, %v1876
        %1884 = vadd.xlane.f32.xlu0 %v1883
        %v1885 = vpop.xlane.xlu0 %1884
        %v1886 = vmul.f32 %v1885, 0.03125
        %v1887 = vmul.f32 %v1883, %v1883
        %1888 = vadd.xlane.f32.xlu0 %v1887
        %v1889 = vpop.xlane.xlu0 %1888
        %v1890 = vmul.f32 %v1889, 0.03125
        %v1891 = vmul.f32 %v1886, %v1886
        %v1892 = vsub.f32 %v1890, %v1891
        %v1893 = vsub.f32 %v1883, %v1886
        %v1894 = vadd.f32 %v1892, 1e-05
        %v1895 = vrsqrt.pop %v1894
        %v1896 = vmul.f32 %v1893, %v1895
        %v1897 = vlaneseq
        %v1898 = vshrl.u32 %v1897, 7
        %v1899 = vsub.s32 0, %v1898
        %v1900 = vrot.slane %v1881, %v1899
        %v1901 = vmul.f32 %v1896, %v1900
        %v1902 = vlaneseq
        %v1903 = vshrl.u32 %v1902, 7
        %v1904 = vsub.s32 0, %v1903
        %v1905 = vrot.slane %v1882, %v1904
        %v1906 = vadd.f32 %v1901, %v1905
        %v1907 = vpack.c.bf16 %v1906, %v1906
        %v1908 = vpack.c.bf16 %v1403, %v1403
        %v1909 = vld [vmem:[#allocation10] sm:$0xf]
        %v1910 = vld [vmem:[#allocation10 + $0x10] sm:$0xf]
        %v1911 = vld [vmem:[#allocation10 + $0x20] sm:$0xf]
        %v1912 = vld [vmem:[#allocation10 + $0x30] sm:$0xf]
        %v1913 = vld [vmem:[#allocation10 + $0x40] sm:$0xf]
        %v1914 = vld [vmem:[#allocation10 + $0x50] sm:$0xf]
        %v1915 = vld [vmem:[#allocation10 + $0x60] sm:$0xf]
        %v1916 = vld [vmem:[#allocation10 + $0x70] sm:$0xf]
        %v1917 = vld [vmem:[#allocation10 + $0x80] sm:$0xf]
        %v1918 = vld [vmem:[#allocation10 + $0x90] sm:$0xf]
        %v1919 = vld [vmem:[#allocation10 + $0xa0] sm:$0xf]
        %v1920 = vld [vmem:[#allocation10 + $0xb0] sm:$0xf]
        %v1921 = vld [vmem:[#allocation10 + $0xc0] sm:$0xf]
        %v1922 = vld [vmem:[#allocation10 + $0xd0] sm:$0xf]
        %v1923 = vld [vmem:[#allocation10 + $0xe0] sm:$0xf]
        %v1924 = vld [vmem:[#allocation10 + $0xf0] sm:$0xf]
        %v1925 = vld [vmem:[#allocation11] sm:$0x1]
        %v1926 = vlaneseq
        %v1927 = vshrl.u32 %v1926, 7
        %v1928 = vsub.s32 0, %v1927
        %v1929 = vrot.slane %v1925, %v1928
        %v1946 = vunpack.c.l.b16 %v1909
        %v1947 = vunpack.c.l.b16 %v1910
        %v1948 = vunpack.c.l.b16 %v1911
        %v1949 = vunpack.c.l.b16 %v1912
        %v1950 = vunpack.c.l.b16 %v1913
        %v1951 = vunpack.c.l.b16 %v1914
        %v1952 = vunpack.c.l.b16 %v1915
        %v1953 = vunpack.c.l.b16 %v1916
        %v1954 = vunpack.c.l.b16 %v1917
        %v1955 = vunpack.c.l.b16 %v1918
        %v1956 = vunpack.c.l.b16 %v1919
        %v1957 = vunpack.c.l.b16 %v1920
        %v1958 = vunpack.c.l.b16 %v1921
        %v1959 = vunpack.c.l.b16 %v1922
        %v1960 = vunpack.c.l.b16 %v1923
        %v1961 = vunpack.c.l.b16 %v1924
        %v1962 = vpack.c.b16 %v1947, %v1946
        %v1963 = vpack.c.b16 %v1949, %v1948
        %v1964 = vpack.c.b16 %v1951, %v1950
        %v1965 = vpack.c.b16 %v1953, %v1952
        %v1966 = vpack.c.b16 %v1955, %v1954
        %v1967 = vpack.c.b16 %v1957, %v1956
        %v1968 = vpack.c.b16 %v1959, %v1958
        %v1969 = vpack.c.b16 %v1961, %v1960
        %1978 = vmatprep.subr.bf16.mxu0 0
        %1979 = vmatpush1.bf16.msra.mxu0 %v1962
        %1980 = vmatprep.subr.bf16.mxu0 0
        %1981 = vmatpush1.bf16.msra.mxu0 %v1963
        %1982 = vmatprep.subr.bf16.mxu0 0
        %1983 = vmatpush1.bf16.msra.mxu0 %v1964
        %1984 = vmatprep.subr.bf16.mxu0 0
        %1985 = vmatpush1.bf16.msra.mxu0 %v1965
        %1986 = vmatprep.subr.bf16.mxu0 0
        %1987 = vmatpush1.bf16.msra.mxu0 %v1966
        %1988 = vmatprep.subr.bf16.mxu0 0
        %1989 = vmatpush1.bf16.msra.mxu0 %v1967
        %1990 = vmatprep.subr.bf16.mxu0 0
        %1991 = vmatpush1.bf16.msra.mxu0 %v1968
        %1992 = vmatprep.subr.bf16.mxu0 0
        %1993 = vmatpush1.bf16.msra.mxu0 %v1969
        %1994 = vmatprep.subr.bf16.mxu0 0
        %1995 = vmatpush1.bf16.msra.mxu0 0
        %1996 = vmatprep.subr.bf16.mxu0 0
        %1997 = vmatpush1.bf16.msra.mxu0 0
        %1998 = vmatprep.subr.bf16.mxu0 0
        %1999 = vmatpush1.bf16.msra.mxu0 0
        %2000 = vmatprep.subr.bf16.mxu0 0
        %2001 = vmatpush1.bf16.msra.mxu0 0
        %2002 = vmatprep.subr.bf16.mxu0 0
        %2003 = vmatpush1.bf16.msra.mxu0 0
        %2004 = vmatprep.subr.bf16.mxu0 0
        %2005 = vmatpush1.bf16.msra.mxu0 0
        %2006 = vmatprep.subr.bf16.mxu0 0
        %2007 = vmatpush1.bf16.msra.mxu0 0
        %2008 = vmatprep.subr.bf16.mxu0 0
        %2009 = vmatpush1.bf16.msra.mxu0 0
        %2010 = vmatprep.mubr.bf16.mxu0 0
        %2011 = vmatmul.mubr.bf16.gmra.mrb[0].mxu0 %v1907
        %v2012 = vpop.f32.mrb[0].mxu0
        %v2013 = vadd.f32 %v1929, %v2012
        %v2014 = vpop.f32.mrb[0].mxu0
        %v2015 = vpop.f32.mrb[0].mxu0
        %v2016 = vpop.f32.mrb[0].mxu0
        %2017 = vdwg.mxu0
        %v2018 = vmul.f32 %v2013, 0.17677669
        %v2019 = vpack.c.bf16 %v2018, %v2018
        %v2020 = vld [vmem:[#allocation10 + $0x4] sm:$0xff]
        %v2021 = vld [vmem:[#allocation10 + $0x14] sm:$0xff]
        %v2022 = vld [vmem:[#allocation10 + $0x24] sm:$0xff]
        %v2023 = vld [vmem:[#allocation10 + $0x34] sm:$0xff]
        %v2024 = vld [vmem:[#allocation10 + $0x44] sm:$0xff]
        %v2025 = vld [vmem:[#allocation10 + $0x54] sm:$0xff]
        %v2026 = vld [vmem:[#allocation10 + $0x64] sm:$0xff]
        %v2027 = vld [vmem:[#allocation10 + $0x74] sm:$0xff]
        %v2028 = vld [vmem:[#allocation10 + $0x84] sm:$0xff]
        %v2029 = vld [vmem:[#allocation10 + $0x94] sm:$0xff]
        %v2030 = vld [vmem:[#allocation10 + $0xa4] sm:$0xff]
        %v2031 = vld [vmem:[#allocation10 + $0xb4] sm:$0xff]
        %v2032 = vld [vmem:[#allocation10 + $0xc4] sm:$0xff]
        %v2033 = vld [vmem:[#allocation10 + $0xd4] sm:$0xff]
        %v2034 = vld [vmem:[#allocation10 + $0xe4] sm:$0xff]
        %v2035 = vld [vmem:[#allocation10 + $0xf4] sm:$0xff]
        %v2052 = vunpack.c.l.b16 %v2020
        %v2053 = vunpack.c.h.b16 %v2020
        %v2054 = vunpack.c.l.b16 %v2021
        %v2055 = vunpack.c.h.b16 %v2021
        %v2056 = vunpack.c.l.b16 %v2022
        %v2057 = vunpack.c.h.b16 %v2022
        %v2058 = vunpack.c.l.b16 %v2023
        %v2059 = vunpack.c.h.b16 %v2023
        %v2060 = vunpack.c.l.b16 %v2024
        %v2061 = vunpack.c.h.b16 %v2024
        %v2062 = vunpack.c.l.b16 %v2025
        %v2063 = vunpack.c.h.b16 %v2025
        %v2064 = vunpack.c.l.b16 %v2026
        %v2065 = vunpack.c.h.b16 %v2026
        %v2066 = vunpack.c.l.b16 %v2027
        %v2067 = vunpack.c.h.b16 %v2027
        %v2068 = vunpack.c.l.b16 %v2028
        %v2069 = vunpack.c.h.b16 %v2028
        %v2070 = vunpack.c.l.b16 %v2029
        %v2071 = vunpack.c.h.b16 %v2029
        %v2072 = vunpack.c.l.b16 %v2030
        %v2073 = vunpack.c.h.b16 %v2030
        %v2074 = vunpack.c.l.b16 %v2031
        %v2075 = vunpack.c.h.b16 %v2031
        %v2076 = vunpack.c.l.b16 %v2032
        %v2077 = vunpack.c.h.b16 %v2032
        %v2078 = vunpack.c.l.b16 %v2033
        %v2079 = vunpack.c.h.b16 %v2033
        %v2080 = vunpack.c.l.b16 %v2034
        %v2081 = vunpack.c.h.b16 %v2034
        %v2082 = vunpack.c.l.b16 %v2035
        %v2083 = vunpack.c.h.b16 %v2035
        %v2084 = vpack.c.b16 %v2054, %v2052
        %v2085 = vpack.c.b16 %v2055, %v2053
        %v2086 = vpack.c.b16 %v2058, %v2056
        %v2087 = vpack.c.b16 %v2059, %v2057
        %v2088 = vpack.c.b16 %v2062, %v2060
        %v2089 = vpack.c.b16 %v2063, %v2061
        %v2090 = vpack.c.b16 %v2066, %v2064
        %v2091 = vpack.c.b16 %v2067, %v2065
        %v2092 = vpack.c.b16 %v2070, %v2068
        %v2093 = vpack.c.b16 %v2071, %v2069
        %v2094 = vpack.c.b16 %v2074, %v2072
        %v2095 = vpack.c.b16 %v2075, %v2073
        %v2096 = vpack.c.b16 %v2078, %v2076
        %v2097 = vpack.c.b16 %v2079, %v2077
        %v2098 = vpack.c.b16 %v2082, %v2080
        %v2099 = vpack.c.b16 %v2083, %v2081
        %2116 = vmatprep.subr.bf16.mxu0 %v2085
        %2117 = vmatpush1.bf16.msra.mxu0 %v2084
        %2118 = vmatprep.subr.bf16.mxu0 %v2087
        %2119 = vmatpush1.bf16.msra.mxu0 %v2086
        %2120 = vmatprep.subr.bf16.mxu0 %v2089
        %2121 = vmatpush1.bf16.msra.mxu0 %v2088
        %2122 = vmatprep.subr.bf16.mxu0 %v2091
        %2123 = vmatpush1.bf16.msra.mxu0 %v2090
        %2124 = vmatprep.subr.bf16.mxu0 %v2093
        %2125 = vmatpush1.bf16.msra.mxu0 %v2092
        %2126 = vmatprep.subr.bf16.mxu0 %v2095
        %2127 = vmatpush1.bf16.msra.mxu0 %v2094
        %2128 = vmatprep.subr.bf16.mxu0 %v2097
        %2129 = vmatpush1.bf16.msra.mxu0 %v2096
        %2130 = vmatprep.subr.bf16.mxu0 %v2099
        %2131 = vmatpush1.bf16.msra.mxu0 %v2098
        %2132 = vmatprep.subr.bf16.mxu0 0
        %2133 = vmatpush1.bf16.msra.mxu0 0
        %2134 = vmatprep.subr.bf16.mxu0 0
        %2135 = vmatpush1.bf16.msra.mxu0 0
        %2136 = vmatprep.subr.bf16.mxu0 0
        %2137 = vmatpush1.bf16.msra.mxu0 0
        %2138 = vmatprep.subr.bf16.mxu0 0
        %2139 = vmatpush1.bf16.msra.mxu0 0
        %2140 = vmatprep.subr.bf16.mxu0 0
        %2141 = vmatpush1.bf16.msra.mxu0 0
        %2142 = vmatprep.subr.bf16.mxu0 0
        %2143 = vmatpush1.bf16.msra.mxu0 0
        %2144 = vmatprep.subr.bf16.mxu0 0
        %2145 = vmatpush1.bf16.msra.mxu0 0
        %2146 = vmatprep.subr.bf16.mxu0 0
        %2147 = vmatpush1.bf16.msra.mxu0 0
        %2148 = vmatprep.mubr.bf16.mxu0 0
        %2149 = vmatmul.mubr.bf16.gmra.mrb[0].mxu0 %v1908
        %v2150 = vpop.f32.mrb[0].mxu0
        %v2151 = vadd.f32 0.0, %v2150
        %v2152 = vpop.f32.mrb[0].mxu0
        %v2153 = vadd.f32 0.0, %v2152
        %v2154 = vpop.f32.mrb[0].mxu0
        %v2155 = vpop.f32.mrb[0].mxu0
        %2156 = vdwg.mxu0
        %v2157 = vld [vmem:[#allocation11 + $0x1] sm:$0x1]
        %v2158 = vlaneseq
        %v2159 = vshrl.u32 %v2158, 7
        %v2160 = vsub.s32 0, %v2159
        %v2161 = vrot.slane %v2157, %v2160
        %v2162 = vadd.f32 %v2151, %v2161
        %v2163 = vpack.c.bf16 %v2162, %v2162
        %v2164 = vld [vmem:[#allocation11 + $0x2] sm:$0x1]
        %v2165 = vlaneseq
        %v2166 = vshrl.u32 %v2165, 7
        %v2167 = vsub.s32 0, %v2166
        %v2168 = vrot.slane %v2164, %v2167
        %v2169 = vadd.f32 %v2153, %v2168
        %v2170 = vpack.c.bf16 %v2169, %v2169
        %2171 = vmatprep.subr.bf16.mxu0 0
        %2172 = vmatpush1.bf16.xpose.msra.mxu0 %v2163
        %2173 = vmatprep.subr.bf16.mxu0 0
        %2174 = vmatpush1.bf16.xpose.msra.mxu0 0
        %2175 = vmatprep.subr.bf16.mxu0 0
        %2176 = vmatpush1.bf16.xpose.msra.mxu0 0
        %2177 = vmatprep.subr.bf16.mxu0 0
        %2178 = vmatpush1.bf16.xpose.msra.mxu0 0
        %2179 = vmatprep.subr.bf16.mxu0 0
        %2180 = vmatpush1.bf16.xpose.msra.mxu0 0
        %2181 = vmatprep.subr.bf16.mxu0 0
        %2182 = vmatpush1.bf16.xpose.msra.mxu0 0
        %2183 = vmatprep.subr.bf16.mxu0 0
        %2184 = vmatpush1.bf16.xpose.msra.mxu0 0
        %2185 = vmatprep.subr.bf16.mxu0 0
        %2186 = vmatpush1.bf16.xpose.msra.mxu0 0
        %2187 = vmatprep.subr.bf16.mxu0 0
        %2188 = vmatpush1.bf16.xpose.msra.mxu0 0
        %2189 = vmatprep.subr.bf16.mxu0 0
        %2190 = vmatpush1.bf16.xpose.msra.mxu0 0
        %2191 = vmatprep.subr.bf16.mxu0 0
        %2192 = vmatpush1.bf16.xpose.msra.mxu0 0
        %2193 = vmatprep.subr.bf16.mxu0 0
        %2194 = vmatpush1.bf16.xpose.msra.mxu0 0
        %2195 = vmatprep.subr.bf16.mxu0 0
        %2196 = vmatpush1.bf16.xpose.msra.mxu0 0
        %2197 = vmatprep.subr.bf16.mxu0 0
        %2198 = vmatpush1.bf16.xpose.msra.mxu0 0
        %2199 = vmatprep.subr.bf16.mxu0 0
        %2200 = vmatpush1.bf16.xpose.msra.mxu0 0
        %2201 = vmatprep.subr.bf16.mxu0 0
        %2202 = vmatpush1.bf16.xpose.msra.mxu0 0
        %2203 = vmatprep.mubr.bf16.mxu0 0
        %2204 = vmatmul.mubr.bf16.gmra.mrb[0].mxu0 %v2019
        %v2205 = vpop.f32.mrb[0].mxu0
        %v2206 = vadd.f32 0.0, %v2205
        %v2207 = vpop.f32.mrb[0].mxu0
        %v2208 = vpop.f32.mrb[0].mxu0
        %v2209 = vpop.f32.mrb[0].mxu0
        %2210 = vdwg.mxu0
        %v2211 = vsel %vm961, %v2206, -inf
        %2212 = vmax.xlane.f32.xlu0 %v2211
        %v2213 = vpop.xlane.xlu0 %2212
        %v2214 = vsub.f32 %v2206, %v2213
        %v2215 = vmul.f32 %v2214, 1.442695
        %v2216 = vpow.pop %v2215
        %v2217 = vsel %vm961, %v2216, 0.0
        %2218 = vadd.xlane.f32.xlu0 %v2217
        %v2219 = vpop.xlane.xlu0 %2218
        %v2220 = vrcp.pop %v2219
        %v2221 = vmul.f32 %v2216, %v2220
        %v2222 = vpack.c.bf16 %v2221, %v2221
        %v2224 = vsel %vm961, %v2222, 0
        %v2227 = vsel %vm977, %v2170, 0
        %2229 = vmatprep.subr.bf16.mxu0 0
        %2230 = vmatpush1.bf16.msra.mxu0 %v2227
        %2231 = vmatprep.subr.bf16.mxu0 0
        %2232 = vmatpush1.bf16.msra.mxu0 0
        %2233 = vmatprep.subr.bf16.mxu0 0
        %2234 = vmatpush1.bf16.msra.mxu0 0
        %2235 = vmatprep.subr.bf16.mxu0 0
        %2236 = vmatpush1.bf16.msra.mxu0 0
        %2237 = vmatprep.subr.bf16.mxu0 0
        %2238 = vmatpush1.bf16.msra.mxu0 0
        %2239 = vmatprep.subr.bf16.mxu0 0
        %2240 = vmatpush1.bf16.msra.mxu0 0
        %2241 = vmatprep.subr.bf16.mxu0 0
        %2242 = vmatpush1.bf16.msra.mxu0 0
        %2243 = vmatprep.subr.bf16.mxu0 0
        %2244 = vmatpush1.bf16.msra.mxu0 0
        %2245 = vmatprep.subr.bf16.mxu0 0
        %2246 = vmatpush1.bf16.msra.mxu0 0
        %2247 = vmatprep.subr.bf16.mxu0 0
        %2248 = vmatpush1.bf16.msra.mxu0 0
        %2249 = vmatprep.subr.bf16.mxu0 0
        %2250 = vmatpush1.bf16.msra.mxu0 0
        %2251 = vmatprep.subr.bf16.mxu0 0
        %2252 = vmatpush1.bf16.msra.mxu0 0
        %2253 = vmatprep.subr.bf16.mxu0 0
        %2254 = vmatpush1.bf16.msra.mxu0 0
        %2255 = vmatprep.subr.bf16.mxu0 0
        %2256 = vmatpush1.bf16.msra.mxu0 0
        %2257 = vmatprep.subr.bf16.mxu0 0
        %2258 = vmatpush1.bf16.msra.mxu0 0
        %2259 = vmatprep.subr.bf16.mxu0 0
        %2260 = vmatpush1.bf16.msra.mxu0 0
        %2261 = vmatprep.mubr.bf16.mxu0 0
        %2262 = vmatmul.mubr.bf16.gmra.mrb[0].mxu0 %v2224
        %v2263 = vpop.f32.mrb[0].mxu0
        %v2264 = vadd.f32 0.0, %v2263
        %v2265 = vpop.f32.mrb[0].mxu0
        %v2266 = vpop.f32.mrb[0].mxu0
        %v2267 = vpop.f32.mrb[0].mxu0
        %2268 = vdwg.mxu0
        %v2269 = vpack.c.bf16 %v2264, %v2264
        %v2270 = vld [vmem:[#allocation10 + $0xc] sm:$0xf]
        %v2271 = vld [vmem:[#allocation10 + $0x1c] sm:$0xf]
        %v2272 = vld [vmem:[#allocation10 + $0x2c] sm:$0xf]
        %v2273 = vld [vmem:[#allocation10 + $0x3c] sm:$0xf]
        %v2274 = vld [vmem:[#allocation10 + $0x4c] sm:$0xf]
        %v2275 = vld [vmem:[#allocation10 + $0x5c] sm:$0xf]
        %v2276 = vld [vmem:[#allocation10 + $0x6c] sm:$0xf]
        %v2277 = vld [vmem:[#allocation10 + $0x7c] sm:$0xf]
        %v2278 = vld [vmem:[#allocation10 + $0x8c] sm:$0xf]
        %v2279 = vld [vmem:[#allocation10 + $0x9c] sm:$0xf]
        %v2280 = vld [vmem:[#allocation10 + $0xac] sm:$0xf]
        %v2281 = vld [vmem:[#allocation10 + $0xbc] sm:$0xf]
        %v2282 = vld [vmem:[#allocation10 + $0xcc] sm:$0xf]
        %v2283 = vld [vmem:[#allocation10 + $0xdc] sm:$0xf]
        %v2284 = vld [vmem:[#allocation10 + $0xec] sm:$0xf]
        %v2285 = vld [vmem:[#allocation10 + $0xfc] sm:$0xf]
        %v2286 = vld [vmem:[#allocation11 + $0x3] sm:$0x1]
        %v2287 = vlaneseq
        %v2288 = vshrl.u32 %v2287, 7
        %v2289 = vsub.s32 0, %v2288
        %v2290 = vrot.slane %v2286, %v2289
        %v2307 = vunpack.c.l.b16 %v2270
        %v2308 = vunpack.c.l.b16 %v2271
        %v2309 = vunpack.c.l.b16 %v2272
        %v2310 = vunpack.c.l.b16 %v2273
        %v2311 = vunpack.c.l.b16 %v2274
        %v2312 = vunpack.c.l.b16 %v2275
        %v2313 = vunpack.c.l.b16 %v2276
        %v2314 = vunpack.c.l.b16 %v2277
        %v2315 = vunpack.c.l.b16 %v2278
        %v2316 = vunpack.c.l.b16 %v2279
        %v2317 = vunpack.c.l.b16 %v2280
        %v2318 = vunpack.c.l.b16 %v2281
        %v2319 = vunpack.c.l.b16 %v2282
        %v2320 = vunpack.c.l.b16 %v2283
        %v2321 = vunpack.c.l.b16 %v2284
        %v2322 = vunpack.c.l.b16 %v2285
        %v2323 = vpack.c.b16 %v2308, %v2307
        %v2324 = vpack.c.b16 %v2310, %v2309
        %v2325 = vpack.c.b16 %v2312, %v2311
        %v2326 = vpack.c.b16 %v2314, %v2313
        %v2327 = vpack.c.b16 %v2316, %v2315
        %v2328 = vpack.c.b16 %v2318, %v2317
        %v2329 = vpack.c.b16 %v2320, %v2319
        %v2330 = vpack.c.b16 %v2322, %v2321
        %2339 = vmatprep.subr.bf16.mxu0 0
        %2340 = vmatpush1.bf16.msra.mxu0 %v2323
        %2341 = vmatprep.subr.bf16.mxu0 0
        %2342 = vmatpush1.bf16.msra.mxu0 %v2324
        %2343 = vmatprep.subr.bf16.mxu0 0
        %2344 = vmatpush1.bf16.msra.mxu0 %v2325
        %2345 = vmatprep.subr.bf16.mxu0 0
        %2346 = vmatpush1.bf16.msra.mxu0 %v2326
        %2347 = vmatprep.subr.bf16.mxu0 0
        %2348 = vmatpush1.bf16.msra.mxu0 %v2327
        %2349 = vmatprep.subr.bf16.mxu0 0
        %2350 = vmatpush1.bf16.msra.mxu0 %v2328
        %2351 = vmatprep.subr.bf16.mxu0 0
        %2352 = vmatpush1.bf16.msra.mxu0 %v2329
        %2353 = vmatprep.subr.bf16.mxu0 0
        %2354 = vmatpush1.bf16.msra.mxu0 %v2330
        %2355 = vmatprep.subr.bf16.mxu0 0
        %2356 = vmatpush1.bf16.msra.mxu0 0
        %2357 = vmatprep.subr.bf16.mxu0 0
        %2358 = vmatpush1.bf16.msra.mxu0 0
        %2359 = vmatprep.subr.bf16.mxu0 0
        %2360 = vmatpush1.bf16.msra.mxu0 0
        %2361 = vmatprep.subr.bf16.mxu0 0
        %2362 = vmatpush1.bf16.msra.mxu0 0
        %2363 = vmatprep.subr.bf16.mxu0 0
        %2364 = vmatpush1.bf16.msra.mxu0 0
        %2365 = vmatprep.subr.bf16.mxu0 0
        %2366 = vmatpush1.bf16.msra.mxu0 0
        %2367 = vmatprep.subr.bf16.mxu0 0
        %2368 = vmatpush1.bf16.msra.mxu0 0
        %2369 = vmatprep.subr.bf16.mxu0 0
        %2370 = vmatpush1.bf16.msra.mxu0 0
        %2371 = vmatprep.mubr.bf16.mxu0 0
        %2372 = vmatmul.mubr.bf16.gmra.mrb[0].mxu0 %v2269
        %v2373 = vpop.f32.mrb[0].mxu0
        %v2374 = vadd.f32 %v2290, %v2373
        %v2375 = vpop.f32.mrb[0].mxu0
        %v2376 = vpop.f32.mrb[0].mxu0
        %v2377 = vpop.f32.mrb[0].mxu0
        %2378 = vdwg.mxu0
        %v2379 = vld [vmem:[#allocation11 + $0x4] sm:$0x1]
        %v2380 = vld [vmem:[#allocation11 + $0x5] sm:$0x1]
        %v2381 = vadd.f32 %v1906, %v2374
        %2382 = vadd.xlane.f32.xlu0 %v2381
        %v2383 = vpop.xlane.xlu0 %2382
        %v2384 = vmul.f32 %v2383, 0.03125
        %v2385 = vmul.f32 %v2381, %v2381
        %2386 = vadd.xlane.f32.xlu0 %v2385
        %v2387 = vpop.xlane.xlu0 %2386
        %v2388 = vmul.f32 %v2387, 0.03125
        %v2389 = vmul.f32 %v2384, %v2384
        %v2390 = vsub.f32 %v2388, %v2389
        %v2391 = vsub.f32 %v2381, %v2384
        %v2392 = vadd.f32 %v2390, 1e-05
        %v2393 = vrsqrt.pop %v2392
        %v2394 = vmul.f32 %v2391, %v2393
        %v2395 = vlaneseq
        %v2396 = vshrl.u32 %v2395, 7
        %v2397 = vsub.s32 0, %v2396
        %v2398 = vrot.slane %v2379, %v2397
        %v2399 = vmul.f32 %v2394, %v2398
        %v2400 = vlaneseq
        %v2401 = vshrl.u32 %v2400, 7
        %v2402 = vsub.s32 0, %v2401
        %v2403 = vrot.slane %v2380, %v2402
        %v2404 = vadd.f32 %v2399, %v2403
        %v2405 = vpack.c.bf16 %v2404, %v2404
        %v2406 = vld [vmem:[#allocation13] sm:$0xf]
        %v2407 = vld [vmem:[#allocation13 + $0x4] sm:$0xf]
        %v2408 = vld [vmem:[#allocation13 + $0x8] sm:$0xf]
        %v2409 = vld [vmem:[#allocation13 + $0xc] sm:$0xf]
        %v2410 = vld [vmem:[#allocation13 + $0x10] sm:$0xf]
        %v2411 = vld [vmem:[#allocation13 + $0x14] sm:$0xf]
        %v2412 = vld [vmem:[#allocation13 + $0x18] sm:$0xf]
        %v2413 = vld [vmem:[#allocation13 + $0x1c] sm:$0xf]
        %v2414 = vld [vmem:[#allocation13 + $0x20] sm:$0xf]
        %v2415 = vld [vmem:[#allocation13 + $0x24] sm:$0xf]
        %v2416 = vld [vmem:[#allocation13 + $0x28] sm:$0xf]
        %v2417 = vld [vmem:[#allocation13 + $0x2c] sm:$0xf]
        %v2418 = vld [vmem:[#allocation13 + $0x30] sm:$0xf]
        %v2419 = vld [vmem:[#allocation13 + $0x34] sm:$0xf]
        %v2420 = vld [vmem:[#allocation13 + $0x38] sm:$0xf]
        %v2421 = vld [vmem:[#allocation13 + $0x3c] sm:$0xf]
        %v2422 = vld [vmem:[#allocation16] sm:$0x1]
        %v2423 = vlaneseq
        %v2424 = vshrl.u32 %v2423, 7
        %v2425 = vsub.s32 0, %v2424
        %v2426 = vrot.slane %v2422, %v2425
        %v2443 = vunpack.c.l.b16 %v2406
        %v2444 = vunpack.c.l.b16 %v2407
        %v2445 = vunpack.c.l.b16 %v2408
        %v2446 = vunpack.c.l.b16 %v2409
        %v2447 = vunpack.c.l.b16 %v2410
        %v2448 = vunpack.c.l.b16 %v2411
        %v2449 = vunpack.c.l.b16 %v2412
        %v2450 = vunpack.c.l.b16 %v2413
        %v2451 = vunpack.c.l.b16 %v2414
        %v2452 = vunpack.c.l.b16 %v2415
        %v2453 = vunpack.c.l.b16 %v2416
        %v2454 = vunpack.c.l.b16 %v2417
        %v2455 = vunpack.c.l.b16 %v2418
        %v2456 = vunpack.c.l.b16 %v2419
        %v2457 = vunpack.c.l.b16 %v2420
        %v2458 = vunpack.c.l.b16 %v2421
        %v2459 = vpack.c.b16 %v2444, %v2443
        %v2460 = vpack.c.b16 %v2446, %v2445
        %v2461 = vpack.c.b16 %v2448, %v2447
        %v2462 = vpack.c.b16 %v2450, %v2449
        %v2463 = vpack.c.b16 %v2452, %v2451
        %v2464 = vpack.c.b16 %v2454, %v2453
        %v2465 = vpack.c.b16 %v2456, %v2455
        %v2466 = vpack.c.b16 %v2458, %v2457
        %2475 = vmatprep.subr.bf16.mxu0 0
        %2476 = vmatpush1.bf16.msra.mxu0 %v2459
        %2477 = vmatprep.subr.bf16.mxu0 0
        %2478 = vmatpush1.bf16.msra.mxu0 %v2460
        %2479 = vmatprep.subr.bf16.mxu0 0
        %2480 = vmatpush1.bf16.msra.mxu0 %v2461
        %2481 = vmatprep.subr.bf16.mxu0 0
        %2482 = vmatpush1.bf16.msra.mxu0 %v2462
        %2483 = vmatprep.subr.bf16.mxu0 0
        %2484 = vmatpush1.bf16.msra.mxu0 %v2463
        %2485 = vmatprep.subr.bf16.mxu0 0
        %2486 = vmatpush1.bf16.msra.mxu0 %v2464
        %2487 = vmatprep.subr.bf16.mxu0 0
        %2488 = vmatpush1.bf16.msra.mxu0 %v2465
        %2489 = vmatprep.subr.bf16.mxu0 0
        %2490 = vmatpush1.bf16.msra.mxu0 %v2466
        %2491 = vmatprep.subr.bf16.mxu0 0
        %2492 = vmatpush1.bf16.msra.mxu0 0
        %2493 = vmatprep.subr.bf16.mxu0 0
        %2494 = vmatpush1.bf16.msra.mxu0 0
        %2495 = vmatprep.subr.bf16.mxu0 0
        %2496 = vmatpush1.bf16.msra.mxu0 0
        %2497 = vmatprep.subr.bf16.mxu0 0
        %2498 = vmatpush1.bf16.msra.mxu0 0
        %2499 = vmatprep.subr.bf16.mxu0 0
        %2500 = vmatpush1.bf16.msra.mxu0 0
        %2501 = vmatprep.subr.bf16.mxu0 0
        %2502 = vmatpush1.bf16.msra.mxu0 0
        %2503 = vmatprep.subr.bf16.mxu0 0
        %2504 = vmatpush1.bf16.msra.mxu0 0
        %2505 = vmatprep.subr.bf16.mxu0 0
        %2506 = vmatpush1.bf16.msra.mxu0 0
        %2507 = vmatprep.mubr.bf16.mxu0 0
        %2508 = vmatmul.mubr.bf16.gmra.mrb[0].mxu0 %v2405
        %v2509 = vpop.f32.mrb[0].mxu0
        %v2510 = vadd.f32 %v2426, %v2509
        %v2511 = vpop.f32.mrb[0].mxu0
        %v2512 = vpop.f32.mrb[0].mxu0
        %v2513 = vpop.f32.mrb[0].mxu0
        %2514 = vdwg.mxu0
        %v2515 = vmax.f32 %v2510, 0.0
        %v2516 = vpack.c.bf16 %v2515, %v2515
        %v2517 = vld [vmem:[#allocation14] sm:$0xf]
        %v2518 = vld [vmem:[#allocation14 + $0x4] sm:$0xf]
        %v2519 = vld [vmem:[#allocation14 + $0x8] sm:$0xf]
        %v2520 = vld [vmem:[#allocation14 + $0xc] sm:$0xf]
        %v2521 = vld [vmem:[#allocation14 + $0x10] sm:$0xf]
        %v2522 = vld [vmem:[#allocation14 + $0x14] sm:$0xf]
        %v2523 = vld [vmem:[#allocation14 + $0x18] sm:$0xf]
        %v2524 = vld [vmem:[#allocation14 + $0x1c] sm:$0xf]
        %v2525 = vld [vmem:[#allocation14 + $0x20] sm:$0xf]
        %v2526 = vld [vmem:[#allocation14 + $0x24] sm:$0xf]
        %v2527 = vld [vmem:[#allocation14 + $0x28] sm:$0xf]
        %v2528 = vld [vmem:[#allocation14 + $0x2c] sm:$0xf]
        %v2529 = vld [vmem:[#allocation14 + $0x30] sm:$0xf]
        %v2530 = vld [vmem:[#allocation14 + $0x34] sm:$0xf]
        %v2531 = vld [vmem:[#allocation14 + $0x38] sm:$0xf]
        %v2532 = vld [vmem:[#allocation14 + $0x3c] sm:$0xf]
        %v2533 = vld [vmem:[#allocation16 + $0x1] sm:$0x1]
        %v2534 = vlaneseq
        %v2535 = vshrl.u32 %v2534, 7
        %v2536 = vsub.s32 0, %v2535
        %v2537 = vrot.slane %v2533, %v2536
        %v2554 = vunpack.c.l.b16 %v2517
        %v2555 = vunpack.c.l.b16 %v2518
        %v2556 = vunpack.c.l.b16 %v2519
        %v2557 = vunpack.c.l.b16 %v2520
        %v2558 = vunpack.c.l.b16 %v2521
        %v2559 = vunpack.c.l.b16 %v2522
        %v2560 = vunpack.c.l.b16 %v2523
        %v2561 = vunpack.c.l.b16 %v2524
        %v2562 = vunpack.c.l.b16 %v2525
        %v2563 = vunpack.c.l.b16 %v2526
        %v2564 = vunpack.c.l.b16 %v2527
        %v2565 = vunpack.c.l.b16 %v2528
        %v2566 = vunpack.c.l.b16 %v2529
        %v2567 = vunpack.c.l.b16 %v2530
        %v2568 = vunpack.c.l.b16 %v2531
        %v2569 = vunpack.c.l.b16 %v2532
        %v2570 = vpack.c.b16 %v2555, %v2554
        %v2571 = vpack.c.b16 %v2557, %v2556
        %v2572 = vpack.c.b16 %v2559, %v2558
        %v2573 = vpack.c.b16 %v2561, %v2560
        %v2574 = vpack.c.b16 %v2563, %v2562
        %v2575 = vpack.c.b16 %v2565, %v2564
        %v2576 = vpack.c.b16 %v2567, %v2566
        %v2577 = vpack.c.b16 %v2569, %v2568
        %2586 = vmatprep.subr.bf16.mxu0 0
        %2587 = vmatpush1.bf16.msra.mxu0 %v2570
        %2588 = vmatprep.subr.bf16.mxu0 0
        %2589 = vmatpush1.bf16.msra.mxu0 %v2571
        %2590 = vmatprep.subr.bf16.mxu0 0
        %2591 = vmatpush1.bf16.msra.mxu0 %v2572
        %2592 = vmatprep.subr.bf16.mxu0 0
        %2593 = vmatpush1.bf16.msra.mxu0 %v2573
        %2594 = vmatprep.subr.bf16.mxu0 0
        %2595 = vmatpush1.bf16.msra.mxu0 %v2574
        %2596 = vmatprep.subr.bf16.mxu0 0
        %2597 = vmatpush1.bf16.msra.mxu0 %v2575
        %2598 = vmatprep.subr.bf16.mxu0 0
        %2599 = vmatpush1.bf16.msra.mxu0 %v2576
        %2600 = vmatprep.subr.bf16.mxu0 0
        %2601 = vmatpush1.bf16.msra.mxu0 %v2577
        %2602 = vmatprep.subr.bf16.mxu0 0
        %2603 = vmatpush1.bf16.msra.mxu0 0
        %2604 = vmatprep.subr.bf16.mxu0 0
        %2605 = vmatpush1.bf16.msra.mxu0 0
        %2606 = vmatprep.subr.bf16.mxu0 0
        %2607 = vmatpush1.bf16.msra.mxu0 0
        %2608 = vmatprep.subr.bf16.mxu0 0
        %2609 = vmatpush1.bf16.msra.mxu0 0
        %2610 = vmatprep.subr.bf16.mxu0 0
        %2611 = vmatpush1.bf16.msra.mxu0 0
        %2612 = vmatprep.subr.bf16.mxu0 0
        %2613 = vmatpush1.bf16.msra.mxu0 0
        %2614 = vmatprep.subr.bf16.mxu0 0
        %2615 = vmatpush1.bf16.msra.mxu0 0
        %2616 = vmatprep.subr.bf16.mxu0 0
        %2617 = vmatpush1.bf16.msra.mxu0 0
        %2618 = vmatprep.mubr.bf16.mxu0 0
        %2619 = vmatmul.mubr.bf16.gmra.mrb[0].mxu0 %v2516
        %v2620 = vpop.f32.mrb[0].mxu0
        %v2621 = vadd.f32 %v2537, %v2620
        %v2622 = vpop.f32.mrb[0].mxu0
        %v2623 = vpop.f32.mrb[0].mxu0
        %v2624 = vpop.f32.mrb[0].mxu0
        %2625 = vdwg.mxu0
        %v2626 = vld [vmem:[#allocation16 + $0x2] sm:$0x1]
        %v2627 = vld [vmem:[#allocation16 + $0x3] sm:$0x1]
        %v2628 = vadd.f32 %v2404, %v2621
        %2629 = vadd.xlane.f32.xlu0 %v2628
        %v2630 = vpop.xlane.xlu0 %2629
        %v2631 = vmul.f32 %v2630, 0.03125
        %v2632 = vmul.f32 %v2628, %v2628
        %2633 = vadd.xlane.f32.xlu0 %v2632
        %v2634 = vpop.xlane.xlu0 %2633
        %v2635 = vmul.f32 %v2634, 0.03125
        %v2636 = vmul.f32 %v2631, %v2631
        %v2637 = vsub.f32 %v2635, %v2636
        %v2638 = vsub.f32 %v2628, %v2631
        %v2639 = vadd.f32 %v2637, 1e-05
        %v2640 = vrsqrt.pop %v2639
        %v2641 = vmul.f32 %v2638, %v2640
        %v2642 = vlaneseq
        %v2643 = vshrl.u32 %v2642, 7
        %v2644 = vsub.s32 0, %v2643
        %v2645 = vrot.slane %v2626, %v2644
        %v2646 = vmul.f32 %v2641, %v2645
        %v2647 = vlaneseq
        %v2648 = vshrl.u32 %v2647, 7
        %v2649 = vsub.s32 0, %v2648
        %v2650 = vrot.slane %v2627, %v2649
        %v2651 = vadd.f32 %v2646, %v2650
        %v2652 = vpack.c.bf16 %v2651, %v2651
        %v2653 = vld [vmem:[%s14] sm:$0xf]
        %v2654 = vld [vmem:[%s14 + $0x4] sm:$0xf]
        %v2655 = vld [vmem:[%s14 + $0x8] sm:$0xf]
        %v2656 = vld [vmem:[%s14 + $0xc] sm:$0xf]
        %v2657 = vld [vmem:[%s14 + $0x10] sm:$0xf]
        %v2658 = vld [vmem:[%s14 + $0x14] sm:$0xf]
        %v2659 = vld [vmem:[%s14 + $0x18] sm:$0xf]
        %v2660 = vld [vmem:[%s14 + $0x1c] sm:$0xf]
        %v2661 = vld [vmem:[%s14 + $0x20] sm:$0xf]
        %v2662 = vld [vmem:[%s14 + $0x24] sm:$0xf]
        %v2663 = vld [vmem:[%s14 + $0x28] sm:$0xf]
        %v2664 = vld [vmem:[%s14 + $0x2c] sm:$0xf]
        %v2665 = vld [vmem:[%s14 + $0x30] sm:$0xf]
        %v2666 = vld [vmem:[%s14 + $0x34] sm:$0xf]
        %v2667 = vld [vmem:[%s14 + $0x38] sm:$0xf]
        %v2668 = vld [vmem:[%s14 + $0x3c] sm:$0xf]
        %v2669 = vld [vmem:[%s15] sm:$0x1]
        %v2671 = vlaneseq
        %v2672 = vshrl.u32 %v2671, 7
        %v2673 = vsub.s32 0, %v2672
        %v2674 = vrot.slane %v2669, %v2673
        %v2692 = vunpack.c.l.b16 %v2653
        %v2693 = vunpack.c.l.b16 %v2654
        %v2694 = vunpack.c.l.b16 %v2655
        %v2695 = vunpack.c.l.b16 %v2656
        %v2696 = vunpack.c.l.b16 %v2657
        %v2697 = vunpack.c.l.b16 %v2658
        %v2698 = vunpack.c.l.b16 %v2659
        %v2699 = vunpack.c.l.b16 %v2660
        %v2700 = vunpack.c.l.b16 %v2661
        %v2701 = vunpack.c.l.b16 %v2662
        %v2702 = vunpack.c.l.b16 %v2663
        %v2703 = vunpack.c.l.b16 %v2664
        %v2704 = vunpack.c.l.b16 %v2665
        %v2705 = vunpack.c.l.b16 %v2666
        %v2706 = vunpack.c.l.b16 %v2667
        %v2707 = vunpack.c.l.b16 %v2668
        %v2708 = vpack.c.b16 %v2693, %v2692
        %v2709 = vpack.c.b16 %v2695, %v2694
        %v2710 = vpack.c.b16 %v2697, %v2696
        %v2711 = vpack.c.b16 %v2699, %v2698
        %v2712 = vpack.c.b16 %v2701, %v2700
        %v2713 = vpack.c.b16 %v2703, %v2702
        %v2714 = vpack.c.b16 %v2705, %v2704
        %v2715 = vpack.c.b16 %v2707, %v2706
        %2724 = vmatprep.subr.bf16.mxu0 0
        %2725 = vmatpush1.bf16.msra.mxu0 %v2708
        %2726 = vmatprep.subr.bf16.mxu0 0
        %2727 = vmatpush1.bf16.msra.mxu0 %v2709
        %2728 = vmatprep.subr.bf16.mxu0 0
        %2729 = vmatpush1.bf16.msra.mxu0 %v2710
        %2730 = vmatprep.subr.bf16.mxu0 0
        %2731 = vmatpush1.bf16.msra.mxu0 %v2711
        %2732 = vmatprep.subr.bf16.mxu0 0
        %2733 = vmatpush1.bf16.msra.mxu0 %v2712
        %2734 = vmatprep.subr.bf16.mxu0 0
        %2735 = vmatpush1.bf16.msra.mxu0 %v2713
        %2736 = vmatprep.subr.bf16.mxu0 0
        %2737 = vmatpush1.bf16.msra.mxu0 %v2714
        %2738 = vmatprep.subr.bf16.mxu0 0
        %2739 = vmatpush1.bf16.msra.mxu0 %v2715
        %2740 = vmatprep.subr.bf16.mxu0 0
        %2741 = vmatpush1.bf16.msra.mxu0 0
        %2742 = vmatprep.subr.bf16.mxu0 0
        %2743 = vmatpush1.bf16.msra.mxu0 0
        %2744 = vmatprep.subr.bf16.mxu0 0
        %2745 = vmatpush1.bf16.msra.mxu0 0
        %2746 = vmatprep.subr.bf16.mxu0 0
        %2747 = vmatpush1.bf16.msra.mxu0 0
        %2748 = vmatprep.subr.bf16.mxu0 0
        %2749 = vmatpush1.bf16.msra.mxu0 0
        %2750 = vmatprep.subr.bf16.mxu0 0
        %2751 = vmatpush1.bf16.msra.mxu0 0
        %2752 = vmatprep.subr.bf16.mxu0 0
        %2753 = vmatpush1.bf16.msra.mxu0 0
        %2754 = vmatprep.subr.bf16.mxu0 0
        %2755 = vmatpush1.bf16.msra.mxu0 0
        %2756 = vmatprep.mubr.bf16.mxu0 0
        %2757 = vmatmul.mubr.bf16.gmra.mrb[0].mxu0 %v2652
        %v2758 = vpop.f32.mrb[0].mxu0
        %v2759 = vadd.f32 %v2674, %v2758
        %v2760 = vpop.f32.mrb[0].mxu0
        %v2761 = vpop.f32.mrb[0].mxu0
        %v2762 = vpop.f32.mrb[0].mxu0
        %2763 = vdwg.mxu0
        %2764 = vst [vmem:[%s646] sm:$0xff] %v2759
        %s2765 = sand.u32 %s389, 1
        %s2766 = scalar_lea.sflag [#allocation4], %s2765
        %s2767 = sand.u32 %s389, 1
        %s2768 = smul.addr %s2767, 8
        %s2769 = scalar_lea.vmem [#allocation17], %s2768
        // Predicated region
        $region121: #{transformer_forward.1} parent=83 // pred_check
          %p2770 = pneg %p399
        $region122: #{transformer_forward.1} parent=83 // pred_check_branch
          %2772 = sbr.rel (%p2770) target = $region124
        $region123: #{transformer_forward.1} parent=83 // pred_region
          %s2774 = ssub.s32 128, 128
          %2775 = vsyncadd %s2766, %s2774
          %s2776 = smul.addr %s35, 128
          %s2777 = scalar_lea.hbm %s16, %s2776
          %s2779 = sshll.u32 %s2769, 4
          %s2780 = int_to_ptr.vmem [resolvable:$true] %s2779
          %2782 = dma.vmem_to_hbm [thread:$0]  %s2780, 128, %s2777, %s2766
        $region124: #{transformer_forward.1} parent=83 // pred_fallthru
          _
      $region84: #{transformer_forward.1} parent=5 // pred_fallthru
        _
      %p2783 = scmp.le.s32.totalorder 2, %s30
      // Predicated region
      $region125: #{transformer_forward.1} parent=5 // pred_check
        %p2784 = pneg %p2783
      $region126: #{transformer_forward.1} parent=5 // pred_check_branch
        %2786 = sbr.rel (%p2784) target = $region128
      $region127: #{transformer_forward.1} parent=5 // pred_region
        %s2787 = ssub.s32 %s30, 2
        // Predicated region
        $region129: #{transformer_forward.1} parent=127 // pred_check
          %p2788 = pneg %p405
        $region130: #{transformer_forward.1} parent=127 // pred_check_branch
          %2790 = sbr.rel (%p2788) target = $region132
        $region131: #{transformer_forward.1} parent=127 // pred_region
          %s2791 = sand.u32 %s390, 1
          %s2792 = scalar_lea.sflag [#allocation4], %s2791
          %s2793 = sand.u32 %s390, 1
          %s2794 = smul.addr %s2793, 8
          %s2795 = scalar_lea.vmem [#allocation17], %s2794
          %2796 = dma.done %s2792, 128
        $region132: #{transformer_forward.1} parent=127 // pred_fallthru
          _
      $region128: #{transformer_forward.1} parent=5 // pred_fallthru
        _
    $region6: #{transformer_forward.1} parent=1 // loop_footer
      %s34 = sadd.s32 1, %s30
    $region7: #{transformer_forward.1} parent=1 // loop_footer_branch
      %29 = sbr.rel target = $region3
    $region8: #{transformer_forward.1} parent=1 // loop_exit
      _
    %2797 = vsyncpa [#allocation3], 1
    %s2798 = scalar_lea.sflag [#allocation3], 1
    %2799 = vsyncpa %s2798, 1
    %2800 = vsyncpa [#allocation6], 1
    %2801 = vsyncpa [#allocation9], 1
    %2802 = vsyncpa [#allocation12], 1
    %2803 = vsyncpa [#allocation15], 1
    %2804 = vsyncpa [#allocation4], 1
    %s2805 = scalar_lea.sflag [#allocation4], 1
    %2806 = vsyncpa %s2805, 1

</llo_original>
